<compile_context>
chip_gen: v6e
topology: v6e:2x2x1
jax: 0.10.0
libtpu: 0.0.40
codegen_flags: <defaults>
</compile_context>

<pallas_src>
import jax
import jax.numpy as jnp
from jax import lax
from jax.experimental import pallas as pl
from jax.experimental.pallas import tpu as pltpu

NEG_LARGE = float(jnp.finfo(jnp.float32).min)   # stand-in for -inf in max-pool
LEAKY_SLOPE = 0.01
BN_EPS = 1e-5
LANE = 128
TILE_P = 512                                    # lane-tile over flattened spatial

KERNEL_SIZES = (3, 3, 3, 1, 1)
CHANNELS = ((8, 1), (16, 8), (32, 16), (16, 32), (2, 16))


def _round_up(x, m):
    return (x + m - 1) // m * m


# ----------------------------- Pallas kernels -----------------------------

def _conv_bn_lrelu_kernel(p_ref, w_ref, b_ref, o_ref):
    # (Cout, K)bf16 @ (K, Bp)bf16 on the MXU (f32 accumulate), then the folded
    # conv-bias/BatchNorm(eval) bias and LeakyReLU(0.01).  Output is lane-dense.
    acc = jnp.dot(w_ref[...], p_ref[0],
                  preferred_element_type=jnp.float32)        # (Cout, Bp) f32
    acc = acc + b_ref[...]                                    # (Cout, 1) bias
    o_ref[0] = jnp.where(acc >= 0.0, acc, LEAKY_SLOPE * acc)


def _dual_pool_kernel(w_ref, m_ref, o_ref):
    # max_pool2d(3,3,pad=1) + avg_pool2d(3,3,pad=1, count_include_pad=True).
    # w_ref: (1, 9, C, Bp) zero-padded pooling windows (one tensor only),
    # m_ref: (9, 1, Bp) window-validity mask.  Unrolled VPU max/add over the
    # 9 within-window offsets; no cross-lane/sublane reduction.
    x0 = w_ref[0, 0]
    acc_max = jnp.where(m_ref[0] > 0.5, x0, NEG_LARGE)
    acc_sum = x0
    for k in range(1, 9):
        xk = w_ref[0, k]
        acc_max = jnp.maximum(acc_max, jnp.where(m_ref[k] > 0.5, xk, NEG_LARGE))
        acc_sum = acc_sum + xk
    o_ref[0] = acc_max + acc_sum * (1.0 / 9.0)


def _conv_gmax_kernel(x_ref, w_ref, b_ref, o_ref):
    # Fused final 1x1 conv + folded BN + LeakyReLU + global spatial max
    # (unsqueeze + AdaptiveMaxPool3d((2,1,1)) + squeeze == per-channel max).
    acc = jnp.dot(w_ref[...], x_ref[0],
                  preferred_element_type=jnp.float32)         # (Cout, P)
    acc = acc + b_ref[...]
    y = jnp.where(acc >= 0.0, acc, LEAKY_SLOPE * acc)
    o_ref[0] = jnp.max(y, axis=-1, keepdims=True)             # (Cout, 1)


# ------------------------------ wrappers -----------------------------------

def conv_bn_lrelu(patches, w_mat, b_eff):
    """patches (N, K, P) -> activations (N, Cout, P); gridded over (N, P-tiles)."""
    n, k, p = patches.shape
    cout = w_mat.shape[0]
    blk = min(TILE_P, _round_up(p, LANE))
    pp = _round_up(p, blk)
    if pp != p:
        patches = jnp.pad(patches, ((0, 0), (0, 0), (0, pp - p)))
    out = pl.pallas_call(
        _conv_bn_lrelu_kernel,
        out_shape=jax.ShapeDtypeStruct((n, cout, pp), jnp.float32),
        grid=(n, pp // blk),
        in_specs=[pl.BlockSpec((1, k, blk), lambda i, j: (i, 0, j)),
                  pl.BlockSpec((cout, k), lambda i, j: (0, 0)),
                  pl.BlockSpec((cout, 1), lambda i, j: (0, 0))],
        out_specs=pl.BlockSpec((1, cout, blk), lambda i, j: (i, 0, j)),
        compiler_params=pltpu.CompilerParams(
            dimension_semantics=("parallel", "parallel")),
    )(patches.astype(jnp.bfloat16), w_mat, b_eff.reshape(cout, 1))
    return out[:, :, :p]


def dual_pool(x):
    """x (N, C, H, W) -> (N, C, Hp, Wp): max_pool + avg_pool, k=3, s=3, pad=1."""
    n, c, h, w = x.shape
    hp, wp = (h - 1) // 3 + 1, (w - 1) // 3 + 1
    he, we = 3 * hp, 3 * wp
    # Zero-padded non-overlapping 3x3 windows (no data expansion: stride == k).
    xp = jnp.pad(x, ((0, 0), (0, 0), (1, 1), (1, 1)))[:, :, :he, :we]
    win = xp.reshape(n, c, hp, 3, wp, 3).transpose(0, 3, 5, 1, 2, 4)
    win = win.reshape(n, 9, c, hp * wp)
    valid = jnp.pad(jnp.ones((h, w), jnp.float32), ((1, 1), (1, 1)))[:he, :we]
    mask = valid.reshape(hp, 3, wp, 3).transpose(1, 3, 0, 2).reshape(9, 1, hp * wp)

    p = hp * wp
    blk = min(TILE_P, _round_up(p, LANE))
    pp = _round_up(p, blk)
    if pp != p:
        win = jnp.pad(win, ((0, 0), (0, 0), (0, 0), (0, pp - p)))
        mask = jnp.pad(mask, ((0, 0), (0, 0), (0, pp - p)))
    out = pl.pallas_call(
        _dual_pool_kernel,
        out_shape=jax.ShapeDtypeStruct((n, c, pp), jnp.float32),
        grid=(n, pp // blk),
        in_specs=[pl.BlockSpec((1, 9, c, blk), lambda i, j: (i, 0, 0, j)),
                  pl.BlockSpec((9, 1, blk), lambda i, j: (0, 0, j))],
        out_specs=pl.BlockSpec((1, c, blk), lambda i, j: (i, 0, j)),
        compiler_params=pltpu.CompilerParams(
            dimension_semantics=("parallel", "parallel")),
    )(win, mask)
    return out[:, :, :p].reshape(n, c, hp, wp)


def conv_bn_lrelu_global_max(x, w_mat, b_eff):
    """x (N, Cin, H, W) -> (N, Cout): fused 1x1 conv + BN + LeakyReLU + global max."""
    n, cin, h, w = x.shape
    cout = w_mat.shape[0]
    xf = x.reshape(n, cin, h * w).astype(jnp.bfloat16)
    out = pl.pallas_call(
        _conv_gmax_kernel,
        out_shape=jax.ShapeDtypeStruct((n, cout, 1), jnp.float32),
        grid=(n,),
        in_specs=[pl.BlockSpec((1, cin, h * w), lambda i: (i, 0, 0)),
                  pl.BlockSpec((cout, cin), lambda i: (0, 0)),
                  pl.BlockSpec((cout, 1), lambda i: (0, 0))],
        out_specs=pl.BlockSpec((1, cout, 1), lambda i: (i, 0, 0)),
        compiler_params=pltpu.CompilerParams(dimension_semantics=("parallel",)),
    )(xf, w_mat, b_eff.reshape(cout, 1))
    return out[:, :, 0]


# ------------------------------ JAX glue -----------------------------------

def _im2col(x, k):
    # x: (N, C, H, W) -> patches (N, k*k*C, Ho*Wo) for a VALID, stride-1 conv.
    # TODO(synk): the k*k patch expansion is still materialized in HBM; an
    # in-kernel (VMEM-scratch) patch build would remove that traffic.
    n, c, h, w = x.shape
    ho, wo = h - k + 1, w - k + 1
    cols = [x[:, :, di:di + ho, dj:dj + wo]
            for di in range(k) for dj in range(k)]
    return jnp.concatenate(cols, axis=1).reshape(n, k * k * c, ho * wo), (ho, wo)


def init_params(key):
    params = []
    for i, ((cout, cin), k) in enumerate(zip(CHANNELS, KERNEL_SIZES)):
        kw_, kb, kg, kbe = jax.random.split(jax.random.fold_in(key, i), 4)
        fan_in = cin * k * k
        w = jax.random.normal(kw_, (cout, cin, k, k), jnp.float32) / jnp.sqrt(fan_in)
        b = 0.1 * jax.random.normal(kb, (cout,), jnp.float32)
        gamma = 1.0 + 0.1 * jax.random.normal(kg, (cout,), jnp.float32)
        beta = 0.1 * jax.random.normal(kbe, (cout,), jnp.float32)
        run_mean = jnp.zeros((cout,), jnp.float32)    # fresh-init BN running stats
        run_var = jnp.ones((cout,), jnp.float32)
        scale = gamma / jnp.sqrt(run_var + BN_EPS)
        # Eval-mode BN is affine: fold conv bias + BN into the weights (exact).
        w_eff = w * scale[:, None, None, None]
        b_eff = (b - run_mean) * scale + beta
        # (Cout, Cin, kh, kw) -> (Cout, kh*kw*Cin), matching _im2col's K order;
        # stored bf16 for the MXU (f32 accumulation happens in-kernel).
        w_mat = jnp.transpose(w_eff, (0, 2, 3, 1)).reshape(cout, k * k * cin)
        params.append(dict(w_eff=w_eff,
                           w_mat=w_mat.astype(jnp.bfloat16),
                           b_eff=b_eff))
    return params


@jax.jit
def fcn_forward(x_nchw, params):
    # Eval-mode forward.
    # TODO(synk): train-mode Dropout2d / batch-statistics BatchNorm are not
    # implemented (eval semantics: identity / running stats).
    x = x_nchw.astype(jnp.float32)                             # (N, 1, H, W)
    for idx, p in enumerate(params):
        k = KERNEL_SIZES[idx]
        if idx == len(params) - 1:                             # conv5 + global max
            return conv_bn_lrelu_global_max(x, p["w_mat"], p["b_eff"])
        n, c, h, w = x.shape
        if k == 1:
            patches, (ho, wo) = x.reshape(n, c, h * w), (h, w)
        else:
            patches, (ho, wo) = _im2col(x, k)
        y = conv_bn_lrelu(patches, p["w_mat"], p["b_eff"])     # (N, Cout, Ho*Wo)
        x = dual_pool(y.reshape(n, -1, ho, wo))                # pool after conv1..4
    return x


@jax.jit
def fcn_reference(x_nchw, params):
    # Pure-XLA reference with identical numerics (folded BN, bf16 conv inputs,
    # f32 accumulation) for self-verification of the Pallas path.
    x = x_nchw.astype(jnp.float32)
    for idx, p in enumerate(params):
        y = lax.conv_general_dilated(
            x.astype(jnp.bfloat16), p["w_eff"].astype(jnp.bfloat16),
            (1, 1), "VALID", dimension_numbers=("NCHW", "OIHW", "NCHW"),
            preferred_element_type=jnp.float32)
        y = y + p["b_eff"].reshape(1, -1, 1, 1)
        x = jnp.where(y >= 0, y, LEAKY_SLOPE * y)
        if idx < 4:
            pad = [(0, 0), (0, 0), (1, 1), (1, 1)]
            mx = lax.reduce_window(x, -jnp.inf, lax.max,
                                   (1, 1, 3, 3), (1, 1, 3, 3), pad)
            av = lax.reduce_window(x, 0.0, lax.add,
                                   (1, 1, 3, 3), (1, 1, 3, 3), pad) / 9.0
            x = mx + av
    return jnp.max(x, axis=(2, 3))


if __name__ == "__main__":
    key = jax.random.PRNGKey(0)
    params = init_params(jax.random.fold_in(key, 1))
    # smallest-ish valid input for this net (needs spatial >= 27); N=2, 1 channel
    x = jax.random.normal(jax.random.fold_in(key, 2), (2, 1, 32, 32), jnp.float32)

    out = jax.block_until_ready(fcn_forward(x, params))
    ref = jax.block_until_ready(fcn_reference(x, params))

    assert out.shape == (2, 2), out.shape
    err = float(jnp.max(jnp.abs(out - ref)))
    tol = 1e-2 * (float(jnp.max(jnp.abs(ref))) + 1.0)
    assert err <= tol, f"mismatch vs reference: {err} > {tol}"
    print("KERNEL_OK")
</pallas_src>

<mosaic_0001>
module attributes {stable_mosaic.version = 11 : i64} {
  func.func @_conv_bn_lrelu_kernel(%arg0: i32, %arg1: i32, %arg2: memref<1x9x512xbf16, #tpu.memory_space<vmem>>, %arg3: memref<8x9xbf16, #tpu.memory_space<vmem>>, %arg4: memref<8x1xf32, #tpu.memory_space<vmem>>, %arg5: memref<1x8x512xf32, #tpu.memory_space<vmem>>) attributes {dimension_semantics = [#tpu.dimension_semantics<parallel>, #tpu.dimension_semantics<parallel>], iteration_bounds = array<i64: 2, 2>, scalar_prefetch = 0 : i64, scratch_operands = 0 : i64, tpu.core_type = #tpu.core_type<tc>, window_params = [{transform_indices = @transform_0, window_bounds = array<i64: 1, 9, 512>}, {pipeline_mode = #tpu.pipeline_mode<synchronous>, transform_indices = @transform_1, window_bounds = array<i64: 8, 9>}, {pipeline_mode = #tpu.pipeline_mode<synchronous>, transform_indices = @transform_2, window_bounds = array<i64: 8, 1>}, {transform_indices = @transform_3, window_bounds = array<i64: 1, 8, 512>}]} {
    %c0 = arith.constant 0 : index
    %c0_0 = arith.constant 0 : index
    %0 = vector.load %arg3[%c0, %c0_0] : memref<8x9xbf16, #tpu.memory_space<vmem>>, vector<8x9xbf16>
    %c0_1 = arith.constant 0 : index
    %c0_2 = arith.constant 0 : index
    %c0_3 = arith.constant 0 : index
    %1 = vector.load %arg2[%c0_1, %c0_2, %c0_3] : memref<1x9x512xbf16, #tpu.memory_space<vmem>>, vector<1x9x512xbf16>
    %2 = vector.shape_cast %1 : vector<1x9x512xbf16> to vector<9x512xbf16>
    %cst = arith.constant dense<0.000000e+00> : vector<8x512xf32>
    %3 = tpu.matmul %0, %2, %cst {dimension_numbers = #tpu.dot_dimension_numbers<[1], [0], [0], [1], [0, 0, 1, 1], [], []>} : vector<8x9xbf16>, vector<9x512xbf16>, vector<8x512xf32> -> vector<8x512xf32>
    %c0_4 = arith.constant 0 : index
    %c0_5 = arith.constant 0 : index
    %4 = vector.load %arg4[%c0_4, %c0_5] : memref<8x1xf32, #tpu.memory_space<vmem>>, vector<8x1xf32>
    %5 = vector.broadcast %4 : vector<8x1xf32> to vector<8x512xf32>
    %6 = arith.addf %3, %5 : vector<8x512xf32>
    %cst_6 = arith.constant 0.000000e+00 : f32
    %7 = vector.broadcast %cst_6 : f32 to vector<8x512xf32>
    %8 = arith.cmpf oge, %6, %7 : vector<8x512xf32>
    %cst_7 = arith.constant 0.00999999977 : f32
    %9 = vector.broadcast %cst_7 : f32 to vector<8x512xf32>
    %10 = arith.mulf %9, %6 : vector<8x512xf32>
    %11 = arith.select %8, %6, %10 : vector<8x512xi1>, vector<8x512xf32>
    %c0_8 = arith.constant 0 : index
    %c0_9 = arith.constant 0 : index
    %c0_10 = arith.constant 0 : index
    %12 = vector.load %arg5[%c0_8, %c0_9, %c0_10] : memref<1x8x512xf32, #tpu.memory_space<vmem>>, vector<1x8x512xf32>
    %13 = vector.shape_cast %12 : vector<1x8x512xf32> to vector<8x512xf32>
    %14 = vector.shape_cast %11 : vector<8x512xf32> to vector<1x8x512xf32>
    tpu.vector_store %arg5[%c0_8, %c0_9, %c0_10], %14 {strides = array<i32>} : memref<1x8x512xf32, #tpu.memory_space<vmem>>, vector<1x8x512xf32>,
    return
  }
  func.func @transform_0(%arg0: i32, %arg1: i32) -> (i32, i32, i32) {
    %c0_i32 = arith.constant 0 : i32
    %c0_i32_0 = arith.constant 0 : i32
    return %arg0, %c0_i32, %arg1 : i32, i32, i32
  }
  func.func @transform_1(%arg0: i32, %arg1: i32) -> (i32, i32) {
    %c0_i32 = arith.constant 0 : i32
    %c0_i32_0 = arith.constant 0 : i32
    %c0_i32_1 = arith.constant 0 : i32
    return %c0_i32, %c0_i32_0 : i32, i32
  }
  func.func @transform_2(%arg0: i32, %arg1: i32) -> (i32, i32) {
    %c0_i32 = arith.constant 0 : i32
    %c0_i32_0 = arith.constant 0 : i32
    %c0_i32_1 = arith.constant 0 : i32
    return %c0_i32, %c0_i32_0 : i32, i32
  }
  func.func @transform_3(%arg0: i32, %arg1: i32) -> (i32, i32, i32) {
    %c0_i32 = arith.constant 0 : i32
    %c0_i32_0 = arith.constant 0 : i32
    return %arg0, %c0_i32, %arg1 : i32, i32, i32
  }
}

module attributes {stable_mosaic.version = 11 : i64} {
  func.func @_dual_pool_kernel(%arg0: i32, %arg1: i32, %arg2: memref<1x9x8x128xf32, #tpu.memory_space<vmem>>, %arg3: memref<9x1x128xf32, #tpu.memory_space<vmem>>, %arg4: memref<1x8x128xf32, #tpu.memory_space<vmem>>) attributes {dimension_semantics = [#tpu.dimension_semantics<parallel>, #tpu.dimension_semantics<parallel>], iteration_bounds = array<i64: 2, 1>, scalar_prefetch = 0 : i64, scratch_operands = 0 : i64, tpu.core_type = #tpu.core_type<tc>, window_params = [{transform_indices = @transform_0, window_bounds = array<i64: 1, 9, 8, 128>}, {transform_indices = @transform_1, window_bounds = array<i64: 9, 1, 128>}, {transform_indices = @transform_2, window_bounds = array<i64: 1, 8, 128>}]} {
    %c0 = arith.constant 0 : index
    %c0_0 = arith.constant 0 : index
    %c0_1 = arith.constant 0 : index
    %c0_2 = arith.constant 0 : index
    %0 = vector.load %arg2[%c0, %c0_0, %c0_1, %c0_2] : memref<1x9x8x128xf32, #tpu.memory_space<vmem>>, vector<1x1x8x128xf32>
    %1 = vector.shape_cast %0 : vector<1x1x8x128xf32> to vector<8x128xf32>
    %c0_3 = arith.constant 0 : index
    %c0_4 = arith.constant 0 : index
    %c0_5 = arith.constant 0 : index
    %2 = vector.load %arg3[%c0_3, %c0_4, %c0_5] : memref<9x1x128xf32, #tpu.memory_space<vmem>>, vector<1x1x128xf32>
    %3 = vector.shape_cast %2 : vector<1x1x128xf32> to vector<1x128xf32>
    %cst = arith.constant 5.000000e-01 : f32
    %4 = vector.broadcast %cst : f32 to vector<1x128xf32>
    %5 = arith.cmpf ogt, %3, %4 : vector<1x128xf32>
    %cst_6 = arith.constant -3.40282347E+38 : f32
    %6 = vector.shape_cast %5 : vector<1x128xi1> to vector<1x128xi1>
    %7 = vector.broadcast %6 : vector<1x128xi1> to vector<8x128xi1>
    %8 = vector.broadcast %cst_6 : f32 to vector<8x128xf32>
    %9 = arith.select %7, %1, %8 : vector<8x128xi1>, vector<8x128xf32>
    %c0_7 = arith.constant 0 : index
    %c1 = arith.constant 1 : index
    %c0_8 = arith.constant 0 : index
    %c0_9 = arith.constant 0 : index
    %10 = vector.load %arg2[%c0_7, %c1, %c0_8, %c0_9] : memref<1x9x8x128xf32, #tpu.memory_space<vmem>>, vector<1x1x8x128xf32>
    %11 = vector.shape_cast %10 : vector<1x1x8x128xf32> to vector<8x128xf32>
    %c1_10 = arith.constant 1 : index
    %c0_11 = arith.constant 0 : index
    %c0_12 = arith.constant 0 : index
    %12 = vector.load %arg3[%c1_10, %c0_11, %c0_12] : memref<9x1x128xf32, #tpu.memory_space<vmem>>, vector<1x1x128xf32>
    %13 = vector.shape_cast %12 : vector<1x1x128xf32> to vector<1x128xf32>
    %cst_13 = arith.constant 5.000000e-01 : f32
    %14 = vector.broadcast %cst_13 : f32 to vector<1x128xf32>
    %15 = arith.cmpf ogt, %13, %14 : vector<1x128xf32>
    %cst_14 = arith.constant -3.40282347E+38 : f32
    %16 = vector.shape_cast %15 : vector<1x128xi1> to vector<1x128xi1>
    %17 = vector.broadcast %16 : vector<1x128xi1> to vector<8x128xi1>
    %18 = vector.broadcast %cst_14 : f32 to vector<8x128xf32>
    %19 = arith.select %17, %11, %18 : vector<8x128xi1>, vector<8x128xf32>
    %20 = arith.maximumf %9, %19 : vector<8x128xf32>
    %21 = arith.addf %1, %11 : vector<8x128xf32>
    %c0_15 = arith.constant 0 : index
    %c2 = arith.constant 2 : index
    %c0_16 = arith.constant 0 : index
    %c0_17 = arith.constant 0 : index
    %22 = vector.load %arg2[%c0_15, %c2, %c0_16, %c0_17] : memref<1x9x8x128xf32, #tpu.memory_space<vmem>>, vector<1x1x8x128xf32>
    %23 = vector.shape_cast %22 : vector<1x1x8x128xf32> to vector<8x128xf32>
    %c2_18 = arith.constant 2 : index
    %c0_19 = arith.constant 0 : index
    %c0_20 = arith.constant 0 : index
    %24 = vector.load %arg3[%c2_18, %c0_19, %c0_20] : memref<9x1x128xf32, #tpu.memory_space<vmem>>, vector<1x1x128xf32>
    %25 = vector.shape_cast %24 : vector<1x1x128xf32> to vector<1x128xf32>
    %cst_21 = arith.constant 5.000000e-01 : f32
    %26 = vector.broadcast %cst_21 : f32 to vector<1x128xf32>
    %27 = arith.cmpf ogt, %25, %26 : vector<1x128xf32>
    %cst_22 = arith.constant -3.40282347E+38 : f32
    %28 = vector.shape_cast %27 : vector<1x128xi1> to vector<1x128xi1>
    %29 = vector.broadcast %28 : vector<1x128xi1> to vector<8x128xi1>
    %30 = vector.broadcast %cst_22 : f32 to vector<8x128xf32>
    %31 = arith.select %29, %23, %30 : vector<8x128xi1>, vector<8x128xf32>
    %32 = arith.maximumf %20, %31 : vector<8x128xf32>
    %33 = arith.addf %21, %23 : vector<8x128xf32>
    %c0_23 = arith.constant 0 : index
    %c3 = arith.constant 3 : index
    %c0_24 = arith.constant 0 : index
    %c0_25 = arith.constant 0 : index
    %34 = vector.load %arg2[%c0_23, %c3, %c0_24, %c0_25] : memref<1x9x8x128xf32, #tpu.memory_space<vmem>>, vector<1x1x8x128xf32>
    %35 = vector.shape_cast %34 : vector<1x1x8x128xf32> to vector<8x128xf32>
    %c3_26 = arith.constant 3 : index
    %c0_27 = arith.constant 0 : index
    %c0_28 = arith.constant 0 : index
    %36 = vector.load %arg3[%c3_26, %c0_27, %c0_28] : memref<9x1x128xf32, #tpu.memory_space<vmem>>, vector<1x1x128xf32>
    %37 = vector.shape_cast %36 : vector<1x1x128xf32> to vector<1x128xf32>
    %cst_29 = arith.constant 5.000000e-01 : f32
    %38 = vector.broadcast %cst_29 : f32 to vector<1x128xf32>
    %39 = arith.cmpf ogt, %37, %38 : vector<1x128xf32>
    %cst_30 = arith.constant -3.40282347E+38 : f32
    %40 = vector.shape_cast %39 : vector<1x128xi1> to vector<1x128xi1>
    %41 = vector.broadcast %40 : vector<1x128xi1> to vector<8x128xi1>
    %42 = vector.broadcast %cst_30 : f32 to vector<8x128xf32>
    %43 = arith.select %41, %35, %42 : vector<8x128xi1>, vector<8x128xf32>
    %44 = arith.maximumf %32, %43 : vector<8x128xf32>
    %45 = arith.addf %33, %35 : vector<8x128xf32>
    %c0_31 = arith.constant 0 : index
    %c4 = arith.constant 4 : index
    %c0_32 = arith.constant 0 : index
    %c0_33 = arith.constant 0 : index
    %46 = vector.load %arg2[%c0_31, %c4, %c0_32, %c0_33] : memref<1x9x8x128xf32, #tpu.memory_space<vmem>>, vector<1x1x8x128xf32>
    %47 = vector.shape_cast %46 : vector<1x1x8x128xf32> to vector<8x128xf32>
    %c4_34 = arith.constant 4 : index
    %c0_35 = arith.constant 0 : index
    %c0_36 = arith.constant 0 : index
    %48 = vector.load %arg3[%c4_34, %c0_35, %c0_36] : memref<9x1x128xf32, #tpu.memory_space<vmem>>, vector<1x1x128xf32>
    %49 = vector.shape_cast %48 : vector<1x1x128xf32> to vector<1x128xf32>
    %cst_37 = arith.constant 5.000000e-01 : f32
    %50 = vector.broadcast %cst_37 : f32 to vector<1x128xf32>
    %51 = arith.cmpf ogt, %49, %50 : vector<1x128xf32>
    %cst_38 = arith.constant -3.40282347E+38 : f32
    %52 = vector.shape_cast %51 : vector<1x128xi1> to vector<1x128xi1>
    %53 = vector.broadcast %52 : vector<1x128xi1> to vector<8x128xi1>
    %54 = vector.broadcast %cst_38 : f32 to vector<8x128xf32>
    %55 = arith.select %53, %47, %54 : vector<8x128xi1>, vector<8x128xf32>
    %56 = arith.maximumf %44, %55 : vector<8x128xf32>
    %57 = arith.addf %45, %47 : vector<8x128xf32>
    %c0_39 = arith.constant 0 : index
    %c5 = arith.constant 5 : index
    %c0_40 = arith.constant 0 : index
    %c0_41 = arith.constant 0 : index
    %58 = vector.load %arg2[%c0_39, %c5, %c0_40, %c0_41] : memref<1x9x8x128xf32, #tpu.memory_space<vmem>>, vector<1x1x8x128xf32>
    %59 = vector.shape_cast %58 : vector<1x1x8x128xf32> to vector<8x128xf32>
    %c5_42 = arith.constant 5 : index
    %c0_43 = arith.constant 0 : index
    %c0_44 = arith.constant 0 : index
    %60 = vector.load %arg3[%c5_42, %c0_43, %c0_44] : memref<9x1x128xf32, #tpu.memory_space<vmem>>, vector<1x1x128xf32>
    %61 = vector.shape_cast %60 : vector<1x1x128xf32> to vector<1x128xf32>
    %cst_45 = arith.constant 5.000000e-01 : f32
    %62 = vector.broadcast %cst_45 : f32 to vector<1x128xf32>
    %63 = arith.cmpf ogt, %61, %62 : vector<1x128xf32>
    %cst_46 = arith.constant -3.40282347E+38 : f32
    %64 = vector.shape_cast %63 : vector<1x128xi1> to vector<1x128xi1>
    %65 = vector.broadcast %64 : vector<1x128xi1> to vector<8x128xi1>
    %66 = vector.broadcast %cst_46 : f32 to vector<8x128xf32>
    %67 = arith.select %65, %59, %66 : vector<8x128xi1>, vector<8x128xf32>
    %68 = arith.maximumf %56, %67 : vector<8x128xf32>
    %69 = arith.addf %57, %59 : vector<8x128xf32>
    %c0_47 = arith.constant 0 : index
    %c6 = arith.constant 6 : index
    %c0_48 = arith.constant 0 : index
    %c0_49 = arith.constant 0 : index
    %70 = vector.load %arg2[%c0_47, %c6, %c0_48, %c0_49] : memref<1x9x8x128xf32, #tpu.memory_space<vmem>>, vector<1x1x8x128xf32>
    %71 = vector.shape_cast %70 : vector<1x1x8x128xf32> to vector<8x128xf32>
    %c6_50 = arith.constant 6 : index
    %c0_51 = arith.constant 0 : index
    %c0_52 = arith.constant 0 : index
    %72 = vector.load %arg3[%c6_50, %c0_51, %c0_52] : memref<9x1x128xf32, #tpu.memory_space<vmem>>, vector<1x1x128xf32>
    %73 = vector.shape_cast %72 : vector<1x1x128xf32> to vector<1x128xf32>
    %cst_53 = arith.constant 5.000000e-01 : f32
    %74 = vector.broadcast %cst_53 : f32 to vector<1x128xf32>
    %75 = arith.cmpf ogt, %73, %74 : vector<1x128xf32>
    %cst_54 = arith.constant -3.40282347E+38 : f32
    %76 = vector.shape_cast %75 : vector<1x128xi1> to vector<1x128xi1>
    %77 = vector.broadcast %76 : vector<1x128xi1> to vector<8x128xi1>
    %78 = vector.broadcast %cst_54 : f32 to vector<8x128xf32>
    %79 = arith.select %77, %71, %78 : vector<8x128xi1>, vector<8x128xf32>
    %80 = arith.maximumf %68, %79 : vector<8x128xf32>
    %81 = arith.addf %69, %71 : vector<8x128xf32>
    %c0_55 = arith.constant 0 : index
    %c7 = arith.constant 7 : index
    %c0_56 = arith.constant 0 : index
    %c0_57 = arith.constant 0 : index
    %82 = vector.load %arg2[%c0_55, %c7, %c0_56, %c0_57] : memref<1x9x8x128xf32, #tpu.memory_space<vmem>>, vector<1x1x8x128xf32>
    %83 = vector.shape_cast %82 : vector<1x1x8x128xf32> to vector<8x128xf32>
    %c7_58 = arith.constant 7 : index
    %c0_59 = arith.constant 0 : index
    %c0_60 = arith.constant 0 : index
    %84 = vector.load %arg3[%c7_58, %c0_59, %c0_60] : memref<9x1x128xf32, #tpu.memory_space<vmem>>, vector<1x1x128xf32>
    %85 = vector.shape_cast %84 : vector<1x1x128xf32> to vector<1x128xf32>
    %cst_61 = arith.constant 5.000000e-01 : f32
    %86 = vector.broadcast %cst_61 : f32 to vector<1x128xf32>
    %87 = arith.cmpf ogt, %85, %86 : vector<1x128xf32>
    %cst_62 = arith.constant -3.40282347E+38 : f32
    %88 = vector.shape_cast %87 : vector<1x128xi1> to vector<1x128xi1>
    %89 = vector.broadcast %88 : vector<1x128xi1> to vector<8x128xi1>
    %90 = vector.broadcast %cst_62 : f32 to vector<8x128xf32>
    %91 = arith.select %89, %83, %90 : vector<8x128xi1>, vector<8x128xf32>
    %92 = arith.maximumf %80, %91 : vector<8x128xf32>
    %93 = arith.addf %81, %83 : vector<8x128xf32>
    %c0_63 = arith.constant 0 : index
    %c8 = arith.constant 8 : index
    %c0_64 = arith.constant 0 : index
    %c0_65 = arith.constant 0 : index
    %94 = vector.load %arg2[%c0_63, %c8, %c0_64, %c0_65] : memref<1x9x8x128xf32, #tpu.memory_space<vmem>>, vector<1x1x8x128xf32>
    %95 = vector.shape_cast %94 : vector<1x1x8x128xf32> to vector<8x128xf32>
    %c8_66 = arith.constant 8 : index
    %c0_67 = arith.constant 0 : index
    %c0_68 = arith.constant 0 : index
    %96 = vector.load %arg3[%c8_66, %c0_67, %c0_68] : memref<9x1x128xf32, #tpu.memory_space<vmem>>, vector<1x1x128xf32>
    %97 = vector.shape_cast %96 : vector<1x1x128xf32> to vector<1x128xf32>
    %cst_69 = arith.constant 5.000000e-01 : f32
    %98 = vector.broadcast %cst_69 : f32 to vector<1x128xf32>
    %99 = arith.cmpf ogt, %97, %98 : vector<1x128xf32>
    %cst_70 = arith.constant -3.40282347E+38 : f32
    %100 = vector.shape_cast %99 : vector<1x128xi1> to vector<1x128xi1>
    %101 = vector.broadcast %100 : vector<1x128xi1> to vector<8x128xi1>
    %102 = vector.broadcast %cst_70 : f32 to vector<8x128xf32>
    %103 = arith.select %101, %95, %102 : vector<8x128xi1>, vector<8x128xf32>
    %104 = arith.maximumf %92, %103 : vector<8x128xf32>
    %105 = arith.addf %93, %95 : vector<8x128xf32>
    %cst_71 = arith.constant 0.111111112 : f32
    %106 = vector.broadcast %cst_71 : f32 to vector<8x128xf32>
    %107 = arith.mulf %105, %106 : vector<8x128xf32>
    %108 = arith.addf %104, %107 : vector<8x128xf32>
    %c0_72 = arith.constant 0 : index
    %c0_73 = arith.constant 0 : index
    %c0_74 = arith.constant 0 : index
    %109 = vector.load %arg4[%c0_72, %c0_73, %c0_74] : memref<1x8x128xf32, #tpu.memory_space<vmem>>, vector<1x8x128xf32>
    %110 = vector.shape_cast %109 : vector<1x8x128xf32> to vector<8x128xf32>
    %111 = vector.shape_cast %108 : vector<8x128xf32> to vector<1x8x128xf32>
    tpu.vector_store %arg4[%c0_72, %c0_73, %c0_74], %111 {strides = array<i32>} : memref<1x8x128xf32, #tpu.memory_space<vmem>>, vector<1x8x128xf32>,
    return
  }
  func.func @transform_0(%arg0: i32, %arg1: i32) -> (i32, i32, i32, i32) {
    %c0_i32 = arith.constant 0 : i32
    %c0_i32_0 = arith.constant 0 : i32
    %c0_i32_1 = arith.constant 0 : i32
    return %arg0, %c0_i32, %c0_i32_0, %arg1 : i32, i32, i32, i32
  }
  func.func @transform_1(%arg0: i32, %arg1: i32) -> (i32, i32, i32) {
    %c0_i32 = arith.constant 0 : i32
    %c0_i32_0 = arith.constant 0 : i32
    %c0_i32_1 = arith.constant 0 : i32
    return %c0_i32, %c0_i32_0, %arg1 : i32, i32, i32
  }
  func.func @transform_2(%arg0: i32, %arg1: i32) -> (i32, i32, i32) {
    %c0_i32 = arith.constant 0 : i32
    %c0_i32_0 = arith.constant 0 : i32
    return %arg0, %c0_i32, %arg1 : i32, i32, i32
  }
}

module attributes {stable_mosaic.version = 11 : i64} {
  func.func @_conv_bn_lrelu_kernel(%arg0: i32, %arg1: i32, %arg2: memref<1x72x128xbf16, #tpu.memory_space<vmem>>, %arg3: memref<16x72xbf16, #tpu.memory_space<vmem>>, %arg4: memref<16x1xf32, #tpu.memory_space<vmem>>, %arg5: memref<1x16x128xf32, #tpu.memory_space<vmem>>) attributes {dimension_semantics = [#tpu.dimension_semantics<parallel>, #tpu.dimension_semantics<parallel>], iteration_bounds = array<i64: 2, 1>, scalar_prefetch = 0 : i64, scratch_operands = 0 : i64, tpu.core_type = #tpu.core_type<tc>, window_params = [{transform_indices = @transform_0, window_bounds = array<i64: 1, 72, 128>}, {pipeline_mode = #tpu.pipeline_mode<synchronous>, transform_indices = @transform_1, window_bounds = array<i64: 16, 72>}, {pipeline_mode = #tpu.pipeline_mode<synchronous>, transform_indices = @transform_2, window_bounds = array<i64: 16, 1>}, {transform_indices = @transform_3, window_bounds = array<i64: 1, 16, 128>}]} {
    %c0 = arith.constant 0 : index
    %c0_0 = arith.constant 0 : index
    %0 = vector.load %arg3[%c0, %c0_0] : memref<16x72xbf16, #tpu.memory_space<vmem>>, vector<16x72xbf16>
    %c0_1 = arith.constant 0 : index
    %c0_2 = arith.constant 0 : index
    %c0_3 = arith.constant 0 : index
    %1 = vector.load %arg2[%c0_1, %c0_2, %c0_3] : memref<1x72x128xbf16, #tpu.memory_space<vmem>>, vector<1x72x128xbf16>
    %2 = vector.shape_cast %1 : vector<1x72x128xbf16> to vector<72x128xbf16>
    %cst = arith.constant dense<0.000000e+00> : vector<16x128xf32>
    %3 = tpu.matmul %0, %2, %cst {dimension_numbers = #tpu.dot_dimension_numbers<[1], [0], [0], [1], [0, 0, 1, 1], [], []>} : vector<16x72xbf16>, vector<72x128xbf16>, vector<16x128xf32> -> vector<16x128xf32>
    %c0_4 = arith.constant 0 : index
    %c0_5 = arith.constant 0 : index
    %4 = vector.load %arg4[%c0_4, %c0_5] : memref<16x1xf32, #tpu.memory_space<vmem>>, vector<16x1xf32>
    %5 = vector.broadcast %4 : vector<16x1xf32> to vector<16x128xf32>
    %6 = arith.addf %3, %5 : vector<16x128xf32>
    %cst_6 = arith.constant 0.000000e+00 : f32
    %7 = vector.broadcast %cst_6 : f32 to vector<16x128xf32>
    %8 = arith.cmpf oge, %6, %7 : vector<16x128xf32>
    %cst_7 = arith.constant 0.00999999977 : f32
    %9 = vector.broadcast %cst_7 : f32 to vector<16x128xf32>
    %10 = arith.mulf %9, %6 : vector<16x128xf32>
    %11 = arith.select %8, %6, %10 : vector<16x128xi1>, vector<16x128xf32>
    %c0_8 = arith.constant 0 : index
    %c0_9 = arith.constant 0 : index
    %c0_10 = arith.constant 0 : index
    %12 = vector.load %arg5[%c0_8, %c0_9, %c0_10] : memref<1x16x128xf32, #tpu.memory_space<vmem>>, vector<1x16x128xf32>
    %13 = vector.shape_cast %12 : vector<1x16x128xf32> to vector<16x128xf32>
    %14 = vector.shape_cast %11 : vector<16x128xf32> to vector<1x16x128xf32>
    tpu.vector_store %arg5[%c0_8, %c0_9, %c0_10], %14 {strides = array<i32>} : memref<1x16x128xf32, #tpu.memory_space<vmem>>, vector<1x16x128xf32>,
    return
  }
  func.func @transform_0(%arg0: i32, %arg1: i32) -> (i32, i32, i32) {
    %c0_i32 = arith.constant 0 : i32
    %c0_i32_0 = arith.constant 0 : i32
    return %arg0, %c0_i32, %arg1 : i32, i32, i32
  }
  func.func @transform_1(%arg0: i32, %arg1: i32) -> (i32, i32) {
    %c0_i32 = arith.constant 0 : i32
    %c0_i32_0 = arith.constant 0 : i32
    %c0_i32_1 = arith.constant 0 : i32
    return %c0_i32, %c0_i32_0 : i32, i32
  }
  func.func @transform_2(%arg0: i32, %arg1: i32) -> (i32, i32) {
    %c0_i32 = arith.constant 0 : i32
    %c0_i32_0 = arith.constant 0 : i32
    %c0_i32_1 = arith.constant 0 : i32
    return %c0_i32, %c0_i32_0 : i32, i32
  }
  func.func @transform_3(%arg0: i32, %arg1: i32) -> (i32, i32, i32) {
    %c0_i32 = arith.constant 0 : i32
    %c0_i32_0 = arith.constant 0 : i32
    return %arg0, %c0_i32, %arg1 : i32, i32, i32
  }
}

module attributes {stable_mosaic.version = 11 : i64} {
  func.func @_dual_pool_kernel(%arg0: i32, %arg1: i32, %arg2: memref<1x9x16x128xf32, #tpu.memory_space<vmem>>, %arg3: memref<9x1x128xf32, #tpu.memory_space<vmem>>, %arg4: memref<1x16x128xf32, #tpu.memory_space<vmem>>) attributes {dimension_semantics = [#tpu.dimension_semantics<parallel>, #tpu.dimension_semantics<parallel>], iteration_bounds = array<i64: 2, 1>, scalar_prefetch = 0 : i64, scratch_operands = 0 : i64, tpu.core_type = #tpu.core_type<tc>, window_params = [{transform_indices = @transform_0, window_bounds = array<i64: 1, 9, 16, 128>}, {transform_indices = @transform_1, window_bounds = array<i64: 9, 1, 128>}, {transform_indices = @transform_2, window_bounds = array<i64: 1, 16, 128>}]} {
    %c0 = arith.constant 0 : index
    %c0_0 = arith.constant 0 : index
    %c0_1 = arith.constant 0 : index
    %c0_2 = arith.constant 0 : index
    %0 = vector.load %arg2[%c0, %c0_0, %c0_1, %c0_2] : memref<1x9x16x128xf32, #tpu.memory_space<vmem>>, vector<1x1x16x128xf32>
    %1 = vector.shape_cast %0 : vector<1x1x16x128xf32> to vector<16x128xf32>
    %c0_3 = arith.constant 0 : index
    %c0_4 = arith.constant 0 : index
    %c0_5 = arith.constant 0 : index
    %2 = vector.load %arg3[%c0_3, %c0_4, %c0_5] : memref<9x1x128xf32, #tpu.memory_space<vmem>>, vector<1x1x128xf32>
    %3 = vector.shape_cast %2 : vector<1x1x128xf32> to vector<1x128xf32>
    %cst = arith.constant 5.000000e-01 : f32
    %4 = vector.broadcast %cst : f32 to vector<1x128xf32>
    %5 = arith.cmpf ogt, %3, %4 : vector<1x128xf32>
    %cst_6 = arith.constant -3.40282347E+38 : f32
    %6 = vector.shape_cast %5 : vector<1x128xi1> to vector<1x128xi1>
    %7 = vector.broadcast %6 : vector<1x128xi1> to vector<16x128xi1>
    %8 = vector.broadcast %cst_6 : f32 to vector<16x128xf32>
    %9 = arith.select %7, %1, %8 : vector<16x128xi1>, vector<16x128xf32>
    %c0_7 = arith.constant 0 : index
    %c1 = arith.constant 1 : index
    %c0_8 = arith.constant 0 : index
    %c0_9 = arith.constant 0 : index
    %10 = vector.load %arg2[%c0_7, %c1, %c0_8, %c0_9] : memref<1x9x16x128xf32, #tpu.memory_space<vmem>>, vector<1x1x16x128xf32>
    %11 = vector.shape_cast %10 : vector<1x1x16x128xf32> to vector<16x128xf32>
    %c1_10 = arith.constant 1 : index
    %c0_11 = arith.constant 0 : index
    %c0_12 = arith.constant 0 : index
    %12 = vector.load %arg3[%c1_10, %c0_11, %c0_12] : memref<9x1x128xf32, #tpu.memory_space<vmem>>, vector<1x1x128xf32>
    %13 = vector.shape_cast %12 : vector<1x1x128xf32> to vector<1x128xf32>
    %cst_13 = arith.constant 5.000000e-01 : f32
    %14 = vector.broadcast %cst_13 : f32 to vector<1x128xf32>
    %15 = arith.cmpf ogt, %13, %14 : vector<1x128xf32>
    %cst_14 = arith.constant -3.40282347E+38 : f32
    %16 = vector.shape_cast %15 : vector<1x128xi1> to vector<1x128xi1>
    %17 = vector.broadcast %16 : vector<1x128xi1> to vector<16x128xi1>
    %18 = vector.broadcast %cst_14 : f32 to vector<16x128xf32>
    %19 = arith.select %17, %11, %18 : vector<16x128xi1>, vector<16x128xf32>
    %20 = arith.maximumf %9, %19 : vector<16x128xf32>
    %21 = arith.addf %1, %11 : vector<16x128xf32>
    %c0_15 = arith.constant 0 : index
    %c2 = arith.constant 2 : index
    %c0_16 = arith.constant 0 : index
    %c0_17 = arith.constant 0 : index
    %22 = vector.load %arg2[%c0_15, %c2, %c0_16, %c0_17] : memref<1x9x16x128xf32, #tpu.memory_space<vmem>>, vector<1x1x16x128xf32>
    %23 = vector.shape_cast %22 : vector<1x1x16x128xf32> to vector<16x128xf32>
    %c2_18 = arith.constant 2 : index
    %c0_19 = arith.constant 0 : index
    %c0_20 = arith.constant 0 : index
    %24 = vector.load %arg3[%c2_18, %c0_19, %c0_20] : memref<9x1x128xf32, #tpu.memory_space<vmem>>, vector<1x1x128xf32>
    %25 = vector.shape_cast %24 : vector<1x1x128xf32> to vector<1x128xf32>
    %cst_21 = arith.constant 5.000000e-01 : f32
    %26 = vector.broadcast %cst_21 : f32 to vector<1x128xf32>
    %27 = arith.cmpf ogt, %25, %26 : vector<1x128xf32>
    %cst_22 = arith.constant -3.40282347E+38 : f32
    %28 = vector.shape_cast %27 : vector<1x128xi1> to vector<1x128xi1>
    %29 = vector.broadcast %28 : vector<1x128xi1> to vector<16x128xi1>
    %30 = vector.broadcast %cst_22 : f32 to vector<16x128xf32>
    %31 = arith.select %29, %23, %30 : vector<16x128xi1>, vector<16x128xf32>
    %32 = arith.maximumf %20, %31 : vector<16x128xf32>
    %33 = arith.addf %21, %23 : vector<16x128xf32>
    %c0_23 = arith.constant 0 : index
    %c3 = arith.constant 3 : index
    %c0_24 = arith.constant 0 : index
    %c0_25 = arith.constant 0 : index
    %34 = vector.load %arg2[%c0_23, %c3, %c0_24, %c0_25] : memref<1x9x16x128xf32, #tpu.memory_space<vmem>>, vector<1x1x16x128xf32>
    %35 = vector.shape_cast %34 : vector<1x1x16x128xf32> to vector<16x128xf32>
    %c3_26 = arith.constant 3 : index
    %c0_27 = arith.constant 0 : index
    %c0_28 = arith.constant 0 : index
    %36 = vector.load %arg3[%c3_26, %c0_27, %c0_28] : memref<9x1x128xf32, #tpu.memory_space<vmem>>, vector<1x1x128xf32>
    %37 = vector.shape_cast %36 : vector<1x1x128xf32> to vector<1x128xf32>
    %cst_29 = arith.constant 5.000000e-01 : f32
    %38 = vector.broadcast %cst_29 : f32 to vector<1x128xf32>
    %39 = arith.cmpf ogt, %37, %38 : vector<1x128xf32>
    %cst_30 = arith.constant -3.40282347E+38 : f32
    %40 = vector.shape_cast %39 : vector<1x128xi1> to vector<1x128xi1>
    %41 = vector.broadcast %40 : vector<1x128xi1> to vector<16x128xi1>
    %42 = vector.broadcast %cst_30 : f32 to vector<16x128xf32>
    %43 = arith.select %41, %35, %42 : vector<16x128xi1>, vector<16x128xf32>
    %44 = arith.maximumf %32, %43 : vector<16x128xf32>
    %45 = arith.addf %33, %35 : vector<16x128xf32>
    %c0_31 = arith.constant 0 : index
    %c4 = arith.constant 4 : index
    %c0_32 = arith.constant 0 : index
    %c0_33 = arith.constant 0 : index
    %46 = vector.load %arg2[%c0_31, %c4, %c0_32, %c0_33] : memref<1x9x16x128xf32, #tpu.memory_space<vmem>>, vector<1x1x16x128xf32>
    %47 = vector.shape_cast %46 : vector<1x1x16x128xf32> to vector<16x128xf32>
    %c4_34 = arith.constant 4 : index
    %c0_35 = arith.constant 0 : index
    %c0_36 = arith.constant 0 : index
    %48 = vector.load %arg3[%c4_34, %c0_35, %c0_36] : memref<9x1x128xf32, #tpu.memory_space<vmem>>, vector<1x1x128xf32>
    %49 = vector.shape_cast %48 : vector<1x1x128xf32> to vector<1x128xf32>
    %cst_37 = arith.constant 5.000000e-01 : f32
    %50 = vector.broadcast %cst_37 : f32 to vector<1x128xf32>
    %51 = arith.cmpf ogt, %49, %50 : vector<1x128xf32>
    %cst_38 = arith.constant -3.40282347E+38 : f32
    %52 = vector.shape_cast %51 : vector<1x128xi1> to vector<1x128xi1>
    %53 = vector.broadcast %52 : vector<1x128xi1> to vector<16x128xi1>
    %54 = vector.broadcast %cst_38 : f32 to vector<16x128xf32>
    %55 = arith.select %53, %47, %54 : vector<16x128xi1>, vector<16x128xf32>
    %56 = arith.maximumf %44, %55 : vector<16x128xf32>
    %57 = arith.addf %45, %47 : vector<16x128xf32>
    %c0_39 = arith.constant 0 : index
    %c5 = arith.constant 5 : index
    %c0_40 = arith.constant 0 : index
    %c0_41 = arith.constant 0 : index
    %58 = vector.load %arg2[%c0_39, %c5, %c0_40, %c0_41] : memref<1x9x16x128xf32, #tpu.memory_space<vmem>>, vector<1x1x16x128xf32>
    %59 = vector.shape_cast %58 : vector<1x1x16x128xf32> to vector<16x128xf32>
    %c5_42 = arith.constant 5 : index
    %c0_43 = arith.constant 0 : index
    %c0_44 = arith.constant 0 : index
    %60 = vector.load %arg3[%c5_42, %c0_43, %c0_44] : memref<9x1x128xf32, #tpu.memory_space<vmem>>, vector<1x1x128xf32>
    %61 = vector.shape_cast %60 : vector<1x1x128xf32> to vector<1x128xf32>
    %cst_45 = arith.constant 5.000000e-01 : f32
    %62 = vector.broadcast %cst_45 : f32 to vector<1x128xf32>
    %63 = arith.cmpf ogt, %61, %62 : vector<1x128xf32>
    %cst_46 = arith.constant -3.40282347E+38 : f32
    %64 = vector.shape_cast %63 : vector<1x128xi1> to vector<1x128xi1>
    %65 = vector.broadcast %64 : vector<1x128xi1> to vector<16x128xi1>
    %66 = vector.broadcast %cst_46 : f32 to vector<16x128xf32>
    %67 = arith.select %65, %59, %66 : vector<16x128xi1>, vector<16x128xf32>
    %68 = arith.maximumf %56, %67 : vector<16x128xf32>
    %69 = arith.addf %57, %59 : vector<16x128xf32>
    %c0_47 = arith.constant 0 : index
    %c6 = arith.constant 6 : index
    %c0_48 = arith.constant 0 : index
    %c0_49 = arith.constant 0 : index
    %70 = vector.load %arg2[%c0_47, %c6, %c0_48, %c0_49] : memref<1x9x16x128xf32, #tpu.memory_space<vmem>>, vector<1x1x16x128xf32>
    %71 = vector.shape_cast %70 : vector<1x1x16x128xf32> to vector<16x128xf32>
    %c6_50 = arith.constant 6 : index
    %c0_51 = arith.constant 0 : index
    %c0_52 = arith.constant 0 : index
    %72 = vector.load %arg3[%c6_50, %c0_51, %c0_52] : memref<9x1x128xf32, #tpu.memory_space<vmem>>, vector<1x1x128xf32>
    %73 = vector.shape_cast %72 : vector<1x1x128xf32> to vector<1x128xf32>
    %cst_53 = arith.constant 5.000000e-01 : f32
    %74 = vector.broadcast %cst_53 : f32 to vector<1x128xf32>
    %75 = arith.cmpf ogt, %73, %74 : vector<1x128xf32>
    %cst_54 = arith.constant -3.40282347E+38 : f32
    %76 = vector.shape_cast %75 : vector<1x128xi1> to vector<1x128xi1>
    %77 = vector.broadcast %76 : vector<1x128xi1> to vector<16x128xi1>
    %78 = vector.broadcast %cst_54 : f32 to vector<16x128xf32>
    %79 = arith.select %77, %71, %78 : vector<16x128xi1>, vector<16x128xf32>
    %80 = arith.maximumf %68, %79 : vector<16x128xf32>
    %81 = arith.addf %69, %71 : vector<16x128xf32>
    %c0_55 = arith.constant 0 : index
    %c7 = arith.constant 7 : index
    %c0_56 = arith.constant 0 : index
    %c0_57 = arith.constant 0 : index
    %82 = vector.load %arg2[%c0_55, %c7, %c0_56, %c0_57] : memref<1x9x16x128xf32, #tpu.memory_space<vmem>>, vector<1x1x16x128xf32>
    %83 = vector.shape_cast %82 : vector<1x1x16x128xf32> to vector<16x128xf32>
    %c7_58 = arith.constant 7 : index
    %c0_59 = arith.constant 0 : index
    %c0_60 = arith.constant 0 : index
    %84 = vector.load %arg3[%c7_58, %c0_59, %c0_60] : memref<9x1x128xf32, #tpu.memory_space<vmem>>, vector<1x1x128xf32>
    %85 = vector.shape_cast %84 : vector<1x1x128xf32> to vector<1x128xf32>
    %cst_61 = arith.constant 5.000000e-01 : f32
    %86 = vector.broadcast %cst_61 : f32 to vector<1x128xf32>
    %87 = arith.cmpf ogt, %85, %86 : vector<1x128xf32>
    %cst_62 = arith.constant -3.40282347E+38 : f32
    %88 = vector.shape_cast %87 : vector<1x128xi1> to vector<1x128xi1>
    %89 = vector.broadcast %88 : vector<1x128xi1> to vector<16x128xi1>
    %90 = vector.broadcast %cst_62 : f32 to vector<16x128xf32>
    %91 = arith.select %89, %83, %90 : vector<16x128xi1>, vector<16x128xf32>
    %92 = arith.maximumf %80, %91 : vector<16x128xf32>
    %93 = arith.addf %81, %83 : vector<16x128xf32>
    %c0_63 = arith.constant 0 : index
    %c8 = arith.constant 8 : index
    %c0_64 = arith.constant 0 : index
    %c0_65 = arith.constant 0 : index
    %94 = vector.load %arg2[%c0_63, %c8, %c0_64, %c0_65] : memref<1x9x16x128xf32, #tpu.memory_space<vmem>>, vector<1x1x16x128xf32>
    %95 = vector.shape_cast %94 : vector<1x1x16x128xf32> to vector<16x128xf32>
    %c8_66 = arith.constant 8 : index
    %c0_67 = arith.constant 0 : index
    %c0_68 = arith.constant 0 : index
    %96 = vector.load %arg3[%c8_66, %c0_67, %c0_68] : memref<9x1x128xf32, #tpu.memory_space<vmem>>, vector<1x1x128xf32>
    %97 = vector.shape_cast %96 : vector<1x1x128xf32> to vector<1x128xf32>
    %cst_69 = arith.constant 5.000000e-01 : f32
    %98 = vector.broadcast %cst_69 : f32 to vector<1x128xf32>
    %99 = arith.cmpf ogt, %97, %98 : vector<1x128xf32>
    %cst_70 = arith.constant -3.40282347E+38 : f32
    %100 = vector.shape_cast %99 : vector<1x128xi1> to vector<1x128xi1>
    %101 = vector.broadcast %100 : vector<1x128xi1> to vector<16x128xi1>
    %102 = vector.broadcast %cst_70 : f32 to vector<16x128xf32>
    %103 = arith.select %101, %95, %102 : vector<16x128xi1>, vector<16x128xf32>
    %104 = arith.maximumf %92, %103 : vector<16x128xf32>
    %105 = arith.addf %93, %95 : vector<16x128xf32>
    %cst_71 = arith.constant 0.111111112 : f32
    %106 = vector.broadcast %cst_71 : f32 to vector<16x128xf32>
    %107 = arith.mulf %105, %106 : vector<16x128xf32>
    %108 = arith.addf %104, %107 : vector<16x128xf32>
    %c0_72 = arith.constant 0 : index
    %c0_73 = arith.constant 0 : index
    %c0_74 = arith.constant 0 : index
    %109 = vector.load %arg4[%c0_72, %c0_73, %c0_74] : memref<1x16x128xf32, #tpu.memory_space<vmem>>, vector<1x16x128xf32>
    %110 = vector.shape_cast %109 : vector<1x16x128xf32> to vector<16x128xf32>
    %111 = vector.shape_cast %108 : vector<16x128xf32> to vector<1x16x128xf32>
    tpu.vector_store %arg4[%c0_72, %c0_73, %c0_74], %111 {strides = array<i32>} : memref<1x16x128xf32, #tpu.memory_space<vmem>>, vector<1x16x128xf32>,
    return
  }
  func.func @transform_0(%arg0: i32, %arg1: i32) -> (i32, i32, i32, i32) {
    %c0_i32 = arith.constant 0 : i32
    %c0_i32_0 = arith.constant 0 : i32
    %c0_i32_1 = arith.constant 0 : i32
    return %arg0, %c0_i32, %c0_i32_0, %arg1 : i32, i32, i32, i32
  }
  func.func @transform_1(%arg0: i32, %arg1: i32) -> (i32, i32, i32) {
    %c0_i32 = arith.constant 0 : i32
    %c0_i32_0 = arith.constant 0 : i32
    %c0_i32_1 = arith.constant 0 : i32
    return %c0_i32, %c0_i32_0, %arg1 : i32, i32, i32
  }
  func.func @transform_2(%arg0: i32, %arg1: i32) -> (i32, i32, i32) {
    %c0_i32 = arith.constant 0 : i32
    %c0_i32_0 = arith.constant 0 : i32
    return %arg0, %c0_i32, %arg1 : i32, i32, i32
  }
}

module attributes {stable_mosaic.version = 11 : i64} {
  func.func @_conv_bn_lrelu_kernel(%arg0: i32, %arg1: i32, %arg2: memref<1x144x128xbf16, #tpu.memory_space<vmem>>, %arg3: memref<32x144xbf16, #tpu.memory_space<vmem>>, %arg4: memref<32x1xf32, #tpu.memory_space<vmem>>, %arg5: memref<1x32x128xf32, #tpu.memory_space<vmem>>) attributes {dimension_semantics = [#tpu.dimension_semantics<parallel>, #tpu.dimension_semantics<parallel>], iteration_bounds = array<i64: 2, 1>, scalar_prefetch = 0 : i64, scratch_operands = 0 : i64, tpu.core_type = #tpu.core_type<tc>, window_params = [{transform_indices = @transform_0, window_bounds = array<i64: 1, 144, 128>}, {pipeline_mode = #tpu.pipeline_mode<synchronous>, transform_indices = @transform_1, window_bounds = array<i64: 32, 144>}, {pipeline_mode = #tpu.pipeline_mode<synchronous>, transform_indices = @transform_2, window_bounds = array<i64: 32, 1>}, {transform_indices = @transform_3, window_bounds = array<i64: 1, 32, 128>}]} {
    %c0 = arith.constant 0 : index
    %c0_0 = arith.constant 0 : index
    %0 = vector.load %arg3[%c0, %c0_0] : memref<32x144xbf16, #tpu.memory_space<vmem>>, vector<32x144xbf16>
    %c0_1 = arith.constant 0 : index
    %c0_2 = arith.constant 0 : index
    %c0_3 = arith.constant 0 : index
    %1 = vector.load %arg2[%c0_1, %c0_2, %c0_3] : memref<1x144x128xbf16, #tpu.memory_space<vmem>>, vector<1x144x128xbf16>
    %2 = vector.shape_cast %1 : vector<1x144x128xbf16> to vector<144x128xbf16>
    %cst = arith.constant dense<0.000000e+00> : vector<32x128xf32>
    %3 = tpu.matmul %0, %2, %cst {dimension_numbers = #tpu.dot_dimension_numbers<[1], [0], [0], [1], [0, 0, 1, 1], [], []>} : vector<32x144xbf16>, vector<144x128xbf16>, vector<32x128xf32> -> vector<32x128xf32>
    %c0_4 = arith.constant 0 : index
    %c0_5 = arith.constant 0 : index
    %4 = vector.load %arg4[%c0_4, %c0_5] : memref<32x1xf32, #tpu.memory_space<vmem>>, vector<32x1xf32>
    %5 = vector.broadcast %4 : vector<32x1xf32> to vector<32x128xf32>
    %6 = arith.addf %3, %5 : vector<32x128xf32>
    %cst_6 = arith.constant 0.000000e+00 : f32
    %7 = vector.broadcast %cst_6 : f32 to vector<32x128xf32>
    %8 = arith.cmpf oge, %6, %7 : vector<32x128xf32>
    %cst_7 = arith.constant 0.00999999977 : f32
    %9 = vector.broadcast %cst_7 : f32 to vector<32x128xf32>
    %10 = arith.mulf %9, %6 : vector<32x128xf32>
    %11 = arith.select %8, %6, %10 : vector<32x128xi1>, vector<32x128xf32>
    %c0_8 = arith.constant 0 : index
    %c0_9 = arith.constant 0 : index
    %c0_10 = arith.constant 0 : index
    %12 = vector.load %arg5[%c0_8, %c0_9, %c0_10] : memref<1x32x128xf32, #tpu.memory_space<vmem>>, vector<1x32x128xf32>
    %13 = vector.shape_cast %12 : vector<1x32x128xf32> to vector<32x128xf32>
    %14 = vector.shape_cast %11 : vector<32x128xf32> to vector<1x32x128xf32>
    tpu.vector_store %arg5[%c0_8, %c0_9, %c0_10], %14 {strides = array<i32>} : memref<1x32x128xf32, #tpu.memory_space<vmem>>, vector<1x32x128xf32>,
    return
  }
  func.func @transform_0(%arg0: i32, %arg1: i32) -> (i32, i32, i32) {
    %c0_i32 = arith.constant 0 : i32
    %c0_i32_0 = arith.constant 0 : i32
    return %arg0, %c0_i32, %arg1 : i32, i32, i32
  }
  func.func @transform_1(%arg0: i32, %arg1: i32) -> (i32, i32) {
    %c0_i32 = arith.constant 0 : i32
    %c0_i32_0 = arith.constant 0 : i32
    %c0_i32_1 = arith.constant 0 : i32
    return %c0_i32, %c0_i32_0 : i32, i32
  }
  func.func @transform_2(%arg0: i32, %arg1: i32) -> (i32, i32) {
    %c0_i32 = arith.constant 0 : i32
    %c0_i32_0 = arith.constant 0 : i32
    %c0_i32_1 = arith.constant 0 : i32
    return %c0_i32, %c0_i32_0 : i32, i32
  }
  func.func @transform_3(%arg0: i32, %arg1: i32) -> (i32, i32, i32) {
    %c0_i32 = arith.constant 0 : i32
    %c0_i32_0 = arith.constant 0 : i32
    return %arg0, %c0_i32, %arg1 : i32, i32, i32
  }
}

module attributes {stable_mosaic.version = 11 : i64} {
  func.func @_dual_pool_kernel(%arg0: i32, %arg1: i32, %arg2: memref<1x9x32x128xf32, #tpu.memory_space<vmem>>, %arg3: memref<9x1x128xf32, #tpu.memory_space<vmem>>, %arg4: memref<1x32x128xf32, #tpu.memory_space<vmem>>) attributes {dimension_semantics = [#tpu.dimension_semantics<parallel>, #tpu.dimension_semantics<parallel>], iteration_bounds = array<i64: 2, 1>, scalar_prefetch = 0 : i64, scratch_operands = 0 : i64, tpu.core_type = #tpu.core_type<tc>, window_params = [{transform_indices = @transform_0, window_bounds = array<i64: 1, 9, 32, 128>}, {transform_indices = @transform_1, window_bounds = array<i64: 9, 1, 128>}, {transform_indices = @transform_2, window_bounds = array<i64: 1, 32, 128>}]} {
    %c0 = arith.constant 0 : index
    %c0_0 = arith.constant 0 : index
    %c0_1 = arith.constant 0 : index
    %c0_2 = arith.constant 0 : index
    %0 = vector.load %arg2[%c0, %c0_0, %c0_1, %c0_2] : memref<1x9x32x128xf32, #tpu.memory_space<vmem>>, vector<1x1x32x128xf32>
    %1 = vector.shape_cast %0 : vector<1x1x32x128xf32> to vector<32x128xf32>
    %c0_3 = arith.constant 0 : index
    %c0_4 = arith.constant 0 : index
    %c0_5 = arith.constant 0 : index
    %2 = vector.load %arg3[%c0_3, %c0_4, %c0_5] : memref<9x1x128xf32, #tpu.memory_space<vmem>>, vector<1x1x128xf32>
    %3 = vector.shape_cast %2 : vector<1x1x128xf32> to vector<1x128xf32>
    %cst = arith.constant 5.000000e-01 : f32
    %4 = vector.broadcast %cst : f32 to vector<1x128xf32>
    %5 = arith.cmpf ogt, %3, %4 : vector<1x128xf32>
    %cst_6 = arith.constant -3.40282347E+38 : f32
    %6 = vector.shape_cast %5 : vector<1x128xi1> to vector<1x128xi1>
    %7 = vector.broadcast %6 : vector<1x128xi1> to vector<32x128xi1>
    %8 = vector.broadcast %cst_6 : f32 to vector<32x128xf32>
    %9 = arith.select %7, %1, %8 : vector<32x128xi1>, vector<32x128xf32>
    %c0_7 = arith.constant 0 : index
    %c1 = arith.constant 1 : index
    %c0_8 = arith.constant 0 : index
    %c0_9 = arith.constant 0 : index
    %10 = vector.load %arg2[%c0_7, %c1, %c0_8, %c0_9] : memref<1x9x32x128xf32, #tpu.memory_space<vmem>>, vector<1x1x32x128xf32>
    %11 = vector.shape_cast %10 : vector<1x1x32x128xf32> to vector<32x128xf32>
    %c1_10 = arith.constant 1 : index
    %c0_11 = arith.constant 0 : index
    %c0_12 = arith.constant 0 : index
    %12 = vector.load %arg3[%c1_10, %c0_11, %c0_12] : memref<9x1x128xf32, #tpu.memory_space<vmem>>, vector<1x1x128xf32>
    %13 = vector.shape_cast %12 : vector<1x1x128xf32> to vector<1x128xf32>
    %cst_13 = arith.constant 5.000000e-01 : f32
    %14 = vector.broadcast %cst_13 : f32 to vector<1x128xf32>
    %15 = arith.cmpf ogt, %13, %14 : vector<1x128xf32>
    %cst_14 = arith.constant -3.40282347E+38 : f32
    %16 = vector.shape_cast %15 : vector<1x128xi1> to vector<1x128xi1>
    %17 = vector.broadcast %16 : vector<1x128xi1> to vector<32x128xi1>
    %18 = vector.broadcast %cst_14 : f32 to vector<32x128xf32>
    %19 = arith.select %17, %11, %18 : vector<32x128xi1>, vector<32x128xf32>
    %20 = arith.maximumf %9, %19 : vector<32x128xf32>
    %21 = arith.addf %1, %11 : vector<32x128xf32>
    %c0_15 = arith.constant 0 : index
    %c2 = arith.constant 2 : index
    %c0_16 = arith.constant 0 : index
    %c0_17 = arith.constant 0 : index
    %22 = vector.load %arg2[%c0_15, %c2, %c0_16, %c0_17] : memref<1x9x32x128xf32, #tpu.memory_space<vmem>>, vector<1x1x32x128xf32>
    %23 = vector.shape_cast %22 : vector<1x1x32x128xf32> to vector<32x128xf32>
    %c2_18 = arith.constant 2 : index
    %c0_19 = arith.constant 0 : index
    %c0_20 = arith.constant 0 : index
    %24 = vector.load %arg3[%c2_18, %c0_19, %c0_20] : memref<9x1x128xf32, #tpu.memory_space<vmem>>, vector<1x1x128xf32>
    %25 = vector.shape_cast %24 : vector<1x1x128xf32> to vector<1x128xf32>
    %cst_21 = arith.constant 5.000000e-01 : f32
    %26 = vector.broadcast %cst_21 : f32 to vector<1x128xf32>
    %27 = arith.cmpf ogt, %25, %26 : vector<1x128xf32>
    %cst_22 = arith.constant -3.40282347E+38 : f32
    %28 = vector.shape_cast %27 : vector<1x128xi1> to vector<1x128xi1>
    %29 = vector.broadcast %28 : vector<1x128xi1> to vector<32x128xi1>
    %30 = vector.broadcast %cst_22 : f32 to vector<32x128xf32>
    %31 = arith.select %29, %23, %30 : vector<32x128xi1>, vector<32x128xf32>
    %32 = arith.maximumf %20, %31 : vector<32x128xf32>
    %33 = arith.addf %21, %23 : vector<32x128xf32>
    %c0_23 = arith.constant 0 : index
    %c3 = arith.constant 3 : index
    %c0_24 = arith.constant 0 : index
    %c0_25 = arith.constant 0 : index
    %34 = vector.load %arg2[%c0_23, %c3, %c0_24, %c0_25] : memref<1x9x32x128xf32, #tpu.memory_space<vmem>>, vector<1x1x32x128xf32>
    %35 = vector.shape_cast %34 : vector<1x1x32x128xf32> to vector<32x128xf32>
    %c3_26 = arith.constant 3 : index
    %c0_27 = arith.constant 0 : index
    %c0_28 = arith.constant 0 : index
    %36 = vector.load %arg3[%c3_26, %c0_27, %c0_28] : memref<9x1x128xf32, #tpu.memory_space<vmem>>, vector<1x1x128xf32>
    %37 = vector.shape_cast %36 : vector<1x1x128xf32> to vector<1x128xf32>
    %cst_29 = arith.constant 5.000000e-01 : f32
    %38 = vector.broadcast %cst_29 : f32 to vector<1x128xf32>
    %39 = arith.cmpf ogt, %37, %38 : vector<1x128xf32>
    %cst_30 = arith.constant -3.40282347E+38 : f32
    %40 = vector.shape_cast %39 : vector<1x128xi1> to vector<1x128xi1>
    %41 = vector.broadcast %40 : vector<1x128xi1> to vector<32x128xi1>
    %42 = vector.broadcast %cst_30 : f32 to vector<32x128xf32>
    %43 = arith.select %41, %35, %42 : vector<32x128xi1>, vector<32x128xf32>
    %44 = arith.maximumf %32, %43 : vector<32x128xf32>
    %45 = arith.addf %33, %35 : vector<32x128xf32>
    %c0_31 = arith.constant 0 : index
    %c4 = arith.constant 4 : index
    %c0_32 = arith.constant 0 : index
    %c0_33 = arith.constant 0 : index
    %46 = vector.load %arg2[%c0_31, %c4, %c0_32, %c0_33] : memref<1x9x32x128xf32, #tpu.memory_space<vmem>>, vector<1x1x32x128xf32>
    %47 = vector.shape_cast %46 : vector<1x1x32x128xf32> to vector<32x128xf32>
    %c4_34 = arith.constant 4 : index
    %c0_35 = arith.constant 0 : index
    %c0_36 = arith.constant 0 : index
    %48 = vector.load %arg3[%c4_34, %c0_35, %c0_36] : memref<9x1x128xf32, #tpu.memory_space<vmem>>, vector<1x1x128xf32>
    %49 = vector.shape_cast %48 : vector<1x1x128xf32> to vector<1x128xf32>
    %cst_37 = arith.constant 5.000000e-01 : f32
    %50 = vector.broadcast %cst_37 : f32 to vector<1x128xf32>
    %51 = arith.cmpf ogt, %49, %50 : vector<1x128xf32>
    %cst_38 = arith.constant -3.40282347E+38 : f32
    %52 = vector.shape_cast %51 : vector<1x128xi1> to vector<1x128xi1>
    %53 = vector.broadcast %52 : vector<1x128xi1> to vector<32x128xi1>
    %54 = vector.broadcast %cst_38 : f32 to vector<32x128xf32>
    %55 = arith.select %53, %47, %54 : vector<32x128xi1>, vector<32x128xf32>
    %56 = arith.maximumf %44, %55 : vector<32x128xf32>
    %57 = arith.addf %45, %47 : vector<32x128xf32>
    %c0_39 = arith.constant 0 : index
    %c5 = arith.constant 5 : index
    %c0_40 = arith.constant 0 : index
    %c0_41 = arith.constant 0 : index
    %58 = vector.load %arg2[%c0_39, %c5, %c0_40, %c0_41] : memref<1x9x32x128xf32, #tpu.memory_space<vmem>>, vector<1x1x32x128xf32>
    %59 = vector.shape_cast %58 : vector<1x1x32x128xf32> to vector<32x128xf32>
    %c5_42 = arith.constant 5 : index
    %c0_43 = arith.constant 0 : index
    %c0_44 = arith.constant 0 : index
    %60 = vector.load %arg3[%c5_42, %c0_43, %c0_44] : memref<9x1x128xf32, #tpu.memory_space<vmem>>, vector<1x1x128xf32>
    %61 = vector.shape_cast %60 : vector<1x1x128xf32> to vector<1x128xf32>
    %cst_45 = arith.constant 5.000000e-01 : f32
    %62 = vector.broadcast %cst_45 : f32 to vector<1x128xf32>
    %63 = arith.cmpf ogt, %61, %62 : vector<1x128xf32>
    %cst_46 = arith.constant -3.40282347E+38 : f32
    %64 = vector.shape_cast %63 : vector<1x128xi1> to vector<1x128xi1>
    %65 = vector.broadcast %64 : vector<1x128xi1> to vector<32x128xi1>
    %66 = vector.broadcast %cst_46 : f32 to vector<32x128xf32>
    %67 = arith.select %65, %59, %66 : vector<32x128xi1>, vector<32x128xf32>
    %68 = arith.maximumf %56, %67 : vector<32x128xf32>
    %69 = arith.addf %57, %59 : vector<32x128xf32>
    %c0_47 = arith.constant 0 : index
    %c6 = arith.constant 6 : index
    %c0_48 = arith.constant 0 : index
    %c0_49 = arith.constant 0 : index
    %70 = vector.load %arg2[%c0_47, %c6, %c0_48, %c0_49] : memref<1x9x32x128xf32, #tpu.memory_space<vmem>>, vector<1x1x32x128xf32>
    %71 = vector.shape_cast %70 : vector<1x1x32x128xf32> to vector<32x128xf32>
    %c6_50 = arith.constant 6 : index
    %c0_51 = arith.constant 0 : index
    %c0_52 = arith.constant 0 : index
    %72 = vector.load %arg3[%c6_50, %c0_51, %c0_52] : memref<9x1x128xf32, #tpu.memory_space<vmem>>, vector<1x1x128xf32>
    %73 = vector.shape_cast %72 : vector<1x1x128xf32> to vector<1x128xf32>
    %cst_53 = arith.constant 5.000000e-01 : f32
    %74 = vector.broadcast %cst_53 : f32 to vector<1x128xf32>
    %75 = arith.cmpf ogt, %73, %74 : vector<1x128xf32>
    %cst_54 = arith.constant -3.40282347E+38 : f32
    %76 = vector.shape_cast %75 : vector<1x128xi1> to vector<1x128xi1>
    %77 = vector.broadcast %76 : vector<1x128xi1> to vector<32x128xi1>
    %78 = vector.broadcast %cst_54 : f32 to vector<32x128xf32>
    %79 = arith.select %77, %71, %78 : vector<32x128xi1>, vector<32x128xf32>
    %80 = arith.maximumf %68, %79 : vector<32x128xf32>
    %81 = arith.addf %69, %71 : vector<32x128xf32>
    %c0_55 = arith.constant 0 : index
    %c7 = arith.constant 7 : index
    %c0_56 = arith.constant 0 : index
    %c0_57 = arith.constant 0 : index
    %82 = vector.load %arg2[%c0_55, %c7, %c0_56, %c0_57] : memref<1x9x32x128xf32, #tpu.memory_space<vmem>>, vector<1x1x32x128xf32>
    %83 = vector.shape_cast %82 : vector<1x1x32x128xf32> to vector<32x128xf32>
    %c7_58 = arith.constant 7 : index
    %c0_59 = arith.constant 0 : index
    %c0_60 = arith.constant 0 : index
    %84 = vector.load %arg3[%c7_58, %c0_59, %c0_60] : memref<9x1x128xf32, #tpu.memory_space<vmem>>, vector<1x1x128xf32>
    %85 = vector.shape_cast %84 : vector<1x1x128xf32> to vector<1x128xf32>
    %cst_61 = arith.constant 5.000000e-01 : f32
    %86 = vector.broadcast %cst_61 : f32 to vector<1x128xf32>
    %87 = arith.cmpf ogt, %85, %86 : vector<1x128xf32>
    %cst_62 = arith.constant -3.40282347E+38 : f32
    %88 = vector.shape_cast %87 : vector<1x128xi1> to vector<1x128xi1>
    %89 = vector.broadcast %88 : vector<1x128xi1> to vector<32x128xi1>
    %90 = vector.broadcast %cst_62 : f32 to vector<32x128xf32>
    %91 = arith.select %89, %83, %90 : vector<32x128xi1>, vector<32x128xf32>
    %92 = arith.maximumf %80, %91 : vector<32x128xf32>
    %93 = arith.addf %81, %83 : vector<32x128xf32>
    %c0_63 = arith.constant 0 : index
    %c8 = arith.constant 8 : index
    %c0_64 = arith.constant 0 : index
    %c0_65 = arith.constant 0 : index
    %94 = vector.load %arg2[%c0_63, %c8, %c0_64, %c0_65] : memref<1x9x32x128xf32, #tpu.memory_space<vmem>>, vector<1x1x32x128xf32>
    %95 = vector.shape_cast %94 : vector<1x1x32x128xf32> to vector<32x128xf32>
    %c8_66 = arith.constant 8 : index
    %c0_67 = arith.constant 0 : index
    %c0_68 = arith.constant 0 : index
    %96 = vector.load %arg3[%c8_66, %c0_67, %c0_68] : memref<9x1x128xf32, #tpu.memory_space<vmem>>, vector<1x1x128xf32>
    %97 = vector.shape_cast %96 : vector<1x1x128xf32> to vector<1x128xf32>
    %cst_69 = arith.constant 5.000000e-01 : f32
    %98 = vector.broadcast %cst_69 : f32 to vector<1x128xf32>
    %99 = arith.cmpf ogt, %97, %98 : vector<1x128xf32>
    %cst_70 = arith.constant -3.40282347E+38 : f32
    %100 = vector.shape_cast %99 : vector<1x128xi1> to vector<1x128xi1>
    %101 = vector.broadcast %100 : vector<1x128xi1> to vector<32x128xi1>
    %102 = vector.broadcast %cst_70 : f32 to vector<32x128xf32>
    %103 = arith.select %101, %95, %102 : vector<32x128xi1>, vector<32x128xf32>
    %104 = arith.maximumf %92, %103 : vector<32x128xf32>
    %105 = arith.addf %93, %95 : vector<32x128xf32>
    %cst_71 = arith.constant 0.111111112 : f32
    %106 = vector.broadcast %cst_71 : f32 to vector<32x128xf32>
    %107 = arith.mulf %105, %106 : vector<32x128xf32>
    %108 = arith.addf %104, %107 : vector<32x128xf32>
    %c0_72 = arith.constant 0 : index
    %c0_73 = arith.constant 0 : index
    %c0_74 = arith.constant 0 : index
    %109 = vector.load %arg4[%c0_72, %c0_73, %c0_74] : memref<1x32x128xf32, #tpu.memory_space<vmem>>, vector<1x32x128xf32>
    %110 = vector.shape_cast %109 : vector<1x32x128xf32> to vector<32x128xf32>
    %111 = vector.shape_cast %108 : vector<32x128xf32> to vector<1x32x128xf32>
    tpu.vector_store %arg4[%c0_72, %c0_73, %c0_74], %111 {strides = array<i32>} : memref<1x32x128xf32, #tpu.memory_space<vmem>>, vector<1x32x128xf32>,
    return
  }
  func.func @transform_0(%arg0: i32, %arg1: i32) -> (i32, i32, i32, i32) {
    %c0_i32 = arith.constant 0 : i32
    %c0_i32_0 = arith.constant 0 : i32
    %c0_i32_1 = arith.constant 0 : i32
    return %arg0, %c0_i32, %c0_i32_0, %arg1 : i32, i32, i32, i32
  }
  func.func @transform_1(%arg0: i32, %arg1: i32) -> (i32, i32, i32) {
    %c0_i32 = arith.constant 0 : i32
    %c0_i32_0 = arith.constant 0 : i32
    %c0_i32_1 = arith.constant 0 : i32
    return %c0_i32, %c0_i32_0, %arg1 : i32, i32, i32
  }
  func.func @transform_2(%arg0: i32, %arg1: i32) -> (i32, i32, i32) {
    %c0_i32 = arith.constant 0 : i32
    %c0_i32_0 = arith.constant 0 : i32
    return %arg0, %c0_i32, %arg1 : i32, i32, i32
  }
}

module attributes {stable_mosaic.version = 11 : i64} {
  func.func @_conv_bn_lrelu_kernel(%arg0: i32, %arg1: i32, %arg2: memref<1x32x128xbf16, #tpu.memory_space<vmem>>, %arg3: memref<16x32xbf16, #tpu.memory_space<vmem>>, %arg4: memref<16x1xf32, #tpu.memory_space<vmem>>, %arg5: memref<1x16x128xf32, #tpu.memory_space<vmem>>) attributes {dimension_semantics = [#tpu.dimension_semantics<parallel>, #tpu.dimension_semantics<parallel>], iteration_bounds = array<i64: 2, 1>, scalar_prefetch = 0 : i64, scratch_operands = 0 : i64, tpu.core_type = #tpu.core_type<tc>, window_params = [{transform_indices = @transform_0, window_bounds = array<i64: 1, 32, 128>}, {pipeline_mode = #tpu.pipeline_mode<synchronous>, transform_indices = @transform_1, window_bounds = array<i64: 16, 32>}, {pipeline_mode = #tpu.pipeline_mode<synchronous>, transform_indices = @transform_2, window_bounds = array<i64: 16, 1>}, {transform_indices = @transform_3, window_bounds = array<i64: 1, 16, 128>}]} {
    %c0 = arith.constant 0 : index
    %c0_0 = arith.constant 0 : index
    %0 = vector.load %arg3[%c0, %c0_0] : memref<16x32xbf16, #tpu.memory_space<vmem>>, vector<16x32xbf16>
    %c0_1 = arith.constant 0 : index
    %c0_2 = arith.constant 0 : index
    %c0_3 = arith.constant 0 : index
    %1 = vector.load %arg2[%c0_1, %c0_2, %c0_3] : memref<1x32x128xbf16, #tpu.memory_space<vmem>>, vector<1x32x128xbf16>
    %2 = vector.shape_cast %1 : vector<1x32x128xbf16> to vector<32x128xbf16>
    %cst = arith.constant dense<0.000000e+00> : vector<16x128xf32>
    %3 = tpu.matmul %0, %2, %cst {dimension_numbers = #tpu.dot_dimension_numbers<[1], [0], [0], [1], [0, 0, 1, 1], [], []>} : vector<16x32xbf16>, vector<32x128xbf16>, vector<16x128xf32> -> vector<16x128xf32>
    %c0_4 = arith.constant 0 : index
    %c0_5 = arith.constant 0 : index
    %4 = vector.load %arg4[%c0_4, %c0_5] : memref<16x1xf32, #tpu.memory_space<vmem>>, vector<16x1xf32>
    %5 = vector.broadcast %4 : vector<16x1xf32> to vector<16x128xf32>
    %6 = arith.addf %3, %5 : vector<16x128xf32>
    %cst_6 = arith.constant 0.000000e+00 : f32
    %7 = vector.broadcast %cst_6 : f32 to vector<16x128xf32>
    %8 = arith.cmpf oge, %6, %7 : vector<16x128xf32>
    %cst_7 = arith.constant 0.00999999977 : f32
    %9 = vector.broadcast %cst_7 : f32 to vector<16x128xf32>
    %10 = arith.mulf %9, %6 : vector<16x128xf32>
    %11 = arith.select %8, %6, %10 : vector<16x128xi1>, vector<16x128xf32>
    %c0_8 = arith.constant 0 : index
    %c0_9 = arith.constant 0 : index
    %c0_10 = arith.constant 0 : index
    %12 = vector.load %arg5[%c0_8, %c0_9, %c0_10] : memref<1x16x128xf32, #tpu.memory_space<vmem>>, vector<1x16x128xf32>
    %13 = vector.shape_cast %12 : vector<1x16x128xf32> to vector<16x128xf32>
    %14 = vector.shape_cast %11 : vector<16x128xf32> to vector<1x16x128xf32>
    tpu.vector_store %arg5[%c0_8, %c0_9, %c0_10], %14 {strides = array<i32>} : memref<1x16x128xf32, #tpu.memory_space<vmem>>, vector<1x16x128xf32>,
    return
  }
  func.func @transform_0(%arg0: i32, %arg1: i32) -> (i32, i32, i32) {
    %c0_i32 = arith.constant 0 : i32
    %c0_i32_0 = arith.constant 0 : i32
    return %arg0, %c0_i32, %arg1 : i32, i32, i32
  }
  func.func @transform_1(%arg0: i32, %arg1: i32) -> (i32, i32) {
    %c0_i32 = arith.constant 0 : i32
    %c0_i32_0 = arith.constant 0 : i32
    %c0_i32_1 = arith.constant 0 : i32
    return %c0_i32, %c0_i32_0 : i32, i32
  }
  func.func @transform_2(%arg0: i32, %arg1: i32) -> (i32, i32) {
    %c0_i32 = arith.constant 0 : i32
    %c0_i32_0 = arith.constant 0 : i32
    %c0_i32_1 = arith.constant 0 : i32
    return %c0_i32, %c0_i32_0 : i32, i32
  }
  func.func @transform_3(%arg0: i32, %arg1: i32) -> (i32, i32, i32) {
    %c0_i32 = arith.constant 0 : i32
    %c0_i32_0 = arith.constant 0 : i32
    return %arg0, %c0_i32, %arg1 : i32, i32, i32
  }
}

module attributes {stable_mosaic.version = 11 : i64} {
  func.func @_conv_gmax_kernel(%arg0: i32, %arg1: memref<1x16x1xbf16, #tpu.memory_space<vmem>>, %arg2: memref<2x16xbf16, #tpu.memory_space<vmem>>, %arg3: memref<2x1xf32, #tpu.memory_space<vmem>>, %arg4: memref<1x2x1xf32, #tpu.memory_space<vmem>>) attributes {dimension_semantics = [#tpu.dimension_semantics<parallel>], iteration_bounds = array<i64: 2>, scalar_prefetch = 0 : i64, scratch_operands = 0 : i64, tpu.core_type = #tpu.core_type<tc>, window_params = [{transform_indices = @transform_0, window_bounds = array<i64: 1, 16, 1>}, {pipeline_mode = #tpu.pipeline_mode<synchronous>, transform_indices = @transform_1, window_bounds = array<i64: 2, 16>}, {pipeline_mode = #tpu.pipeline_mode<synchronous>, transform_indices = @transform_2, window_bounds = array<i64: 2, 1>}, {transform_indices = @transform_3, window_bounds = array<i64: 1, 2, 1>}]} {
    %c0 = arith.constant 0 : index
    %c0_0 = arith.constant 0 : index
    %0 = vector.load %arg2[%c0, %c0_0] : memref<2x16xbf16, #tpu.memory_space<vmem>>, vector<2x16xbf16>
    %c0_1 = arith.constant 0 : index
    %c0_2 = arith.constant 0 : index
    %c0_3 = arith.constant 0 : index
    %1 = vector.load %arg1[%c0_1, %c0_2, %c0_3] : memref<1x16x1xbf16, #tpu.memory_space<vmem>>, vector<1x16x1xbf16>
    %2 = vector.shape_cast %1 : vector<1x16x1xbf16> to vector<16x1xbf16>
    %cst = arith.constant dense<0.000000e+00> : vector<2x1xf32>
    %3 = tpu.matmul %0, %2, %cst {dimension_numbers = #tpu.dot_dimension_numbers<[1], [0], [0], [1], [0, 0, 1, 1], [], []>} : vector<2x16xbf16>, vector<16x1xbf16>, vector<2x1xf32> -> vector<2x1xf32>
    %c0_4 = arith.constant 0 : index
    %c0_5 = arith.constant 0 : index
    %4 = vector.load %arg3[%c0_4, %c0_5] : memref<2x1xf32, #tpu.memory_space<vmem>>, vector<2x1xf32>
    %5 = arith.addf %3, %4 : vector<2x1xf32>
    %cst_6 = arith.constant 0.000000e+00 : f32
    %6 = vector.broadcast %cst_6 : f32 to vector<2x1xf32>
    %7 = arith.cmpf oge, %5, %6 : vector<2x1xf32>
    %cst_7 = arith.constant 0.00999999977 : f32
    %8 = vector.broadcast %cst_7 : f32 to vector<2x1xf32>
    %9 = arith.mulf %8, %5 : vector<2x1xf32>
    %10 = arith.select %7, %5, %9 : vector<2x1xi1>, vector<2x1xf32>
    %cst_8 = arith.constant dense<0xFF800000> : vector<2xf32>
    %11 = vector.multi_reduction <maximumf>, %10, %cst_8 [1] : vector<2x1xf32> to vector<2xf32>
    %12 = vector.shape_cast %11 : vector<2xf32> to vector<2x1xf32>
    %c0_9 = arith.constant 0 : index
    %c0_10 = arith.constant 0 : index
    %c0_11 = arith.constant 0 : index
    %13 = vector.load %arg4[%c0_9, %c0_10, %c0_11] : memref<1x2x1xf32, #tpu.memory_space<vmem>>, vector<1x2x1xf32>
    %14 = vector.shape_cast %13 : vector<1x2x1xf32> to vector<2x1xf32>
    %15 = vector.shape_cast %12 : vector<2x1xf32> to vector<1x2x1xf32>
    tpu.vector_store %arg4[%c0_9, %c0_10, %c0_11], %15 {strides = array<i32>} : memref<1x2x1xf32, #tpu.memory_space<vmem>>, vector<1x2x1xf32>,
    return
  }
  func.func @transform_0(%arg0: i32) -> (i32, i32, i32) {
    %c0_i32 = arith.constant 0 : i32
    %c0_i32_0 = arith.constant 0 : i32
    %c0_i32_1 = arith.constant 0 : i32
    return %arg0, %c0_i32, %c0_i32_0 : i32, i32, i32
  }
  func.func @transform_1(%arg0: i32) -> (i32, i32) {
    %c0_i32 = arith.constant 0 : i32
    %c0_i32_0 = arith.constant 0 : i32
    %c0_i32_1 = arith.constant 0 : i32
    return %c0_i32, %c0_i32_0 : i32, i32
  }
  func.func @transform_2(%arg0: i32) -> (i32, i32) {
    %c0_i32 = arith.constant 0 : i32
    %c0_i32_0 = arith.constant 0 : i32
    %c0_i32_1 = arith.constant 0 : i32
    return %c0_i32, %c0_i32_0 : i32, i32
  }
  func.func @transform_3(%arg0: i32) -> (i32, i32, i32) {
    %c0_i32 = arith.constant 0 : i32
    %c0_i32_0 = arith.constant 0 : i32
    %c0_i32_1 = arith.constant 0 : i32
    return %arg0, %c0_i32, %c0_i32_0 : i32, i32, i32
  }
}

</mosaic_0001>

<llo_original>
// kernel: fcn_forward.9
$region0: #{fcn_forward.9}
  #allocation0 [shape = 'u32[]', space=smem, size = 0x4, offset = 0x4, fixed_abs, tag = 'smem constant byte address 0x4 - core index']
  #allocation1 [shape = 'u32[144,128]{1,0:T(1,128)}', space=vmem, size = 0x12000, scoped, tag = 'internal scratch']
  %s0 = inlined_call_operand.vmem [shape: bf16[2,9,1024], index: 0, kind: input, shape index: {}]
  %s1 = inlined_call_operand.hbm [shape: bf16[8,9], index: 1, kind: input, shape index: {}]
  %s2 = inlined_call_operand.vmem [shape: f32[8,1], index: 2, kind: input, shape index: {}]
  %s3 = inlined_call_operand.vmem [shape: f32[2,8,1024], index: 3, kind: output, shape index: {}]
  %s4 = sld [smem:[#allocation0]]
  $region72: #{fcn_forward.9} parent=0
    _
  %s6 = ssub.s32 1, %s4
  %s7 = scalar_select 0, %s6, %s4
  $region1: #{fcn_forward.9} parent=0
    #allocation2 [shape = 'u8[32768]{0}', space=vmem, size = 0x8000, scoped, tag = 'input window, operand 0']
    #allocation3 [shape = 'u8[2048]{0}', space=vmem, size = 0x800, scoped, tag = 'input window, operand 1, single buffered']
    #allocation4 [shape = 's32[2]{0}', space=sflag, size = 0x8, scoped, tag = 'scoped memory for fcn_forward.9']
    %8 = vsyncpa [#allocation4], 0
    loop: start=0, step=1, limit=6
    $region2: #{fcn_forward.9} parent=1 // loop_pre_header
      _
    $region3: #{fcn_forward.9} parent=1 // loop_header
      %s10 = sphi 0, %s14
      %p11 = scmp.ge.s32.totalorder %s10, 6
      %s17 = sphi 0, %s29
      %s18 = sphi 0, %s25
      %s19 = sphi 0, %s17
      %s20 = sphi 0, %s18
      %s21 = sphi 0, %s19
      %s22 = sphi 0, %s20
      %s34 = sphi 0, %s36
      %s37 = sphi 0, %s34
      %s38 = sphi 0, %s37
      %s54 = sphi 0, %s38
      %s58 = sphi 0, %s58
      %s60 = sphi 0, %s58
      %s61 = sphi 0, %s60
      %s75 = sphi 0, %s61
      %s79 = sphi 0, %s79
      %s81 = sphi 0, %s79
      %s82 = sphi 0, %s81
      %s96 = sphi 0, %s82
      %s104 = sphi 0, %s106
      %s107 = sphi 0, %s104
      %s108 = sphi 0, %s107
      %s124 = sphi 0, %s108
    $region4: #{fcn_forward.9} parent=1 // loop_header_branch
      %13 = sbr.rel (%p11) target = $region8
    $region5: #{fcn_forward.9} parent=1 // loop_body
      %s15 = ssub.s32 %s10, 1
      %s16 = ssub.s32 %s10, 2
      %s23 = sadd.s32 1, %s18
      %p24 = scmp.ge.s32.totalorder %s23, 2
      %s25 = scalar_select %p24, 0, %s23
      %s26 = sadd.s32 1, %s17
      %s27 = scalar_select %p24, %s26, %s17
      %p28 = scmp.ge.s32.totalorder %s27, 2
      %s29 = scalar_select %p28, 0, %s27
      %s30 = ssub.s32 %s17, %s29
      %s31 = ssub.s32 %s18, %s25
      %s32 = sor.u32 %s30, %s31
      %p33 = scmp.eq.s32.totalorder %s32, 0
      %s35 = sadd.s32 %s34, 1
      %s36 = scalar_select %p33, %s34, %s35
      %p39 = pneg %p33
      %p40 = scmp.eq.s32.totalorder %s10, 3
      %p41 = por %p39, %p40
      %p42 = scmp.ne.s32.totalorder %s34, %s37
      %p43 = scmp.eq.s32.totalorder %s10, 0
      %p44 = por %p42, %p43
      %p45 = scmp.ne.s32.totalorder %s34, %s37
      %p46 = scmp.eq.s32.totalorder %s15, 3
      %p47 = por %p45, %p46
      %p48 = scmp.ne.s32.totalorder %s37, %s38
      %p49 = scmp.eq.s32.totalorder %s15, 0
      %p50 = por %p48, %p49
      %p51 = scmp.ne.s32.totalorder %s37, %s38
      %p52 = scmp.eq.s32.totalorder %s16, 3
      %p53 = por %p51, %p52
      %p55 = scmp.ne.s32.totalorder %s38, %s54
      %p56 = scmp.eq.s32.totalorder %s16, 0
      %p57 = por %p55, %p56
      %s59 = sadd.s32 %s58, 1
      %p62 = scmp.eq.s32.totalorder %s10, 3
      %p63 = scmp.ne.s32.totalorder %s58, %s60
      %p64 = scmp.eq.s32.totalorder %s10, 0
      %p65 = por %p63, %p64
      %p66 = scmp.ne.s32.totalorder %s58, %s60
      %p67 = scmp.eq.s32.totalorder %s15, 3
      %p68 = por %p66, %p67
      %p69 = scmp.ne.s32.totalorder %s60, %s61
      %p70 = scmp.eq.s32.totalorder %s15, 0
      %p71 = por %p69, %p70
      %p72 = scmp.ne.s32.totalorder %s60, %s61
      %p73 = scmp.eq.s32.totalorder %s16, 3
      %p74 = por %p72, %p73
      %p76 = scmp.ne.s32.totalorder %s61, %s75
      %p77 = scmp.eq.s32.totalorder %s16, 0
      %p78 = por %p76, %p77
      %s80 = sadd.s32 %s79, 1
      %p83 = scmp.eq.s32.totalorder %s10, 3
      %p84 = scmp.ne.s32.totalorder %s79, %s81
      %p85 = scmp.eq.s32.totalorder %s10, 0
      %p86 = por %p84, %p85
      %p87 = scmp.ne.s32.totalorder %s79, %s81
      %p88 = scmp.eq.s32.totalorder %s15, 3
      %p89 = por %p87, %p88
      %p90 = scmp.ne.s32.totalorder %s81, %s82
      %p91 = scmp.eq.s32.totalorder %s15, 0
      %p92 = por %p90, %p91
      %p93 = scmp.ne.s32.totalorder %s81, %s82
      %p94 = scmp.eq.s32.totalorder %s16, 3
      %p95 = por %p93, %p94
      %p97 = scmp.ne.s32.totalorder %s82, %s96
      %p98 = scmp.eq.s32.totalorder %s16, 0
      %p99 = por %p97, %p98
      %s100 = ssub.s32 %s17, %s29
      %s101 = ssub.s32 %s18, %s25
      %s102 = sor.u32 %s100, %s101
      %p103 = scmp.eq.s32.totalorder %s102, 0
      %s105 = sadd.s32 %s104, 1
      %s106 = scalar_select %p103, %s104, %s105
      %p109 = pneg %p103
      %p110 = scmp.eq.s32.totalorder %s10, 3
      %p111 = por %p109, %p110
      %p112 = scmp.ne.s32.totalorder %s104, %s107
      %p113 = scmp.eq.s32.totalorder %s10, 0
      %p114 = por %p112, %p113
      %p115 = scmp.ne.s32.totalorder %s104, %s107
      %p116 = scmp.eq.s32.totalorder %s15, 3
      %p117 = por %p115, %p116
      %p118 = scmp.ne.s32.totalorder %s107, %s108
      %p119 = scmp.eq.s32.totalorder %s15, 0
      %p120 = por %p118, %p119
      %p121 = scmp.ne.s32.totalorder %s107, %s108
      %p122 = scmp.eq.s32.totalorder %s16, 3
      %p123 = por %p121, %p122
      %p125 = scmp.ne.s32.totalorder %s108, %s124
      %p126 = scmp.eq.s32.totalorder %s16, 0
      %p127 = por %p125, %p126
      %p128 = scmp.le.s32.totalorder 1, %s10
      %p129 = scmp.lt.s32.totalorder %s10, 5
      %p130 = pnand %p128, %p129
      %p131 = pneg %p130
      // Predicated region
      $region9: #{fcn_forward.9} parent=5 // pred_check
        _
      $region10: #{fcn_forward.9} parent=5 // pred_check_branch
        %133 = sbr.rel (%p130) target = $region12
      $region11: #{fcn_forward.9} parent=5 // pred_region
        %s134 = ssub.s32 %s10, 1
        // Predicated region
        $region13: #{fcn_forward.9} parent=11 // pred_check
          %p135 = pneg %p71
        $region14: #{fcn_forward.9} parent=11 // pred_check_branch
          %137 = sbr.rel (%p135) target = $region16
        $region15: #{fcn_forward.9} parent=11 // pred_region
          %s139 = ssub.s32 64, 64
          %140 = vsyncadd [#allocation4], %s139
          %s142 = sshll.u32 [#allocation3], 4
          %s143 = int_to_ptr.vmem [resolvable:$true] %s142
          %145 = dma.hbm_to_vmem [thread:$0]  %s1, 64, %s143, [#allocation4]
        $region16: #{fcn_forward.9} parent=11 // pred_fallthru
          _
        // Predicated region
        $region17: #{fcn_forward.9} parent=11 // pred_check
          %p146 = pneg %p92
        $region18: #{fcn_forward.9} parent=11 // pred_check_branch
          %148 = sbr.rel (%p146) target = $region20
        $region19: #{fcn_forward.9} parent=11 // pred_region
          _
        $region20: #{fcn_forward.9} parent=11 // pred_fallthru
          _
      $region12: #{fcn_forward.9} parent=5 // pred_fallthru
        _
      %p149 = scmp.lt.s32.totalorder %s10, 4
      // Predicated region
      $region21: #{fcn_forward.9} parent=5 // pred_check
        %p150 = pneg %p149
      $region22: #{fcn_forward.9} parent=5 // pred_check_branch
        %152 = sbr.rel (%p150) target = $region24
      $region23: #{fcn_forward.9} parent=5 // pred_region
        // Predicated region
        $region25: #{fcn_forward.9} parent=23 // pred_check
          %p153 = pneg %p44
        $region26: #{fcn_forward.9} parent=23 // pred_check_branch
          %155 = sbr.rel (%p153) target = $region28
        $region27: #{fcn_forward.9} parent=23 // pred_region
          %s156 = sand.u32 %s34, 1
          %s157 = sand.u32 %s34, 1
          %s158 = smul.addr %s157, 32
          %s159 = scalar_lea.vmem [#allocation2], %s158
          %s160 = smul.u32 4, %s18
          %s161 = smul.addr %s17, 16
          %s162 = sadd.s32 %s160, %s161
          %s163 = smul.addr %s162, 4
          %s164 = scalar_lea.vmem %s0, %s163
          // Predicated region
          $region29: #{fcn_forward.9} parent=27 // pred_check
            _
          $region30: #{fcn_forward.9} parent=27 // pred_check_branch
            %166 = sbr.rel (0) target = $region32
          $region31: #{fcn_forward.9} parent=27 // pred_region
            // Predicated region
            $region33: #{fcn_forward.9} parent=31 // pred_check
              _
            $region34: #{fcn_forward.9} parent=31 // pred_check_branch
              %168 = sbr.rel (0) target = $region36
            $region35: #{fcn_forward.9} parent=31 // pred_region
              loop: start=0, step=1, limit=1
              $region37: #{fcn_forward.9} parent=35 // loop_pre_header
                _
              $region38: #{fcn_forward.9} parent=35 // loop_header
                %s170 = sphi 0, %s174
                %p171 = scmp.ge.s32.totalorder %s170, 1
                %s175 = sphi %s164, %s164
                %s176 = sphi %s159, %s159
              $region39: #{fcn_forward.9} parent=35 // loop_header_branch
                %173 = sbr.rel (%p171) target = $region43
              $region40: #{fcn_forward.9} parent=35 // loop_body
                %v177 = vld [vmem:[%s175] sm:$0xff]
                %178 = vst [vmem:[%s176] sm:$0xff] %v177
                %v179 = vld [vmem:[%s175 + $0x8] sm:$0xff]
                %180 = vst [vmem:[%s176 + $0x8] sm:$0xff] %v179
                %v181 = vld [vmem:[%s175 + $0x20] sm:$0xff]
                %182 = vst [vmem:[%s176 + $0x10] sm:$0xff] %v181
                %v183 = vld [vmem:[%s175 + $0x28] sm:$0xff]
                %184 = vst [vmem:[%s176 + $0x18] sm:$0xff] %v183
              $region41: #{fcn_forward.9} parent=35 // loop_footer
                %s174 = sadd.s32 1, %s170
              $region42: #{fcn_forward.9} parent=35 // loop_footer_branch
                %169 = sbr.rel target = $region38
              $region43: #{fcn_forward.9} parent=35 // loop_exit
                _
            $region36: #{fcn_forward.9} parent=31 // pred_fallthru
              _
            // Predicated region
            $region44: #{fcn_forward.9} parent=31 // pred_check
              _
            $region45: #{fcn_forward.9} parent=31 // pred_check_branch
              %186 = sbr.rel target = $region47
            $region46: #{fcn_forward.9} parent=31 // pred_region
              _
            $region47: #{fcn_forward.9} parent=31 // pred_fallthru
              _
          $region32: #{fcn_forward.9} parent=27 // pred_fallthru
            _
          %187 = vnop
        $region28: #{fcn_forward.9} parent=23 // pred_fallthru
          _
      $region24: #{fcn_forward.9} parent=5 // pred_fallthru
        _
      %p188 = scmp.le.s32.totalorder 1, %s10
      %p189 = scmp.lt.s32.totalorder %s10, 5
      %p190 = pnand %p188, %p189
      %p191 = pneg %p190
      // Predicated region
      $region48: #{fcn_forward.9} parent=5 // pred_check
        _
      $region49: #{fcn_forward.9} parent=5 // pred_check_branch
        %193 = sbr.rel (%p190) target = $region51
      $region50: #{fcn_forward.9} parent=5 // pred_region
        %s194 = ssub.s32 %s10, 1
        %s195 = sand.u32 %s37, 1
        %s196 = sand.u32 %s37, 1
        %s197 = smul.addr %s196, 32
        %s198 = scalar_lea.vmem [#allocation2], %s197
        // Predicated region
        $region52: #{fcn_forward.9} parent=50 // pred_check
          %p199 = pneg %p50
        $region53: #{fcn_forward.9} parent=50 // pred_check_branch
          %201 = sbr.rel (%p199) target = $region55
        $region54: #{fcn_forward.9} parent=50 // pred_region
          _
        $region55: #{fcn_forward.9} parent=50 // pred_fallthru
          _
        // Predicated region
        $region56: #{fcn_forward.9} parent=50 // pred_check
          %p202 = pneg %p71
        $region57: #{fcn_forward.9} parent=50 // pred_check_branch
          %204 = sbr.rel (%p202) target = $region59
        $region58: #{fcn_forward.9} parent=50 // pred_region
          %205 = dma.done [#allocation4], 64
        $region59: #{fcn_forward.9} parent=50 // pred_fallthru
          _
        %s206 = sand.u32 %s37, 1
        %s207 = sand.u32 %s37, 1
        %s208 = smul.addr %s207, 32
        %s209 = scalar_lea.vmem [#allocation2], %s208
        %p210 = pneg %p50
        %p211 = pneg %p47
        %p212 = pneg %p71
        %p213 = pneg %p68
        %p214 = pneg %p92
        %p215 = pneg %p89
        %p216 = pneg %p120
        %p217 = pneg %p117
        %s218 = smul.u32 4, %s20
        %p219 = scmp.lt.s32.totalorder %s19, 1
        %s220 = scalar_select %p219, %s19, 1
        %p221 = scmp.lt.s32.totalorder %s218, 7
        %s222 = scalar_select %p221, %s218, 7
        %s223 = smul.addr %s220, 8
        %s224 = sadd.s32 %s222, %s223
        %s225 = smul.addr %s224, 8
        %s226 = scalar_lea.vmem %s3, %s225
        %s227 = smul.u32 4, %s20
        %s228 = smul.u32 4, %s20
        %p229 = scmp.lt.s32.totalorder %s19, 1
        %s230 = scalar_select %p229, %s19, 1
        %p231 = scmp.lt.s32.totalorder %s228, 7
        %s232 = scalar_select %p231, %s228, 7
        %s233 = smul.addr %s230, 8
        %s234 = sadd.s32 %s232, %s233
        %s235 = smul.addr %s234, 8
        %s236 = scalar_lea.vmem %s3, %s235
        %s237 = smul.u32 4, %s20
        %v239 = vld [vmem:[#allocation3] sm:$0xf]
        %v240 = vld [vmem:[%s198] sm:$0xff]
        %v241 = vld [vmem:[%s198 + $0x8] sm:$0xff]
        %v242 = vld [vmem:[%s198 + $0x10] sm:$0x11]
        %v243 = vld [vmem:[%s198 + $0x18] sm:$0x11]
        %v244 = vld [vmem:[%s2] sm:$0xff]
        %246 = vset.pattern.permute.xlu0 0
        %247 = vperm.xlu0 %246, %v244
        %v248 = vpop.permute.xlu0 %247
        %v254 = vunpack.c.l.b16 %v240
        %v255 = vunpack.c.h.b16 %v240
        %v256 = vunpack.c.l.b16 %v241
        %v257 = vunpack.c.h.b16 %v241
        %v258 = vunpack.c.l.b16 %v242
        %v259 = vunpack.c.h.b16 %v242
        %v260 = vunpack.c.l.b16 %v243
        %v261 = vunpack.c.h.b16 %v243
        %v262 = vpack.c.b16 %v258, %v254
        %v263 = vpack.c.b16 %v259, %v255
        %v264 = vpack.c.b16 %v260, %v256
        %v265 = vpack.c.b16 %v261, %v257
        %vm266 = vcmask 72704
        %v268 = vsel %vm266, %v239, 0
        %vm270 = vcmask 1043456
        %vm271 = vcmask 1044480
        %v272 = vsel %vm270, 4294967295, 65535
        %v273 = vsel %vm271, %v272, 0
        %v275 = vand.u32 %v262, %v273
        %v278 = vand.u32 %v263, %v273
        %v281 = vand.u32 %v264, %v273
        %v284 = vand.u32 %v265, %v273
        %286 = vmatprep.subr.bf16.mxu0 0
        %287 = vmatpush1.bf16.msra.mxu0 0
        %288 = vmatprep.subr.bf16.mxu0 0
        %289 = vmatpush1.bf16.msra.mxu0 0
        %290 = vmatprep.subr.bf16.mxu0 0
        %291 = vmatpush1.bf16.msra.mxu0 0
        %292 = vmatprep.subr.bf16.mxu0 0
        %293 = vmatpush1.bf16.msra.mxu0 0
        %294 = vmatprep.subr.bf16.mxu0 0
        %295 = vmatpush1.bf16.msra.mxu0 0
        %296 = vmatprep.subr.bf16.mxu0 0
        %297 = vmatpush1.bf16.msra.mxu0 0
        %298 = vmatprep.subr.bf16.mxu0 0
        %299 = vmatpush1.bf16.msra.mxu0 0
        %300 = vmatprep.subr.bf16.mxu0 %v278
        %301 = vmatpush1.bf16.msra.mxu0 %v275
        %302 = vmatprep.subr.bf16.mxu0 0
        %303 = vmatpush2.bf16.msra.mxu0 0
        %304 = vmatprep.subr.bf16.mxu0 0
        %305 = vmatpush2.bf16.msra.mxu0 0
        %306 = vmatprep.subr.bf16.mxu0 0
        %307 = vmatpush2.bf16.msra.mxu0 0
        %308 = vmatprep.subr.bf16.mxu0 0
        %309 = vmatpush2.bf16.msra.mxu0 0
        %310 = vmatprep.subr.bf16.mxu0 0
        %311 = vmatpush2.bf16.msra.mxu0 0
        %312 = vmatprep.subr.bf16.mxu0 0
        %313 = vmatpush2.bf16.msra.mxu0 0
        %314 = vmatprep.subr.bf16.mxu0 0
        %315 = vmatpush2.bf16.msra.mxu0 0
        %316 = vmatprep.subr.bf16.mxu0 0
        %317 = vmatpush2.bf16.msra.mxu0 0
        %318 = vmatprep.mubr.bf16.mxu0 0
        %319 = vmatmul.mubr.bf16.gmra.mxu0 %v268
        %v320 = vpop.f32.mrf.mxu0
        %v321 = vadd.f32 %v248, %v320
        %v322 = vpop.f32.mrf.mxu0
        %v323 = vadd.f32 %v248, %v322
        %v324 = vpop.f32.mrf.mxu0
        %v325 = vpop.f32.mrf.mxu0
        %326 = vdwg.mxu0
        %327 = vmatprep.subr.bf16.mxu0 0
        %328 = vmatpush1.bf16.msra.mxu0 0
        %329 = vmatprep.subr.bf16.mxu0 0
        %330 = vmatpush1.bf16.msra.mxu0 0
        %331 = vmatprep.subr.bf16.mxu0 0
        %332 = vmatpush1.bf16.msra.mxu0 0
        %333 = vmatprep.subr.bf16.mxu0 0
        %334 = vmatpush1.bf16.msra.mxu0 0
        %335 = vmatprep.subr.bf16.mxu0 0
        %336 = vmatpush1.bf16.msra.mxu0 0
        %337 = vmatprep.subr.bf16.mxu0 0
        %338 = vmatpush1.bf16.msra.mxu0 0
        %339 = vmatprep.subr.bf16.mxu0 0
        %340 = vmatpush1.bf16.msra.mxu0 0
        %341 = vmatprep.subr.bf16.mxu0 %v284
        %342 = vmatpush1.bf16.msra.mxu0 %v281
        %343 = vmatprep.subr.bf16.mxu0 0
        %344 = vmatpush2.bf16.msra.mxu0 0
        %345 = vmatprep.subr.bf16.mxu0 0
        %346 = vmatpush2.bf16.msra.mxu0 0
        %347 = vmatprep.subr.bf16.mxu0 0
        %348 = vmatpush2.bf16.msra.mxu0 0
        %349 = vmatprep.subr.bf16.mxu0 0
        %350 = vmatpush2.bf16.msra.mxu0 0
        %351 = vmatprep.subr.bf16.mxu0 0
        %352 = vmatpush2.bf16.msra.mxu0 0
        %353 = vmatprep.subr.bf16.mxu0 0
        %354 = vmatpush2.bf16.msra.mxu0 0
        %355 = vmatprep.subr.bf16.mxu0 0
        %356 = vmatpush2.bf16.msra.mxu0 0
        %357 = vmatprep.subr.bf16.mxu0 0
        %358 = vmatpush2.bf16.msra.mxu0 0
        %359 = vmatprep.mubr.bf16.mxu0 0
        %360 = vmatmul.mubr.bf16.gmra.mxu0 %v268
        %v361 = vpop.f32.mrf.mxu0
        %v362 = vadd.f32 %v248, %v361
        %v363 = vpop.f32.mrf.mxu0
        %v364 = vadd.f32 %v248, %v363
        %v365 = vpop.f32.mrf.mxu0
        %v366 = vpop.f32.mrf.mxu0
        %367 = vdwg.mxu0
        %vm368 = vcmp.ge.f32.partialorder %v321, 0.0
        %vm369 = vcmp.ge.f32.partialorder %v323, 0.0
        %vm370 = vcmp.ge.f32.partialorder %v362, 0.0
        %vm371 = vcmp.ge.f32.partialorder %v364, 0.0
        %v372 = vmul.f32 %v321, 0.01
        %v373 = vmul.f32 %v323, 0.01
        %v374 = vmul.f32 %v362, 0.01
        %v375 = vmul.f32 %v364, 0.01
        %v376 = vsel %vm368, %v321, %v372
        %v377 = vsel %vm369, %v323, %v373
        %v378 = vsel %vm370, %v362, %v374
        %v379 = vsel %vm371, %v364, %v375
        %380 = vst [vmem:[%s236] sm:$0xff] %v376
        %381 = vst [vmem:[%s236 + $0x8] sm:$0xff] %v377
        %382 = vst [vmem:[%s236 + $0x10] sm:$0xff] %v378
        %383 = vst [vmem:[%s236 + $0x18] sm:$0xff] %v379
        %s384 = smul.u32 4, %s20
        %p385 = scmp.lt.s32.totalorder %s19, 1
        %s386 = scalar_select %p385, %s19, 1
        %p387 = scmp.lt.s32.totalorder %s384, 7
        %s388 = scalar_select %p387, %s384, 7
        %s389 = smul.addr %s386, 8
        %s390 = sadd.s32 %s388, %s389
        %s391 = smul.addr %s390, 8
        %s392 = scalar_lea.vmem %s3, %s391
        // Predicated region
        $region60: #{fcn_forward.9} parent=50 // pred_check
          %p393 = pneg %p117
        $region61: #{fcn_forward.9} parent=50 // pred_check_branch
          %395 = sbr.rel (%p393) target = $region63
        $region62: #{fcn_forward.9} parent=50 // pred_region
          %s396 = smul.u32 4, %s20
        $region63: #{fcn_forward.9} parent=50 // pred_fallthru
          _
      $region51: #{fcn_forward.9} parent=5 // pred_fallthru
        _
      %p397 = scmp.le.s32.totalorder 2, %s10
      // Predicated region
      $region64: #{fcn_forward.9} parent=5 // pred_check
        %p398 = pneg %p397
      $region65: #{fcn_forward.9} parent=5 // pred_check_branch
        %400 = sbr.rel (%p398) target = $region67
      $region66: #{fcn_forward.9} parent=5 // pred_region
        %s401 = ssub.s32 %s10, 2
        // Predicated region
        $region68: #{fcn_forward.9} parent=66 // pred_check
          %p402 = pneg %p123
        $region69: #{fcn_forward.9} parent=66 // pred_check_branch
          %404 = sbr.rel (%p402) target = $region71
        $region70: #{fcn_forward.9} parent=66 // pred_region
          %s405 = smul.u32 4, %s22
          %p406 = scmp.lt.s32.totalorder %s21, 1
          %s407 = scalar_select %p406, %s21, 1
          %p408 = scmp.lt.s32.totalorder %s405, 7
          %s409 = scalar_select %p408, %s405, 7
          %s410 = smul.addr %s407, 8
          %s411 = sadd.s32 %s409, %s410
          %s412 = smul.addr %s411, 8
          %s413 = scalar_lea.vmem %s3, %s412
        $region71: #{fcn_forward.9} parent=66 // pred_fallthru
          _
      $region67: #{fcn_forward.9} parent=5 // pred_fallthru
        _
    $region6: #{fcn_forward.9} parent=1 // loop_footer
      %s14 = sadd.s32 1, %s10
    $region7: #{fcn_forward.9} parent=1 // loop_footer_branch
      %9 = sbr.rel target = $region3
    $region8: #{fcn_forward.9} parent=1 // loop_exit
      _
    %414 = vsyncpa [#allocation4], 1
    %s415 = scalar_lea.sflag [#allocation4], 1
    %416 = vsyncpa %s415, 1

// kernel: fcn_forward.10
$region0: #{fcn_forward.10}
  #allocation0 [shape = 'u32[]', space=smem, size = 0x4, offset = 0x4, fixed_abs, tag = 'smem constant byte address 0x4 - core index']
  #allocation1 [shape = 'u32[144,128]{1,0:T(1,128)}', space=vmem, size = 0x12000, scoped, tag = 'internal scratch']
  %s0 = inlined_call_operand.vmem [shape: f32[2,9,8,128], index: 0, kind: input, shape index: {}]
  %s1 = inlined_call_operand.vmem [shape: f32[9,1,128], index: 1, kind: input, shape index: {}]
  %s2 = inlined_call_operand.vmem [shape: f32[2,8,128], index: 2, kind: output, shape index: {}]
  %s3 = sld [smem:[#allocation0]]
  $region41: #{fcn_forward.10} parent=0
    _
  %s5 = ssub.s32 1, %s3
  %s6 = scalar_select 0, %s5, %s3
  loop: start=0, step=1, limit=4
  $region2: #{fcn_forward.10} parent=0 // loop_pre_header
    _
  $region3: #{fcn_forward.10} parent=0 // loop_header
    %s8 = sphi 0, %s12
    %p9 = scmp.ge.s32.totalorder %s8, 4
    %s15 = sphi 0, %s27
    %s16 = sphi 0, %s23
    %s17 = sphi 0, %s15
    %s18 = sphi 0, %s16
    %s19 = sphi 0, %s17
    %s20 = sphi 0, %s18
    %s32 = sphi 0, %s34
    %s35 = sphi 0, %s32
    %s36 = sphi 0, %s35
    %s52 = sphi 0, %s36
    %s58 = sphi 0, %s60
    %s61 = sphi 0, %s58
    %s62 = sphi 0, %s61
    %s78 = sphi 0, %s62
    %s86 = sphi 0, %s88
    %s89 = sphi 0, %s86
    %s90 = sphi 0, %s89
    %s106 = sphi 0, %s90
  $region4: #{fcn_forward.10} parent=0 // loop_header_branch
    %11 = sbr.rel (%p9) target = $region8
  $region5: #{fcn_forward.10} parent=0 // loop_body
    %s13 = ssub.s32 %s8, 1
    %s14 = ssub.s32 %s8, 2
    %s21 = sadd.s32 1, %s16
    %p22 = scmp.ge.s32.totalorder %s21, 1
    %s23 = scalar_select %p22, 0, %s21
    %s24 = sadd.s32 1, %s15
    %s25 = scalar_select %p22, %s24, %s15
    %p26 = scmp.ge.s32.totalorder %s25, 2
    %s27 = scalar_select %p26, 0, %s25
    %s28 = ssub.s32 %s15, %s27
    %s29 = ssub.s32 %s16, %s23
    %s30 = sor.u32 %s28, %s29
    %p31 = scmp.eq.s32.totalorder %s30, 0
    %s33 = sadd.s32 %s32, 1
    %s34 = scalar_select %p31, %s32, %s33
    %p37 = pneg %p31
    %p38 = scmp.eq.s32.totalorder %s8, 1
    %p39 = por %p37, %p38
    %p40 = scmp.ne.s32.totalorder %s32, %s35
    %p41 = scmp.eq.s32.totalorder %s8, 0
    %p42 = por %p40, %p41
    %p43 = scmp.ne.s32.totalorder %s32, %s35
    %p44 = scmp.eq.s32.totalorder %s13, 1
    %p45 = por %p43, %p44
    %p46 = scmp.ne.s32.totalorder %s35, %s36
    %p47 = scmp.eq.s32.totalorder %s13, 0
    %p48 = por %p46, %p47
    %p49 = scmp.ne.s32.totalorder %s35, %s36
    %p50 = scmp.eq.s32.totalorder %s14, 1
    %p51 = por %p49, %p50
    %p53 = scmp.ne.s32.totalorder %s36, %s52
    %p54 = scmp.eq.s32.totalorder %s14, 0
    %p55 = por %p53, %p54
    %s56 = ssub.s32 %s16, %s23
    %p57 = scmp.eq.s32.totalorder %s56, 0
    %s59 = sadd.s32 %s58, 1
    %s60 = scalar_select %p57, %s58, %s59
    %p63 = pneg %p57
    %p64 = scmp.eq.s32.totalorder %s8, 1
    %p65 = por %p63, %p64
    %p66 = scmp.ne.s32.totalorder %s58, %s61
    %p67 = scmp.eq.s32.totalorder %s8, 0
    %p68 = por %p66, %p67
    %p69 = scmp.ne.s32.totalorder %s58, %s61
    %p70 = scmp.eq.s32.totalorder %s13, 1
    %p71 = por %p69, %p70
    %p72 = scmp.ne.s32.totalorder %s61, %s62
    %p73 = scmp.eq.s32.totalorder %s13, 0
    %p74 = por %p72, %p73
    %p75 = scmp.ne.s32.totalorder %s61, %s62
    %p76 = scmp.eq.s32.totalorder %s14, 1
    %p77 = por %p75, %p76
    %p79 = scmp.ne.s32.totalorder %s62, %s78
    %p80 = scmp.eq.s32.totalorder %s14, 0
    %p81 = por %p79, %p80
    %s82 = ssub.s32 %s15, %s27
    %s83 = ssub.s32 %s16, %s23
    %s84 = sor.u32 %s82, %s83
    %p85 = scmp.eq.s32.totalorder %s84, 0
    %s87 = sadd.s32 %s86, 1
    %s88 = scalar_select %p85, %s86, %s87
    %p91 = pneg %p85
    %p92 = scmp.eq.s32.totalorder %s8, 1
    %p93 = por %p91, %p92
    %p94 = scmp.ne.s32.totalorder %s86, %s89
    %p95 = scmp.eq.s32.totalorder %s8, 0
    %p96 = por %p94, %p95
    %p97 = scmp.ne.s32.totalorder %s86, %s89
    %p98 = scmp.eq.s32.totalorder %s13, 1
    %p99 = por %p97, %p98
    %p100 = scmp.ne.s32.totalorder %s89, %s90
    %p101 = scmp.eq.s32.totalorder %s13, 0
    %p102 = por %p100, %p101
    %p103 = scmp.ne.s32.totalorder %s89, %s90
    %p104 = scmp.eq.s32.totalorder %s14, 1
    %p105 = por %p103, %p104
    %p107 = scmp.ne.s32.totalorder %s90, %s106
    %p108 = scmp.eq.s32.totalorder %s14, 0
    %p109 = por %p107, %p108
    %p110 = scmp.le.s32.totalorder 1, %s8
    %p111 = scmp.lt.s32.totalorder %s8, 3
    %p112 = pnand %p110, %p111
    %p113 = pneg %p112
    // Predicated region
    $region9: #{fcn_forward.10} parent=5 // pred_check
      _
    $region10: #{fcn_forward.10} parent=5 // pred_check_branch
      %115 = sbr.rel (%p112) target = $region12
    $region11: #{fcn_forward.10} parent=5 // pred_region
      %s116 = ssub.s32 %s8, 1
      // Predicated region
      $region13: #{fcn_forward.10} parent=11 // pred_check
        %p117 = pneg %p74
      $region14: #{fcn_forward.10} parent=11 // pred_check_branch
        %119 = sbr.rel (%p117) target = $region16
      $region15: #{fcn_forward.10} parent=11 // pred_region
        %p120 = scmp.lt.s32.totalorder %s18, 0
        %s121 = scalar_select %p120, %s18, 0
        %s122 = scalar_lea.vmem %s1, %s121
      $region16: #{fcn_forward.10} parent=11 // pred_fallthru
        _
    $region12: #{fcn_forward.10} parent=5 // pred_fallthru
      _
    %p123 = scmp.lt.s32.totalorder %s8, 2
    // Predicated region
    $region17: #{fcn_forward.10} parent=5 // pred_check
      %p124 = pneg %p123
    $region18: #{fcn_forward.10} parent=5 // pred_check_branch
      %126 = sbr.rel (%p124) target = $region20
    $region19: #{fcn_forward.10} parent=5 // pred_region
      // Predicated region
      $region21: #{fcn_forward.10} parent=19 // pred_check
        %p127 = pneg %p42
      $region22: #{fcn_forward.10} parent=19 // pred_check_branch
        %129 = sbr.rel (%p127) target = $region24
      $region23: #{fcn_forward.10} parent=19 // pred_region
        %p130 = scmp.lt.s32.totalorder %s15, 1
        %s131 = scalar_select %p130, %s15, 1
        %p132 = scmp.lt.s32.totalorder %s16, 0
        %s133 = scalar_select %p132, %s16, 0
        %s134 = smul.addr %s131, 9
        %s135 = sadd.s32 %s133, %s134
        %s136 = smul.addr %s135, 8
        %s137 = scalar_lea.vmem %s0, %s136
      $region24: #{fcn_forward.10} parent=19 // pred_fallthru
        _
    $region20: #{fcn_forward.10} parent=5 // pred_fallthru
      _
    %p138 = scmp.le.s32.totalorder 1, %s8
    %p139 = scmp.lt.s32.totalorder %s8, 3
    %p140 = pnand %p138, %p139
    %p141 = pneg %p140
    // Predicated region
    $region25: #{fcn_forward.10} parent=5 // pred_check
      _
    $region26: #{fcn_forward.10} parent=5 // pred_check_branch
      %143 = sbr.rel (%p140) target = $region28
    $region27: #{fcn_forward.10} parent=5 // pred_region
      %s144 = ssub.s32 %s8, 1
      %p145 = scmp.lt.s32.totalorder %s17, 1
      %s146 = scalar_select %p145, %s17, 1
      %p147 = scmp.lt.s32.totalorder %s18, 0
      %s148 = scalar_select %p147, %s18, 0
      %s149 = smul.addr %s146, 9
      %s150 = sadd.s32 %s148, %s149
      %s151 = smul.addr %s150, 8
      %s152 = scalar_lea.vmem %s0, %s151
      %p153 = pneg %p48
      %p154 = pneg %p45
      %p155 = scmp.lt.s32.totalorder %s18, 0
      %s156 = scalar_select %p155, %s18, 0
      %s157 = scalar_lea.vmem %s1, %s156
      %p158 = pneg %p74
      %p159 = pneg %p71
      %p160 = pneg %p102
      %p161 = pneg %p99
      %p162 = scmp.lt.s32.totalorder %s17, 1
      %s163 = scalar_select %p162, %s17, 1
      %p164 = scmp.lt.s32.totalorder %s18, 0
      %s165 = scalar_select %p164, %s18, 0
      %s166 = sadd.s32 %s165, %s163
      %s167 = smul.addr %s166, 8
      %s168 = scalar_lea.vmem %s2, %s167
      %p169 = scmp.lt.s32.totalorder %s17, 1
      %s170 = scalar_select %p169, %s17, 1
      %p171 = scmp.lt.s32.totalorder %s18, 0
      %s172 = scalar_select %p171, %s18, 0
      %s173 = smul.addr %s170, 9
      %s174 = sadd.s32 %s172, %s173
      %s175 = smul.addr %s174, 8
      %s176 = scalar_lea.vmem %s0, %s175
      %p177 = scmp.lt.s32.totalorder %s18, 0
      %s178 = scalar_select %p177, %s18, 0
      %s179 = scalar_lea.vmem %s1, %s178
      %p180 = scmp.lt.s32.totalorder %s17, 1
      %s181 = scalar_select %p180, %s17, 1
      %p182 = scmp.lt.s32.totalorder %s18, 0
      %s183 = scalar_select %p182, %s18, 0
      %s184 = sadd.s32 %s183, %s181
      %s185 = smul.addr %s184, 8
      %s186 = scalar_lea.vmem %s2, %s185
      %v187 = vld [vmem:[%s176] sm:$0xff]
      %v188 = vld [vmem:[%s179] sm:$0x1]
      %vm189 = vcmp.gt.f32.partialorder %v188, 0.5
      %v190 = vsel %vm189, 1, 0
      %v191 = vlaneseq
      %v192 = vshrl.u32 %v191, 7
      %v193 = vsub.s32 0, %v192
      %v194 = vrot.slane %v190, %v193
      %vm195 = vcmp.eq.s32.totalorder %v194, 1
      %v196 = vsel %vm195, %v187, -3.4028235e+38
      %s197 = scalar_lea.vmem %s176, 8
      %v198 = vld [vmem:[%s197] sm:$0xff]
      %s199 = scalar_lea.vmem %s179, 1
      %v200 = vld [vmem:[%s199] sm:$0x1]
      %vm201 = vcmp.gt.f32.partialorder %v200, 0.5
      %v202 = vsel %vm201, 1, 0
      %v203 = vlaneseq
      %v204 = vshrl.u32 %v203, 7
      %v205 = vsub.s32 0, %v204
      %v206 = vrot.slane %v202, %v205
      %vm207 = vcmp.eq.s32.totalorder %v206, 1
      %v208 = vsel %vm207, %v198, -3.4028235e+38
      %v209 = vmax.f32 %v196, %v208
      %v210 = vadd.f32 %v187, %v198
      %s211 = scalar_lea.vmem %s176, 16
      %v212 = vld [vmem:[%s211] sm:$0xff]
      %s213 = scalar_lea.vmem %s179, 2
      %v214 = vld [vmem:[%s213] sm:$0x1]
      %vm215 = vcmp.gt.f32.partialorder %v214, 0.5
      %v216 = vsel %vm215, 1, 0
      %v217 = vlaneseq
      %v218 = vshrl.u32 %v217, 7
      %v219 = vsub.s32 0, %v218
      %v220 = vrot.slane %v216, %v219
      %vm221 = vcmp.eq.s32.totalorder %v220, 1
      %v222 = vsel %vm221, %v212, -3.4028235e+38
      %v223 = vmax.f32 %v209, %v222
      %v224 = vadd.f32 %v210, %v212
      %s225 = scalar_lea.vmem %s176, 24
      %v226 = vld [vmem:[%s225] sm:$0xff]
      %s227 = scalar_lea.vmem %s179, 3
      %v228 = vld [vmem:[%s227] sm:$0x1]
      %vm229 = vcmp.gt.f32.partialorder %v228, 0.5
      %v230 = vsel %vm229, 1, 0
      %v231 = vlaneseq
      %v232 = vshrl.u32 %v231, 7
      %v233 = vsub.s32 0, %v232
      %v234 = vrot.slane %v230, %v233
      %vm235 = vcmp.eq.s32.totalorder %v234, 1
      %v236 = vsel %vm235, %v226, -3.4028235e+38
      %v237 = vmax.f32 %v223, %v236
      %v238 = vadd.f32 %v224, %v226
      %s239 = scalar_lea.vmem %s176, 32
      %v240 = vld [vmem:[%s239] sm:$0xff]
      %s241 = scalar_lea.vmem %s179, 4
      %v242 = vld [vmem:[%s241] sm:$0x1]
      %vm243 = vcmp.gt.f32.partialorder %v242, 0.5
      %v244 = vsel %vm243, 1, 0
      %v245 = vlaneseq
      %v246 = vshrl.u32 %v245, 7
      %v247 = vsub.s32 0, %v246
      %v248 = vrot.slane %v244, %v247
      %vm249 = vcmp.eq.s32.totalorder %v248, 1
      %v250 = vsel %vm249, %v240, -3.4028235e+38
      %v251 = vmax.f32 %v237, %v250
      %v252 = vadd.f32 %v238, %v240
      %s253 = scalar_lea.vmem %s176, 40
      %v254 = vld [vmem:[%s253] sm:$0xff]
      %s255 = scalar_lea.vmem %s179, 5
      %v256 = vld [vmem:[%s255] sm:$0x1]
      %vm257 = vcmp.gt.f32.partialorder %v256, 0.5
      %v258 = vsel %vm257, 1, 0
      %v259 = vlaneseq
      %v260 = vshrl.u32 %v259, 7
      %v261 = vsub.s32 0, %v260
      %v262 = vrot.slane %v258, %v261
      %vm263 = vcmp.eq.s32.totalorder %v262, 1
      %v264 = vsel %vm263, %v254, -3.4028235e+38
      %v265 = vmax.f32 %v251, %v264
      %v266 = vadd.f32 %v252, %v254
      %s267 = scalar_lea.vmem %s176, 48
      %v268 = vld [vmem:[%s267] sm:$0xff]
      %s269 = scalar_lea.vmem %s179, 6
      %v270 = vld [vmem:[%s269] sm:$0x1]
      %vm271 = vcmp.gt.f32.partialorder %v270, 0.5
      %v272 = vsel %vm271, 1, 0
      %v273 = vlaneseq
      %v274 = vshrl.u32 %v273, 7
      %v275 = vsub.s32 0, %v274
      %v276 = vrot.slane %v272, %v275
      %vm277 = vcmp.eq.s32.totalorder %v276, 1
      %v278 = vsel %vm277, %v268, -3.4028235e+38
      %v279 = vmax.f32 %v265, %v278
      %v280 = vadd.f32 %v266, %v268
      %s281 = scalar_lea.vmem %s176, 56
      %v282 = vld [vmem:[%s281] sm:$0xff]
      %s283 = scalar_lea.vmem %s179, 7
      %v284 = vld [vmem:[%s283] sm:$0x1]
      %vm285 = vcmp.gt.f32.partialorder %v284, 0.5
      %v286 = vsel %vm285, 1, 0
      %v287 = vlaneseq
      %v288 = vshrl.u32 %v287, 7
      %v289 = vsub.s32 0, %v288
      %v290 = vrot.slane %v286, %v289
      %vm291 = vcmp.eq.s32.totalorder %v290, 1
      %v292 = vsel %vm291, %v282, -3.4028235e+38
      %v293 = vmax.f32 %v279, %v292
      %v294 = vadd.f32 %v280, %v282
      %s295 = scalar_lea.vmem %s176, 64
      %v296 = vld [vmem:[%s295] sm:$0xff]
      %s297 = scalar_lea.vmem %s179, 8
      %v298 = vld [vmem:[%s297] sm:$0x1]
      %vm299 = vcmp.gt.f32.partialorder %v298, 0.5
      %v300 = vsel %vm299, 1, 0
      %v301 = vlaneseq
      %v302 = vshrl.u32 %v301, 7
      %v303 = vsub.s32 0, %v302
      %v304 = vrot.slane %v300, %v303
      %vm305 = vcmp.eq.s32.totalorder %v304, 1
      %v306 = vsel %vm305, %v296, -3.4028235e+38
      %v307 = vmax.f32 %v293, %v306
      %v308 = vadd.f32 %v294, %v296
      %v309 = vmul.f32 %v308, 0.11111111
      %v310 = vadd.f32 %v307, %v309
      %311 = vst [vmem:[%s186] sm:$0xff] %v310
      %p312 = scmp.lt.s32.totalorder %s17, 1
      %s313 = scalar_select %p312, %s17, 1
      %p314 = scmp.lt.s32.totalorder %s18, 0
      %s315 = scalar_select %p314, %s18, 0
      %s316 = sadd.s32 %s315, %s313
      %s317 = smul.addr %s316, 8
      %s318 = scalar_lea.vmem %s2, %s317
      // Predicated region
      $region29: #{fcn_forward.10} parent=27 // pred_check
        %p319 = pneg %p99
      $region30: #{fcn_forward.10} parent=27 // pred_check_branch
        %321 = sbr.rel (%p319) target = $region32
      $region31: #{fcn_forward.10} parent=27 // pred_region
        _
      $region32: #{fcn_forward.10} parent=27 // pred_fallthru
        _
    $region28: #{fcn_forward.10} parent=5 // pred_fallthru
      _
    %p322 = scmp.le.s32.totalorder 2, %s8
    // Predicated region
    $region33: #{fcn_forward.10} parent=5 // pred_check
      %p323 = pneg %p322
    $region34: #{fcn_forward.10} parent=5 // pred_check_branch
      %325 = sbr.rel (%p323) target = $region36
    $region35: #{fcn_forward.10} parent=5 // pred_region
      %s326 = ssub.s32 %s8, 2
      // Predicated region
      $region37: #{fcn_forward.10} parent=35 // pred_check
        %p327 = pneg %p105
      $region38: #{fcn_forward.10} parent=35 // pred_check_branch
        %329 = sbr.rel (%p327) target = $region40
      $region39: #{fcn_forward.10} parent=35 // pred_region
        %p330 = scmp.lt.s32.totalorder %s19, 1
        %s331 = scalar_select %p330, %s19, 1
        %p332 = scmp.lt.s32.totalorder %s20, 0
        %s333 = scalar_select %p332, %s20, 0
        %s334 = sadd.s32 %s333, %s331
        %s335 = smul.addr %s334, 8
        %s336 = scalar_lea.vmem %s2, %s335
      $region40: #{fcn_forward.10} parent=35 // pred_fallthru
        _
    $region36: #{fcn_forward.10} parent=5 // pred_fallthru
      _
  $region6: #{fcn_forward.10} parent=0 // loop_footer
    %s12 = sadd.s32 1, %s8
  $region7: #{fcn_forward.10} parent=0 // loop_footer_branch
    %7 = sbr.rel target = $region3
  $region8: #{fcn_forward.10} parent=0 // loop_exit
    _

// kernel: fcn_forward.11
$region0: #{fcn_forward.11}
  #allocation0 [shape = 'u32[]', space=smem, size = 0x4, offset = 0x4, fixed_abs, tag = 'smem constant byte address 0x4 - core index']
  #allocation1 [shape = 'u32[144,128]{1,0:T(1,128)}', space=vmem, size = 0x12000, scoped, tag = 'internal scratch']
  %s0 = inlined_call_operand.vmem [shape: bf16[2,72,128], index: 0, kind: input, shape index: {}]
  %s1 = inlined_call_operand.vmem [shape: bf16[16,72], index: 1, kind: input, shape index: {}]
  %s2 = inlined_call_operand.vmem [shape: f32[16,1], index: 2, kind: input, shape index: {}]
  %s3 = inlined_call_operand.vmem [shape: f32[2,16,128], index: 3, kind: output, shape index: {}]
  %s4 = sld [smem:[#allocation0]]
  $region45: #{fcn_forward.11} parent=0
    _
  %s6 = ssub.s32 1, %s4
  %s7 = scalar_select 0, %s6, %s4
  loop: start=0, step=1, limit=4
  $region2: #{fcn_forward.11} parent=0 // loop_pre_header
    _
  $region3: #{fcn_forward.11} parent=0 // loop_header
    %s9 = sphi 0, %s13
    %p10 = scmp.ge.s32.totalorder %s9, 4
    %s16 = sphi 0, %s28
    %s17 = sphi 0, %s24
    %s18 = sphi 0, %s16
    %s19 = sphi 0, %s17
    %s20 = sphi 0, %s18
    %s21 = sphi 0, %s19
    %s33 = sphi 0, %s35
    %s36 = sphi 0, %s33
    %s37 = sphi 0, %s36
    %s53 = sphi 0, %s37
    %s57 = sphi 0, %s57
    %s59 = sphi 0, %s57
    %s60 = sphi 0, %s59
    %s74 = sphi 0, %s60
    %s78 = sphi 0, %s78
    %s80 = sphi 0, %s78
    %s81 = sphi 0, %s80
    %s95 = sphi 0, %s81
    %s103 = sphi 0, %s105
    %s106 = sphi 0, %s103
    %s107 = sphi 0, %s106
    %s123 = sphi 0, %s107
  $region4: #{fcn_forward.11} parent=0 // loop_header_branch
    %12 = sbr.rel (%p10) target = $region8
  $region5: #{fcn_forward.11} parent=0 // loop_body
    %s14 = ssub.s32 %s9, 1
    %s15 = ssub.s32 %s9, 2
    %s22 = sadd.s32 1, %s17
    %p23 = scmp.ge.s32.totalorder %s22, 1
    %s24 = scalar_select %p23, 0, %s22
    %s25 = sadd.s32 1, %s16
    %s26 = scalar_select %p23, %s25, %s16
    %p27 = scmp.ge.s32.totalorder %s26, 2
    %s28 = scalar_select %p27, 0, %s26
    %s29 = ssub.s32 %s16, %s28
    %s30 = ssub.s32 %s17, %s24
    %s31 = sor.u32 %s29, %s30
    %p32 = scmp.eq.s32.totalorder %s31, 0
    %s34 = sadd.s32 %s33, 1
    %s35 = scalar_select %p32, %s33, %s34
    %p38 = pneg %p32
    %p39 = scmp.eq.s32.totalorder %s9, 1
    %p40 = por %p38, %p39
    %p41 = scmp.ne.s32.totalorder %s33, %s36
    %p42 = scmp.eq.s32.totalorder %s9, 0
    %p43 = por %p41, %p42
    %p44 = scmp.ne.s32.totalorder %s33, %s36
    %p45 = scmp.eq.s32.totalorder %s14, 1
    %p46 = por %p44, %p45
    %p47 = scmp.ne.s32.totalorder %s36, %s37
    %p48 = scmp.eq.s32.totalorder %s14, 0
    %p49 = por %p47, %p48
    %p50 = scmp.ne.s32.totalorder %s36, %s37
    %p51 = scmp.eq.s32.totalorder %s15, 1
    %p52 = por %p50, %p51
    %p54 = scmp.ne.s32.totalorder %s37, %s53
    %p55 = scmp.eq.s32.totalorder %s15, 0
    %p56 = por %p54, %p55
    %s58 = sadd.s32 %s57, 1
    %p61 = scmp.eq.s32.totalorder %s9, 1
    %p62 = scmp.ne.s32.totalorder %s57, %s59
    %p63 = scmp.eq.s32.totalorder %s9, 0
    %p64 = por %p62, %p63
    %p65 = scmp.ne.s32.totalorder %s57, %s59
    %p66 = scmp.eq.s32.totalorder %s14, 1
    %p67 = por %p65, %p66
    %p68 = scmp.ne.s32.totalorder %s59, %s60
    %p69 = scmp.eq.s32.totalorder %s14, 0
    %p70 = por %p68, %p69
    %p71 = scmp.ne.s32.totalorder %s59, %s60
    %p72 = scmp.eq.s32.totalorder %s15, 1
    %p73 = por %p71, %p72
    %p75 = scmp.ne.s32.totalorder %s60, %s74
    %p76 = scmp.eq.s32.totalorder %s15, 0
    %p77 = por %p75, %p76
    %s79 = sadd.s32 %s78, 1
    %p82 = scmp.eq.s32.totalorder %s9, 1
    %p83 = scmp.ne.s32.totalorder %s78, %s80
    %p84 = scmp.eq.s32.totalorder %s9, 0
    %p85 = por %p83, %p84
    %p86 = scmp.ne.s32.totalorder %s78, %s80
    %p87 = scmp.eq.s32.totalorder %s14, 1
    %p88 = por %p86, %p87
    %p89 = scmp.ne.s32.totalorder %s80, %s81
    %p90 = scmp.eq.s32.totalorder %s14, 0
    %p91 = por %p89, %p90
    %p92 = scmp.ne.s32.totalorder %s80, %s81
    %p93 = scmp.eq.s32.totalorder %s15, 1
    %p94 = por %p92, %p93
    %p96 = scmp.ne.s32.totalorder %s81, %s95
    %p97 = scmp.eq.s32.totalorder %s15, 0
    %p98 = por %p96, %p97
    %s99 = ssub.s32 %s16, %s28
    %s100 = ssub.s32 %s17, %s24
    %s101 = sor.u32 %s99, %s100
    %p102 = scmp.eq.s32.totalorder %s101, 0
    %s104 = sadd.s32 %s103, 1
    %s105 = scalar_select %p102, %s103, %s104
    %p108 = pneg %p102
    %p109 = scmp.eq.s32.totalorder %s9, 1
    %p110 = por %p108, %p109
    %p111 = scmp.ne.s32.totalorder %s103, %s106
    %p112 = scmp.eq.s32.totalorder %s9, 0
    %p113 = por %p111, %p112
    %p114 = scmp.ne.s32.totalorder %s103, %s106
    %p115 = scmp.eq.s32.totalorder %s14, 1
    %p116 = por %p114, %p115
    %p117 = scmp.ne.s32.totalorder %s106, %s107
    %p118 = scmp.eq.s32.totalorder %s14, 0
    %p119 = por %p117, %p118
    %p120 = scmp.ne.s32.totalorder %s106, %s107
    %p121 = scmp.eq.s32.totalorder %s15, 1
    %p122 = por %p120, %p121
    %p124 = scmp.ne.s32.totalorder %s107, %s123
    %p125 = scmp.eq.s32.totalorder %s15, 0
    %p126 = por %p124, %p125
    %p127 = scmp.le.s32.totalorder 1, %s9
    %p128 = scmp.lt.s32.totalorder %s9, 3
    %p129 = pnand %p127, %p128
    %p130 = pneg %p129
    // Predicated region
    $region9: #{fcn_forward.11} parent=5 // pred_check
      _
    $region10: #{fcn_forward.11} parent=5 // pred_check_branch
      %132 = sbr.rel (%p129) target = $region12
    $region11: #{fcn_forward.11} parent=5 // pred_region
      %s133 = ssub.s32 %s9, 1
      // Predicated region
      $region13: #{fcn_forward.11} parent=11 // pred_check
        %p134 = pneg %p70
      $region14: #{fcn_forward.11} parent=11 // pred_check_branch
        %136 = sbr.rel (%p134) target = $region16
      $region15: #{fcn_forward.11} parent=11 // pred_region
        _
      $region16: #{fcn_forward.11} parent=11 // pred_fallthru
        _
      // Predicated region
      $region17: #{fcn_forward.11} parent=11 // pred_check
        %p137 = pneg %p91
      $region18: #{fcn_forward.11} parent=11 // pred_check_branch
        %139 = sbr.rel (%p137) target = $region20
      $region19: #{fcn_forward.11} parent=11 // pred_region
        _
      $region20: #{fcn_forward.11} parent=11 // pred_fallthru
        _
    $region12: #{fcn_forward.11} parent=5 // pred_fallthru
      _
    %p140 = scmp.lt.s32.totalorder %s9, 2
    // Predicated region
    $region21: #{fcn_forward.11} parent=5 // pred_check
      %p141 = pneg %p140
    $region22: #{fcn_forward.11} parent=5 // pred_check_branch
      %143 = sbr.rel (%p141) target = $region24
    $region23: #{fcn_forward.11} parent=5 // pred_region
      // Predicated region
      $region25: #{fcn_forward.11} parent=23 // pred_check
        %p144 = pneg %p43
      $region26: #{fcn_forward.11} parent=23 // pred_check_branch
        %146 = sbr.rel (%p144) target = $region28
      $region27: #{fcn_forward.11} parent=23 // pred_region
        %p147 = scmp.lt.s32.totalorder %s16, 1
        %s148 = scalar_select %p147, %s16, 1
        %p149 = scmp.lt.s32.totalorder %s17, 0
        %s150 = scalar_select %p149, %s17, 0
        %s151 = smul.addr %s148, 9
        %s152 = sadd.s32 %s150, %s151
        %s153 = smul.addr %s152, 4
        %s154 = scalar_lea.vmem %s0, %s153
      $region28: #{fcn_forward.11} parent=23 // pred_fallthru
        _
    $region24: #{fcn_forward.11} parent=5 // pred_fallthru
      _
    %p155 = scmp.le.s32.totalorder 1, %s9
    %p156 = scmp.lt.s32.totalorder %s9, 3
    %p157 = pnand %p155, %p156
    %p158 = pneg %p157
    // Predicated region
    $region29: #{fcn_forward.11} parent=5 // pred_check
      _
    $region30: #{fcn_forward.11} parent=5 // pred_check_branch
      %160 = sbr.rel (%p157) target = $region32
    $region31: #{fcn_forward.11} parent=5 // pred_region
      %s161 = ssub.s32 %s9, 1
      %p162 = scmp.lt.s32.totalorder %s18, 1
      %s163 = scalar_select %p162, %s18, 1
      %p164 = scmp.lt.s32.totalorder %s19, 0
      %s165 = scalar_select %p164, %s19, 0
      %s166 = smul.addr %s163, 9
      %s167 = sadd.s32 %s165, %s166
      %s168 = smul.addr %s167, 4
      %s169 = scalar_lea.vmem %s0, %s168
      %p170 = pneg %p49
      %p171 = pneg %p46
      %p172 = pneg %p70
      %p173 = pneg %p67
      %p174 = pneg %p91
      %p175 = pneg %p88
      %p176 = pneg %p119
      %p177 = pneg %p116
      %p178 = scmp.lt.s32.totalorder %s18, 1
      %s179 = scalar_select %p178, %s18, 1
      %p180 = scmp.lt.s32.totalorder %s19, 0
      %s181 = scalar_select %p180, %s19, 0
      %s182 = smul.addr %s179, 2
      %s183 = sadd.s32 %s181, %s182
      %s184 = smul.addr %s183, 8
      %s185 = scalar_lea.vmem %s3, %s184
      %p186 = scmp.lt.s32.totalorder %s18, 1
      %s187 = scalar_select %p186, %s18, 1
      %p188 = scmp.lt.s32.totalorder %s19, 0
      %s189 = scalar_select %p188, %s19, 0
      %s190 = smul.addr %s187, 9
      %s191 = sadd.s32 %s189, %s190
      %s192 = smul.addr %s191, 4
      %s193 = scalar_lea.vmem %s0, %s192
      %p194 = scmp.lt.s32.totalorder %s18, 1
      %s195 = scalar_select %p194, %s18, 1
      %p196 = scmp.lt.s32.totalorder %s19, 0
      %s197 = scalar_select %p196, %s19, 0
      %s198 = smul.addr %s195, 2
      %s199 = sadd.s32 %s197, %s198
      %s200 = smul.addr %s199, 8
      %s201 = scalar_lea.vmem %s3, %s200
      %v203 = vld [vmem:[%s1] sm:$0xf]
      %v204 = vld [vmem:[%s1 + $0x4] sm:$0xf]
      %v205 = vld [vmem:[%s193] sm:$0xf]
      %v206 = vld [vmem:[%s193 + $0x4] sm:$0xf]
      %v207 = vld [vmem:[%s193 + $0x8] sm:$0xf]
      %v208 = vld [vmem:[%s193 + $0xc] sm:$0xf]
      %v209 = vld [vmem:[%s193 + $0x10] sm:$0xf]
      %v210 = vld [vmem:[%s193 + $0x14] sm:$0xf]
      %v211 = vld [vmem:[%s193 + $0x18] sm:$0xf]
      %v212 = vld [vmem:[%s193 + $0x1c] sm:$0xf]
      %v213 = vld [vmem:[%s193 + $0x20] sm:$0xf]
      %v214 = vld [vmem:[%s2] sm:$0xff]
      %v215 = vld [vmem:[%s2 + $0x8] sm:$0xff]
      %217 = vset.pattern.permute.xlu0 0
      %218 = vperm.xlu0 %217, %v214
      %v219 = vpop.permute.xlu0 %218
      %222 = vset.pattern.permute.xlu0 0
      %223 = vperm.xlu0 %222, %v215
      %v224 = vpop.permute.xlu0 %223
      %v228 = vunpack.c.l.b16 %v203
      %v229 = vunpack.c.l.b16 %v204
      %v230 = vpack.c.b16 %v229, %v228
      %v240 = vunpack.c.l.b16 %v205
      %v241 = vunpack.c.l.b16 %v206
      %v242 = vunpack.c.l.b16 %v207
      %v243 = vunpack.c.l.b16 %v208
      %v244 = vunpack.c.l.b16 %v209
      %v245 = vunpack.c.l.b16 %v210
      %v246 = vunpack.c.l.b16 %v211
      %v247 = vunpack.c.l.b16 %v212
      %v248 = vunpack.c.l.b16 %v213
      %v249 = vpack.c.b16 %v241, %v240
      %v250 = vpack.c.b16 %v243, %v242
      %v251 = vpack.c.b16 %v245, %v244
      %v252 = vpack.c.b16 %v247, %v246
      %v253 = vpack.c.b16 %v248, %v248
      %vm258 = vcmask 588800
      %v260 = vsel %vm258, %v230, 0
      %vm262 = vcmask 1043456
      %v264 = vsel %vm262, %v253, 0
      %266 = vmatprep.subr.bf16.mxu0 0
      %267 = vmatpush1.bf16.msra.mxu0 0
      %268 = vmatprep.subr.bf16.mxu0 0
      %269 = vmatpush1.bf16.msra.mxu0 0
      %270 = vmatprep.subr.bf16.mxu0 0
      %271 = vmatpush1.bf16.msra.mxu0 0
      %272 = vmatprep.subr.bf16.mxu0 0
      %273 = vmatpush1.bf16.msra.mxu0 %v264
      %274 = vmatprep.subr.bf16.mxu0 0
      %275 = vmatpush1.bf16.msra.mxu0 %v252
      %276 = vmatprep.subr.bf16.mxu0 0
      %277 = vmatpush1.bf16.msra.mxu0 %v251
      %278 = vmatprep.subr.bf16.mxu0 0
      %279 = vmatpush1.bf16.msra.mxu0 %v250
      %280 = vmatprep.subr.bf16.mxu0 0
      %281 = vmatpush1.bf16.msra.mxu0 %v249
      %282 = vmatprep.subr.bf16.mxu0 0
      %283 = vmatpush2.bf16.msra.mxu0 0
      %284 = vmatprep.subr.bf16.mxu0 0
      %285 = vmatpush2.bf16.msra.mxu0 0
      %286 = vmatprep.subr.bf16.mxu0 0
      %287 = vmatpush2.bf16.msra.mxu0 0
      %288 = vmatprep.subr.bf16.mxu0 0
      %289 = vmatpush2.bf16.msra.mxu0 0
      %290 = vmatprep.subr.bf16.mxu0 0
      %291 = vmatpush2.bf16.msra.mxu0 0
      %292 = vmatprep.subr.bf16.mxu0 0
      %293 = vmatpush2.bf16.msra.mxu0 0
      %294 = vmatprep.subr.bf16.mxu0 0
      %295 = vmatpush2.bf16.msra.mxu0 0
      %296 = vmatprep.subr.bf16.mxu0 0
      %297 = vmatpush2.bf16.msra.mxu0 0
      %298 = vmatprep.mubr.bf16.mxu0 0
      %299 = vmatmul.mubr.bf16.gmra.mxu0 %v260
      %v300 = vpop.f32.mrf.mxu0
      %v301 = vadd.f32 %v219, %v300
      %v302 = vpop.f32.mrf.mxu0
      %v303 = vpop.f32.mrf.mxu0
      %v304 = vadd.f32 %v224, %v303
      %v305 = vpop.f32.mrf.mxu0
      %306 = vdwg.mxu0
      %vm307 = vcmp.ge.f32.partialorder %v301, 0.0
      %vm308 = vcmp.ge.f32.partialorder %v304, 0.0
      %v309 = vmul.f32 %v301, 0.01
      %v310 = vmul.f32 %v304, 0.01
      %v311 = vsel %vm307, %v301, %v309
      %v312 = vsel %vm308, %v304, %v310
      %313 = vst [vmem:[%s201] sm:$0xff] %v311
      %314 = vst [vmem:[%s201 + $0x8] sm:$0xff] %v312
      %p315 = scmp.lt.s32.totalorder %s18, 1
      %s316 = scalar_select %p315, %s18, 1
      %p317 = scmp.lt.s32.totalorder %s19, 0
      %s318 = scalar_select %p317, %s19, 0
      %s319 = smul.addr %s316, 2
      %s320 = sadd.s32 %s318, %s319
      %s321 = smul.addr %s320, 8
      %s322 = scalar_lea.vmem %s3, %s321
      // Predicated region
      $region33: #{fcn_forward.11} parent=31 // pred_check
        %p323 = pneg %p116
      $region34: #{fcn_forward.11} parent=31 // pred_check_branch
        %325 = sbr.rel (%p323) target = $region36
      $region35: #{fcn_forward.11} parent=31 // pred_region
        _
      $region36: #{fcn_forward.11} parent=31 // pred_fallthru
        _
    $region32: #{fcn_forward.11} parent=5 // pred_fallthru
      _
    %p326 = scmp.le.s32.totalorder 2, %s9
    // Predicated region
    $region37: #{fcn_forward.11} parent=5 // pred_check
      %p327 = pneg %p326
    $region38: #{fcn_forward.11} parent=5 // pred_check_branch
      %329 = sbr.rel (%p327) target = $region40
    $region39: #{fcn_forward.11} parent=5 // pred_region
      %s330 = ssub.s32 %s9, 2
      // Predicated region
      $region41: #{fcn_forward.11} parent=39 // pred_check
        %p331 = pneg %p122
      $region42: #{fcn_forward.11} parent=39 // pred_check_branch
        %333 = sbr.rel (%p331) target = $region44
      $region43: #{fcn_forward.11} parent=39 // pred_region
        %p334 = scmp.lt.s32.totalorder %s20, 1
        %s335 = scalar_select %p334, %s20, 1
        %p336 = scmp.lt.s32.totalorder %s21, 0
        %s337 = scalar_select %p336, %s21, 0
        %s338 = smul.addr %s335, 2
        %s339 = sadd.s32 %s337, %s338
        %s340 = smul.addr %s339, 8
        %s341 = scalar_lea.vmem %s3, %s340
      $region44: #{fcn_forward.11} parent=39 // pred_fallthru
        _
    $region40: #{fcn_forward.11} parent=5 // pred_fallthru
      _
  $region6: #{fcn_forward.11} parent=0 // loop_footer
    %s13 = sadd.s32 1, %s9
  $region7: #{fcn_forward.11} parent=0 // loop_footer_branch
    %8 = sbr.rel target = $region3
  $region8: #{fcn_forward.11} parent=0 // loop_exit
    _

// kernel: fcn_forward.13
$region0: #{fcn_forward.13}
  #allocation0 [shape = 'u32[]', space=smem, size = 0x4, offset = 0x4, fixed_abs, tag = 'smem constant byte address 0x4 - core index']
  #allocation1 [shape = 'u32[144,128]{1,0:T(1,128)}', space=vmem, size = 0x12000, scoped, tag = 'internal scratch']
  %s0 = inlined_call_operand.vmem [shape: bf16[2,144,128], index: 0, kind: input, shape index: {}]
  %s1 = inlined_call_operand.vmem [shape: bf16[32,144], index: 1, kind: input, shape index: {}]
  %s2 = inlined_call_operand.vmem [shape: f32[32,1], index: 2, kind: input, shape index: {}]
  %s3 = inlined_call_operand.vmem [shape: f32[2,32,128], index: 3, kind: output, shape index: {}]
  %s4 = sld [smem:[#allocation0]]
  $region45: #{fcn_forward.13} parent=0
    _
  %s6 = ssub.s32 1, %s4
  %s7 = scalar_select 0, %s6, %s4
  loop: start=0, step=1, limit=4
  $region2: #{fcn_forward.13} parent=0 // loop_pre_header
    _
  $region3: #{fcn_forward.13} parent=0 // loop_header
    %s9 = sphi 0, %s13
    %p10 = scmp.ge.s32.totalorder %s9, 4
    %s16 = sphi 0, %s28
    %s17 = sphi 0, %s24
    %s18 = sphi 0, %s16
    %s19 = sphi 0, %s17
    %s20 = sphi 0, %s18
    %s21 = sphi 0, %s19
    %s33 = sphi 0, %s35
    %s36 = sphi 0, %s33
    %s37 = sphi 0, %s36
    %s53 = sphi 0, %s37
    %s57 = sphi 0, %s57
    %s59 = sphi 0, %s57
    %s60 = sphi 0, %s59
    %s74 = sphi 0, %s60
    %s78 = sphi 0, %s78
    %s80 = sphi 0, %s78
    %s81 = sphi 0, %s80
    %s95 = sphi 0, %s81
    %s103 = sphi 0, %s105
    %s106 = sphi 0, %s103
    %s107 = sphi 0, %s106
    %s123 = sphi 0, %s107
  $region4: #{fcn_forward.13} parent=0 // loop_header_branch
    %12 = sbr.rel (%p10) target = $region8
  $region5: #{fcn_forward.13} parent=0 // loop_body
    %s14 = ssub.s32 %s9, 1
    %s15 = ssub.s32 %s9, 2
    %s22 = sadd.s32 1, %s17
    %p23 = scmp.ge.s32.totalorder %s22, 1
    %s24 = scalar_select %p23, 0, %s22
    %s25 = sadd.s32 1, %s16
    %s26 = scalar_select %p23, %s25, %s16
    %p27 = scmp.ge.s32.totalorder %s26, 2
    %s28 = scalar_select %p27, 0, %s26
    %s29 = ssub.s32 %s16, %s28
    %s30 = ssub.s32 %s17, %s24
    %s31 = sor.u32 %s29, %s30
    %p32 = scmp.eq.s32.totalorder %s31, 0
    %s34 = sadd.s32 %s33, 1
    %s35 = scalar_select %p32, %s33, %s34
    %p38 = pneg %p32
    %p39 = scmp.eq.s32.totalorder %s9, 1
    %p40 = por %p38, %p39
    %p41 = scmp.ne.s32.totalorder %s33, %s36
    %p42 = scmp.eq.s32.totalorder %s9, 0
    %p43 = por %p41, %p42
    %p44 = scmp.ne.s32.totalorder %s33, %s36
    %p45 = scmp.eq.s32.totalorder %s14, 1
    %p46 = por %p44, %p45
    %p47 = scmp.ne.s32.totalorder %s36, %s37
    %p48 = scmp.eq.s32.totalorder %s14, 0
    %p49 = por %p47, %p48
    %p50 = scmp.ne.s32.totalorder %s36, %s37
    %p51 = scmp.eq.s32.totalorder %s15, 1
    %p52 = por %p50, %p51
    %p54 = scmp.ne.s32.totalorder %s37, %s53
    %p55 = scmp.eq.s32.totalorder %s15, 0
    %p56 = por %p54, %p55
    %s58 = sadd.s32 %s57, 1
    %p61 = scmp.eq.s32.totalorder %s9, 1
    %p62 = scmp.ne.s32.totalorder %s57, %s59
    %p63 = scmp.eq.s32.totalorder %s9, 0
    %p64 = por %p62, %p63
    %p65 = scmp.ne.s32.totalorder %s57, %s59
    %p66 = scmp.eq.s32.totalorder %s14, 1
    %p67 = por %p65, %p66
    %p68 = scmp.ne.s32.totalorder %s59, %s60
    %p69 = scmp.eq.s32.totalorder %s14, 0
    %p70 = por %p68, %p69
    %p71 = scmp.ne.s32.totalorder %s59, %s60
    %p72 = scmp.eq.s32.totalorder %s15, 1
    %p73 = por %p71, %p72
    %p75 = scmp.ne.s32.totalorder %s60, %s74
    %p76 = scmp.eq.s32.totalorder %s15, 0
    %p77 = por %p75, %p76
    %s79 = sadd.s32 %s78, 1
    %p82 = scmp.eq.s32.totalorder %s9, 1
    %p83 = scmp.ne.s32.totalorder %s78, %s80
    %p84 = scmp.eq.s32.totalorder %s9, 0
    %p85 = por %p83, %p84
    %p86 = scmp.ne.s32.totalorder %s78, %s80
    %p87 = scmp.eq.s32.totalorder %s14, 1
    %p88 = por %p86, %p87
    %p89 = scmp.ne.s32.totalorder %s80, %s81
    %p90 = scmp.eq.s32.totalorder %s14, 0
    %p91 = por %p89, %p90
    %p92 = scmp.ne.s32.totalorder %s80, %s81
    %p93 = scmp.eq.s32.totalorder %s15, 1
    %p94 = por %p92, %p93
    %p96 = scmp.ne.s32.totalorder %s81, %s95
    %p97 = scmp.eq.s32.totalorder %s15, 0
    %p98 = por %p96, %p97
    %s99 = ssub.s32 %s16, %s28
    %s100 = ssub.s32 %s17, %s24
    %s101 = sor.u32 %s99, %s100
    %p102 = scmp.eq.s32.totalorder %s101, 0
    %s104 = sadd.s32 %s103, 1
    %s105 = scalar_select %p102, %s103, %s104
    %p108 = pneg %p102
    %p109 = scmp.eq.s32.totalorder %s9, 1
    %p110 = por %p108, %p109
    %p111 = scmp.ne.s32.totalorder %s103, %s106
    %p112 = scmp.eq.s32.totalorder %s9, 0
    %p113 = por %p111, %p112
    %p114 = scmp.ne.s32.totalorder %s103, %s106
    %p115 = scmp.eq.s32.totalorder %s14, 1
    %p116 = por %p114, %p115
    %p117 = scmp.ne.s32.totalorder %s106, %s107
    %p118 = scmp.eq.s32.totalorder %s14, 0
    %p119 = por %p117, %p118
    %p120 = scmp.ne.s32.totalorder %s106, %s107
    %p121 = scmp.eq.s32.totalorder %s15, 1
    %p122 = por %p120, %p121
    %p124 = scmp.ne.s32.totalorder %s107, %s123
    %p125 = scmp.eq.s32.totalorder %s15, 0
    %p126 = por %p124, %p125
    %p127 = scmp.le.s32.totalorder 1, %s9
    %p128 = scmp.lt.s32.totalorder %s9, 3
    %p129 = pnand %p127, %p128
    %p130 = pneg %p129
    // Predicated region
    $region9: #{fcn_forward.13} parent=5 // pred_check
      _
    $region10: #{fcn_forward.13} parent=5 // pred_check_branch
      %132 = sbr.rel (%p129) target = $region12
    $region11: #{fcn_forward.13} parent=5 // pred_region
      %s133 = ssub.s32 %s9, 1
      // Predicated region
      $region13: #{fcn_forward.13} parent=11 // pred_check
        %p134 = pneg %p70
      $region14: #{fcn_forward.13} parent=11 // pred_check_branch
        %136 = sbr.rel (%p134) target = $region16
      $region15: #{fcn_forward.13} parent=11 // pred_region
        _
      $region16: #{fcn_forward.13} parent=11 // pred_fallthru
        _
      // Predicated region
      $region17: #{fcn_forward.13} parent=11 // pred_check
        %p137 = pneg %p91
      $region18: #{fcn_forward.13} parent=11 // pred_check_branch
        %139 = sbr.rel (%p137) target = $region20
      $region19: #{fcn_forward.13} parent=11 // pred_region
        _
      $region20: #{fcn_forward.13} parent=11 // pred_fallthru
        _
    $region12: #{fcn_forward.13} parent=5 // pred_fallthru
      _
    %p140 = scmp.lt.s32.totalorder %s9, 2
    // Predicated region
    $region21: #{fcn_forward.13} parent=5 // pred_check
      %p141 = pneg %p140
    $region22: #{fcn_forward.13} parent=5 // pred_check_branch
      %143 = sbr.rel (%p141) target = $region24
    $region23: #{fcn_forward.13} parent=5 // pred_region
      // Predicated region
      $region25: #{fcn_forward.13} parent=23 // pred_check
        %p144 = pneg %p43
      $region26: #{fcn_forward.13} parent=23 // pred_check_branch
        %146 = sbr.rel (%p144) target = $region28
      $region27: #{fcn_forward.13} parent=23 // pred_region
        %p147 = scmp.lt.s32.totalorder %s16, 1
        %s148 = scalar_select %p147, %s16, 1
        %p149 = scmp.lt.s32.totalorder %s17, 0
        %s150 = scalar_select %p149, %s17, 0
        %s151 = smul.addr %s148, 18
        %s152 = sadd.s32 %s150, %s151
        %s153 = smul.addr %s152, 4
        %s154 = scalar_lea.vmem %s0, %s153
      $region28: #{fcn_forward.13} parent=23 // pred_fallthru
        _
    $region24: #{fcn_forward.13} parent=5 // pred_fallthru
      _
    %p155 = scmp.le.s32.totalorder 1, %s9
    %p156 = scmp.lt.s32.totalorder %s9, 3
    %p157 = pnand %p155, %p156
    %p158 = pneg %p157
    // Predicated region
    $region29: #{fcn_forward.13} parent=5 // pred_check
      _
    $region30: #{fcn_forward.13} parent=5 // pred_check_branch
      %160 = sbr.rel (%p157) target = $region32
    $region31: #{fcn_forward.13} parent=5 // pred_region
      %s161 = ssub.s32 %s9, 1
      %p162 = scmp.lt.s32.totalorder %s18, 1
      %s163 = scalar_select %p162, %s18, 1
      %p164 = scmp.lt.s32.totalorder %s19, 0
      %s165 = scalar_select %p164, %s19, 0
      %s166 = smul.addr %s163, 18
      %s167 = sadd.s32 %s165, %s166
      %s168 = smul.addr %s167, 4
      %s169 = scalar_lea.vmem %s0, %s168
      %p170 = pneg %p49
      %p171 = pneg %p46
      %p172 = pneg %p70
      %p173 = pneg %p67
      %p174 = pneg %p91
      %p175 = pneg %p88
      %p176 = pneg %p119
      %p177 = pneg %p116
      %p178 = scmp.lt.s32.totalorder %s18, 1
      %s179 = scalar_select %p178, %s18, 1
      %p180 = scmp.lt.s32.totalorder %s19, 0
      %s181 = scalar_select %p180, %s19, 0
      %s182 = smul.addr %s179, 4
      %s183 = sadd.s32 %s181, %s182
      %s184 = smul.addr %s183, 8
      %s185 = scalar_lea.vmem %s3, %s184
      %p186 = scmp.lt.s32.totalorder %s18, 1
      %s187 = scalar_select %p186, %s18, 1
      %p188 = scmp.lt.s32.totalorder %s19, 0
      %s189 = scalar_select %p188, %s19, 0
      %s190 = smul.addr %s187, 18
      %s191 = sadd.s32 %s189, %s190
      %s192 = smul.addr %s191, 4
      %s193 = scalar_lea.vmem %s0, %s192
      %p194 = scmp.lt.s32.totalorder %s18, 1
      %s195 = scalar_select %p194, %s18, 1
      %p196 = scmp.lt.s32.totalorder %s19, 0
      %s197 = scalar_select %p196, %s19, 0
      %s198 = smul.addr %s195, 4
      %s199 = sadd.s32 %s197, %s198
      %s200 = smul.addr %s199, 8
      %s201 = scalar_lea.vmem %s3, %s200
      %v203 = vld [vmem:[%s1] sm:$0xff]
      %v204 = vld [vmem:[%s1 + $0x8] sm:$0xff]
      %v205 = vld [vmem:[%s1 + $0x10] sm:$0xff]
      %v206 = vld [vmem:[%s1 + $0x18] sm:$0xff]
      %v207 = vld [vmem:[%s193] sm:$0xf]
      %v208 = vld [vmem:[%s193 + $0x4] sm:$0xf]
      %v209 = vld [vmem:[%s193 + $0x8] sm:$0xf]
      %v210 = vld [vmem:[%s193 + $0xc] sm:$0xf]
      %v211 = vld [vmem:[%s193 + $0x10] sm:$0xf]
      %v212 = vld [vmem:[%s193 + $0x14] sm:$0xf]
      %v213 = vld [vmem:[%s193 + $0x18] sm:$0xf]
      %v214 = vld [vmem:[%s193 + $0x1c] sm:$0xf]
      %v215 = vld [vmem:[%s193 + $0x20] sm:$0xf]
      %v216 = vld [vmem:[%s193 + $0x24] sm:$0xf]
      %v217 = vld [vmem:[%s193 + $0x28] sm:$0xf]
      %v218 = vld [vmem:[%s193 + $0x2c] sm:$0xf]
      %v219 = vld [vmem:[%s193 + $0x30] sm:$0xf]
      %v220 = vld [vmem:[%s193 + $0x34] sm:$0xf]
      %v221 = vld [vmem:[%s193 + $0x38] sm:$0xf]
      %v222 = vld [vmem:[%s193 + $0x3c] sm:$0xf]
      %v223 = vld [vmem:[%s193 + $0x40] sm:$0xf]
      %v224 = vld [vmem:[%s193 + $0x44] sm:$0xf]
      %v225 = vld [vmem:[%s2] sm:$0xff]
      %v226 = vld [vmem:[%s2 + $0x8] sm:$0xff]
      %v227 = vld [vmem:[%s2 + $0x10] sm:$0xff]
      %v228 = vld [vmem:[%s2 + $0x18] sm:$0xff]
      %230 = vset.pattern.permute.xlu0 0
      %231 = vperm.xlu0 %230, %v225
      %v232 = vpop.permute.xlu0 %231
      %235 = vset.pattern.permute.xlu0 0
      %236 = vperm.xlu0 %235, %v226
      %v237 = vpop.permute.xlu0 %236
      %240 = vset.pattern.permute.xlu0 0
      %241 = vperm.xlu0 %240, %v227
      %v242 = vpop.permute.xlu0 %241
      %245 = vset.pattern.permute.xlu0 0
      %246 = vperm.xlu0 %245, %v228
      %v247 = vpop.permute.xlu0 %246
      %v253 = vunpack.c.l.b16 %v203
      %v254 = vunpack.c.h.b16 %v203
      %v255 = vunpack.c.l.b16 %v204
      %v256 = vunpack.c.h.b16 %v204
      %v257 = vunpack.c.l.b16 %v205
      %v258 = vunpack.c.h.b16 %v205
      %v259 = vunpack.c.l.b16 %v206
      %v260 = vunpack.c.h.b16 %v206
      %v261 = vpack.c.b16 %v255, %v253
      %v262 = vpack.c.b16 %v256, %v254
      %v263 = vpack.c.b16 %v259, %v257
      %v264 = vpack.c.b16 %v260, %v258
      %v285 = vunpack.c.l.b16 %v207
      %v286 = vunpack.c.l.b16 %v208
      %v287 = vunpack.c.l.b16 %v209
      %v288 = vunpack.c.l.b16 %v210
      %v289 = vunpack.c.l.b16 %v211
      %v290 = vunpack.c.l.b16 %v212
      %v291 = vunpack.c.l.b16 %v213
      %v292 = vunpack.c.l.b16 %v214
      %v293 = vunpack.c.l.b16 %v215
      %v294 = vunpack.c.l.b16 %v216
      %v295 = vunpack.c.l.b16 %v217
      %v296 = vunpack.c.l.b16 %v218
      %v297 = vunpack.c.l.b16 %v219
      %v298 = vunpack.c.l.b16 %v220
      %v299 = vunpack.c.l.b16 %v221
      %v300 = vunpack.c.l.b16 %v222
      %v301 = vunpack.c.l.b16 %v223
      %v302 = vunpack.c.l.b16 %v224
      %v303 = vpack.c.b16 %v286, %v285
      %v304 = vpack.c.b16 %v288, %v287
      %v305 = vpack.c.b16 %v290, %v289
      %v306 = vpack.c.b16 %v292, %v291
      %v307 = vpack.c.b16 %v294, %v293
      %v308 = vpack.c.b16 %v296, %v295
      %v309 = vpack.c.b16 %v298, %v297
      %v310 = vpack.c.b16 %v300, %v299
      %v311 = vpack.c.b16 %v302, %v301
      %vm321 = vcmask 130048
      %v323 = vsel %vm321, %v262, 0
      %v326 = vsel %vm321, %v264, 0
      %328 = vmatprep.subr.bf16.mxu0 0
      %329 = vmatpush1.bf16.msra.mxu0 %v310
      %330 = vmatprep.subr.bf16.mxu0 0
      %331 = vmatpush1.bf16.msra.mxu0 %v309
      %332 = vmatprep.subr.bf16.mxu0 0
      %333 = vmatpush1.bf16.msra.mxu0 %v308
      %334 = vmatprep.subr.bf16.mxu0 0
      %335 = vmatpush1.bf16.msra.mxu0 %v307
      %336 = vmatprep.subr.bf16.mxu0 0
      %337 = vmatpush1.bf16.msra.mxu0 %v306
      %338 = vmatprep.subr.bf16.mxu0 0
      %339 = vmatpush1.bf16.msra.mxu0 %v305
      %340 = vmatprep.subr.bf16.mxu0 0
      %341 = vmatpush1.bf16.msra.mxu0 %v304
      %342 = vmatprep.subr.bf16.mxu0 0
      %343 = vmatpush1.bf16.msra.mxu0 %v303
      %344 = vmatprep.subr.bf16.mxu0 0
      %345 = vmatpush2.bf16.msra.mxu0 0
      %346 = vmatprep.subr.bf16.mxu0 0
      %347 = vmatpush2.bf16.msra.mxu0 0
      %348 = vmatprep.subr.bf16.mxu0 0
      %349 = vmatpush2.bf16.msra.mxu0 0
      %350 = vmatprep.subr.bf16.mxu0 0
      %351 = vmatpush2.bf16.msra.mxu0 0
      %352 = vmatprep.subr.bf16.mxu0 0
      %353 = vmatpush2.bf16.msra.mxu0 0
      %354 = vmatprep.subr.bf16.mxu0 0
      %355 = vmatpush2.bf16.msra.mxu0 0
      %356 = vmatprep.subr.bf16.mxu0 0
      %357 = vmatpush2.bf16.msra.mxu0 0
      %358 = vmatprep.subr.bf16.mxu0 0
      %359 = vmatpush2.bf16.msra.mxu0 %v311
      %360 = vmatprep.mubr.bf16.mxu0 %v323
      %361 = vmatmul.mubr.bf16.gmra.mxu0 %v261
      %v362 = vpop.f32.mrf.mxu0
      %v363 = vadd.f32 %v232, %v362
      %v364 = vpop.f32.mrf.mxu0
      %v365 = vpop.f32.mrf.mxu0
      %v366 = vadd.f32 %v237, %v365
      %v367 = vpop.f32.mrf.mxu0
      %368 = vmatprep.mubr.bf16.mxu0 %v326
      %369 = vmatmul.mubr.bf16.gmra.mxu0 %v263
      %v370 = vpop.f32.mrf.mxu0
      %v371 = vadd.f32 %v242, %v370
      %v372 = vpop.f32.mrf.mxu0
      %v373 = vpop.f32.mrf.mxu0
      %v374 = vadd.f32 %v247, %v373
      %v375 = vpop.f32.mrf.mxu0
      %376 = vdwg.mxu0
      %vm377 = vcmp.ge.f32.partialorder %v363, 0.0
      %vm378 = vcmp.ge.f32.partialorder %v366, 0.0
      %vm379 = vcmp.ge.f32.partialorder %v371, 0.0
      %vm380 = vcmp.ge.f32.partialorder %v374, 0.0
      %v381 = vmul.f32 %v363, 0.01
      %v382 = vmul.f32 %v366, 0.01
      %v383 = vmul.f32 %v371, 0.01
      %v384 = vmul.f32 %v374, 0.01
      %v385 = vsel %vm377, %v363, %v381
      %v386 = vsel %vm378, %v366, %v382
      %v387 = vsel %vm379, %v371, %v383
      %v388 = vsel %vm380, %v374, %v384
      %389 = vst [vmem:[%s201] sm:$0xff] %v385
      %390 = vst [vmem:[%s201 + $0x8] sm:$0xff] %v386
      %391 = vst [vmem:[%s201 + $0x10] sm:$0xff] %v387
      %392 = vst [vmem:[%s201 + $0x18] sm:$0xff] %v388
      %p393 = scmp.lt.s32.totalorder %s18, 1
      %s394 = scalar_select %p393, %s18, 1
      %p395 = scmp.lt.s32.totalorder %s19, 0
      %s396 = scalar_select %p395, %s19, 0
      %s397 = smul.addr %s394, 4
      %s398 = sadd.s32 %s396, %s397
      %s399 = smul.addr %s398, 8
      %s400 = scalar_lea.vmem %s3, %s399
      // Predicated region
      $region33: #{fcn_forward.13} parent=31 // pred_check
        %p401 = pneg %p116
      $region34: #{fcn_forward.13} parent=31 // pred_check_branch
        %403 = sbr.rel (%p401) target = $region36
      $region35: #{fcn_forward.13} parent=31 // pred_region
        _
      $region36: #{fcn_forward.13} parent=31 // pred_fallthru
        _
    $region32: #{fcn_forward.13} parent=5 // pred_fallthru
      _
    %p404 = scmp.le.s32.totalorder 2, %s9
    // Predicated region
    $region37: #{fcn_forward.13} parent=5 // pred_check
      %p405 = pneg %p404
    $region38: #{fcn_forward.13} parent=5 // pred_check_branch
      %407 = sbr.rel (%p405) target = $region40
    $region39: #{fcn_forward.13} parent=5 // pred_region
      %s408 = ssub.s32 %s9, 2
      // Predicated region
      $region41: #{fcn_forward.13} parent=39 // pred_check
        %p409 = pneg %p122
      $region42: #{fcn_forward.13} parent=39 // pred_check_branch
        %411 = sbr.rel (%p409) target = $region44
      $region43: #{fcn_forward.13} parent=39 // pred_region
        %p412 = scmp.lt.s32.totalorder %s20, 1
        %s413 = scalar_select %p412, %s20, 1
        %p414 = scmp.lt.s32.totalorder %s21, 0
        %s415 = scalar_select %p414, %s21, 0
        %s416 = smul.addr %s413, 4
        %s417 = sadd.s32 %s415, %s416
        %s418 = smul.addr %s417, 8
        %s419 = scalar_lea.vmem %s3, %s418
      $region44: #{fcn_forward.13} parent=39 // pred_fallthru
        _
    $region40: #{fcn_forward.13} parent=5 // pred_fallthru
      _
  $region6: #{fcn_forward.13} parent=0 // loop_footer
    %s13 = sadd.s32 1, %s9
  $region7: #{fcn_forward.13} parent=0 // loop_footer_branch
    %8 = sbr.rel target = $region3
  $region8: #{fcn_forward.13} parent=0 // loop_exit
    _

// kernel: fcn_forward.12
$region0: #{fcn_forward.12}
  #allocation0 [shape = 'u32[]', space=smem, size = 0x4, offset = 0x4, fixed_abs, tag = 'smem constant byte address 0x4 - core index']
  #allocation1 [shape = 'u32[144,128]{1,0:T(1,128)}', space=vmem, size = 0x12000, scoped, tag = 'internal scratch']
  %s0 = inlined_call_operand.vmem [shape: f32[2,9,16,128], index: 0, kind: input, shape index: {}]
  %s1 = inlined_call_operand.vmem [shape: f32[9,1,128], index: 1, kind: input, shape index: {}]
  %s2 = inlined_call_operand.vmem [shape: f32[2,16,128], index: 2, kind: output, shape index: {}]
  %s3 = sld [smem:[#allocation0]]
  $region41: #{fcn_forward.12} parent=0
    _
  %s5 = ssub.s32 1, %s3
  %s6 = scalar_select 0, %s5, %s3
  loop: start=0, step=1, limit=4
  $region2: #{fcn_forward.12} parent=0 // loop_pre_header
    _
  $region3: #{fcn_forward.12} parent=0 // loop_header
    %s8 = sphi 0, %s12
    %p9 = scmp.ge.s32.totalorder %s8, 4
    %s15 = sphi 0, %s27
    %s16 = sphi 0, %s23
    %s17 = sphi 0, %s15
    %s18 = sphi 0, %s16
    %s19 = sphi 0, %s17
    %s20 = sphi 0, %s18
    %s32 = sphi 0, %s34
    %s35 = sphi 0, %s32
    %s36 = sphi 0, %s35
    %s52 = sphi 0, %s36
    %s58 = sphi 0, %s60
    %s61 = sphi 0, %s58
    %s62 = sphi 0, %s61
    %s78 = sphi 0, %s62
    %s86 = sphi 0, %s88
    %s89 = sphi 0, %s86
    %s90 = sphi 0, %s89
    %s106 = sphi 0, %s90
  $region4: #{fcn_forward.12} parent=0 // loop_header_branch
    %11 = sbr.rel (%p9) target = $region8
  $region5: #{fcn_forward.12} parent=0 // loop_body
    %s13 = ssub.s32 %s8, 1
    %s14 = ssub.s32 %s8, 2
    %s21 = sadd.s32 1, %s16
    %p22 = scmp.ge.s32.totalorder %s21, 1
    %s23 = scalar_select %p22, 0, %s21
    %s24 = sadd.s32 1, %s15
    %s25 = scalar_select %p22, %s24, %s15
    %p26 = scmp.ge.s32.totalorder %s25, 2
    %s27 = scalar_select %p26, 0, %s25
    %s28 = ssub.s32 %s15, %s27
    %s29 = ssub.s32 %s16, %s23
    %s30 = sor.u32 %s28, %s29
    %p31 = scmp.eq.s32.totalorder %s30, 0
    %s33 = sadd.s32 %s32, 1
    %s34 = scalar_select %p31, %s32, %s33
    %p37 = pneg %p31
    %p38 = scmp.eq.s32.totalorder %s8, 1
    %p39 = por %p37, %p38
    %p40 = scmp.ne.s32.totalorder %s32, %s35
    %p41 = scmp.eq.s32.totalorder %s8, 0
    %p42 = por %p40, %p41
    %p43 = scmp.ne.s32.totalorder %s32, %s35
    %p44 = scmp.eq.s32.totalorder %s13, 1
    %p45 = por %p43, %p44
    %p46 = scmp.ne.s32.totalorder %s35, %s36
    %p47 = scmp.eq.s32.totalorder %s13, 0
    %p48 = por %p46, %p47
    %p49 = scmp.ne.s32.totalorder %s35, %s36
    %p50 = scmp.eq.s32.totalorder %s14, 1
    %p51 = por %p49, %p50
    %p53 = scmp.ne.s32.totalorder %s36, %s52
    %p54 = scmp.eq.s32.totalorder %s14, 0
    %p55 = por %p53, %p54
    %s56 = ssub.s32 %s16, %s23
    %p57 = scmp.eq.s32.totalorder %s56, 0
    %s59 = sadd.s32 %s58, 1
    %s60 = scalar_select %p57, %s58, %s59
    %p63 = pneg %p57
    %p64 = scmp.eq.s32.totalorder %s8, 1
    %p65 = por %p63, %p64
    %p66 = scmp.ne.s32.totalorder %s58, %s61
    %p67 = scmp.eq.s32.totalorder %s8, 0
    %p68 = por %p66, %p67
    %p69 = scmp.ne.s32.totalorder %s58, %s61
    %p70 = scmp.eq.s32.totalorder %s13, 1
    %p71 = por %p69, %p70
    %p72 = scmp.ne.s32.totalorder %s61, %s62
    %p73 = scmp.eq.s32.totalorder %s13, 0
    %p74 = por %p72, %p73
    %p75 = scmp.ne.s32.totalorder %s61, %s62
    %p76 = scmp.eq.s32.totalorder %s14, 1
    %p77 = por %p75, %p76
    %p79 = scmp.ne.s32.totalorder %s62, %s78
    %p80 = scmp.eq.s32.totalorder %s14, 0
    %p81 = por %p79, %p80
    %s82 = ssub.s32 %s15, %s27
    %s83 = ssub.s32 %s16, %s23
    %s84 = sor.u32 %s82, %s83
    %p85 = scmp.eq.s32.totalorder %s84, 0
    %s87 = sadd.s32 %s86, 1
    %s88 = scalar_select %p85, %s86, %s87
    %p91 = pneg %p85
    %p92 = scmp.eq.s32.totalorder %s8, 1
    %p93 = por %p91, %p92
    %p94 = scmp.ne.s32.totalorder %s86, %s89
    %p95 = scmp.eq.s32.totalorder %s8, 0
    %p96 = por %p94, %p95
    %p97 = scmp.ne.s32.totalorder %s86, %s89
    %p98 = scmp.eq.s32.totalorder %s13, 1
    %p99 = por %p97, %p98
    %p100 = scmp.ne.s32.totalorder %s89, %s90
    %p101 = scmp.eq.s32.totalorder %s13, 0
    %p102 = por %p100, %p101
    %p103 = scmp.ne.s32.totalorder %s89, %s90
    %p104 = scmp.eq.s32.totalorder %s14, 1
    %p105 = por %p103, %p104
    %p107 = scmp.ne.s32.totalorder %s90, %s106
    %p108 = scmp.eq.s32.totalorder %s14, 0
    %p109 = por %p107, %p108
    %p110 = scmp.le.s32.totalorder 1, %s8
    %p111 = scmp.lt.s32.totalorder %s8, 3
    %p112 = pnand %p110, %p111
    %p113 = pneg %p112
    // Predicated region
    $region9: #{fcn_forward.12} parent=5 // pred_check
      _
    $region10: #{fcn_forward.12} parent=5 // pred_check_branch
      %115 = sbr.rel (%p112) target = $region12
    $region11: #{fcn_forward.12} parent=5 // pred_region
      %s116 = ssub.s32 %s8, 1
      // Predicated region
      $region13: #{fcn_forward.12} parent=11 // pred_check
        %p117 = pneg %p74
      $region14: #{fcn_forward.12} parent=11 // pred_check_branch
        %119 = sbr.rel (%p117) target = $region16
      $region15: #{fcn_forward.12} parent=11 // pred_region
        %p120 = scmp.lt.s32.totalorder %s18, 0
        %s121 = scalar_select %p120, %s18, 0
        %s122 = scalar_lea.vmem %s1, %s121
      $region16: #{fcn_forward.12} parent=11 // pred_fallthru
        _
    $region12: #{fcn_forward.12} parent=5 // pred_fallthru
      _
    %p123 = scmp.lt.s32.totalorder %s8, 2
    // Predicated region
    $region17: #{fcn_forward.12} parent=5 // pred_check
      %p124 = pneg %p123
    $region18: #{fcn_forward.12} parent=5 // pred_check_branch
      %126 = sbr.rel (%p124) target = $region20
    $region19: #{fcn_forward.12} parent=5 // pred_region
      // Predicated region
      $region21: #{fcn_forward.12} parent=19 // pred_check
        %p127 = pneg %p42
      $region22: #{fcn_forward.12} parent=19 // pred_check_branch
        %129 = sbr.rel (%p127) target = $region24
      $region23: #{fcn_forward.12} parent=19 // pred_region
        %p130 = scmp.lt.s32.totalorder %s15, 1
        %s131 = scalar_select %p130, %s15, 1
        %p132 = scmp.lt.s32.totalorder %s16, 0
        %s133 = scalar_select %p132, %s16, 0
        %s134 = smul.addr %s131, 18
        %s135 = sadd.s32 %s133, %s134
        %s136 = smul.addr %s135, 8
        %s137 = scalar_lea.vmem %s0, %s136
      $region24: #{fcn_forward.12} parent=19 // pred_fallthru
        _
    $region20: #{fcn_forward.12} parent=5 // pred_fallthru
      _
    %p138 = scmp.le.s32.totalorder 1, %s8
    %p139 = scmp.lt.s32.totalorder %s8, 3
    %p140 = pnand %p138, %p139
    %p141 = pneg %p140
    // Predicated region
    $region25: #{fcn_forward.12} parent=5 // pred_check
      _
    $region26: #{fcn_forward.12} parent=5 // pred_check_branch
      %143 = sbr.rel (%p140) target = $region28
    $region27: #{fcn_forward.12} parent=5 // pred_region
      %s144 = ssub.s32 %s8, 1
      %p145 = scmp.lt.s32.totalorder %s17, 1
      %s146 = scalar_select %p145, %s17, 1
      %p147 = scmp.lt.s32.totalorder %s18, 0
      %s148 = scalar_select %p147, %s18, 0
      %s149 = smul.addr %s146, 18
      %s150 = sadd.s32 %s148, %s149
      %s151 = smul.addr %s150, 8
      %s152 = scalar_lea.vmem %s0, %s151
      %p153 = pneg %p48
      %p154 = pneg %p45
      %p155 = scmp.lt.s32.totalorder %s18, 0
      %s156 = scalar_select %p155, %s18, 0
      %s157 = scalar_lea.vmem %s1, %s156
      %p158 = pneg %p74
      %p159 = pneg %p71
      %p160 = pneg %p102
      %p161 = pneg %p99
      %p162 = scmp.lt.s32.totalorder %s17, 1
      %s163 = scalar_select %p162, %s17, 1
      %p164 = scmp.lt.s32.totalorder %s18, 0
      %s165 = scalar_select %p164, %s18, 0
      %s166 = smul.addr %s163, 2
      %s167 = sadd.s32 %s165, %s166
      %s168 = smul.addr %s167, 8
      %s169 = scalar_lea.vmem %s2, %s168
      %p170 = scmp.lt.s32.totalorder %s17, 1
      %s171 = scalar_select %p170, %s17, 1
      %p172 = scmp.lt.s32.totalorder %s18, 0
      %s173 = scalar_select %p172, %s18, 0
      %s174 = smul.addr %s171, 18
      %s175 = sadd.s32 %s173, %s174
      %s176 = smul.addr %s175, 8
      %s177 = scalar_lea.vmem %s0, %s176
      %p178 = scmp.lt.s32.totalorder %s18, 0
      %s179 = scalar_select %p178, %s18, 0
      %s180 = scalar_lea.vmem %s1, %s179
      %p181 = scmp.lt.s32.totalorder %s17, 1
      %s182 = scalar_select %p181, %s17, 1
      %p183 = scmp.lt.s32.totalorder %s18, 0
      %s184 = scalar_select %p183, %s18, 0
      %s185 = smul.addr %s182, 2
      %s186 = sadd.s32 %s184, %s185
      %s187 = smul.addr %s186, 8
      %s188 = scalar_lea.vmem %s2, %s187
      %v189 = vld [vmem:[%s177] sm:$0xff]
      %v190 = vld [vmem:[%s177 + $0x8] sm:$0xff]
      %v191 = vld [vmem:[%s180] sm:$0x1]
      %vm192 = vcmp.gt.f32.partialorder %v191, 0.5
      %v193 = vsel %vm192, 1, 0
      %v194 = vlaneseq
      %v195 = vshrl.u32 %v194, 7
      %v196 = vsub.s32 0, %v195
      %v197 = vrot.slane %v193, %v196
      %vm198 = vcmp.eq.s32.totalorder %v197, 1
      %v199 = vsel %vm198, %v189, -3.4028235e+38
      %v200 = vsel %vm198, %v190, -3.4028235e+38
      %s201 = scalar_lea.vmem %s177, 16
      %v202 = vld [vmem:[%s201] sm:$0xff]
      %v203 = vld [vmem:[%s201 + $0x8] sm:$0xff]
      %s204 = scalar_lea.vmem %s180, 1
      %v205 = vld [vmem:[%s204] sm:$0x1]
      %vm206 = vcmp.gt.f32.partialorder %v205, 0.5
      %v207 = vsel %vm206, 1, 0
      %v208 = vlaneseq
      %v209 = vshrl.u32 %v208, 7
      %v210 = vsub.s32 0, %v209
      %v211 = vrot.slane %v207, %v210
      %vm212 = vcmp.eq.s32.totalorder %v211, 1
      %v213 = vsel %vm212, %v202, -3.4028235e+38
      %v214 = vsel %vm212, %v203, -3.4028235e+38
      %v215 = vmax.f32 %v199, %v213
      %v216 = vmax.f32 %v200, %v214
      %v217 = vadd.f32 %v189, %v202
      %v218 = vadd.f32 %v190, %v203
      %s219 = scalar_lea.vmem %s177, 32
      %v220 = vld [vmem:[%s219] sm:$0xff]
      %v221 = vld [vmem:[%s219 + $0x8] sm:$0xff]
      %s222 = scalar_lea.vmem %s180, 2
      %v223 = vld [vmem:[%s222] sm:$0x1]
      %vm224 = vcmp.gt.f32.partialorder %v223, 0.5
      %v225 = vsel %vm224, 1, 0
      %v226 = vlaneseq
      %v227 = vshrl.u32 %v226, 7
      %v228 = vsub.s32 0, %v227
      %v229 = vrot.slane %v225, %v228
      %vm230 = vcmp.eq.s32.totalorder %v229, 1
      %v231 = vsel %vm230, %v220, -3.4028235e+38
      %v232 = vsel %vm230, %v221, -3.4028235e+38
      %v233 = vmax.f32 %v215, %v231
      %v234 = vmax.f32 %v216, %v232
      %v235 = vadd.f32 %v217, %v220
      %v236 = vadd.f32 %v218, %v221
      %s237 = scalar_lea.vmem %s177, 48
      %v238 = vld [vmem:[%s237] sm:$0xff]
      %v239 = vld [vmem:[%s237 + $0x8] sm:$0xff]
      %s240 = scalar_lea.vmem %s180, 3
      %v241 = vld [vmem:[%s240] sm:$0x1]
      %vm242 = vcmp.gt.f32.partialorder %v241, 0.5
      %v243 = vsel %vm242, 1, 0
      %v244 = vlaneseq
      %v245 = vshrl.u32 %v244, 7
      %v246 = vsub.s32 0, %v245
      %v247 = vrot.slane %v243, %v246
      %vm248 = vcmp.eq.s32.totalorder %v247, 1
      %v249 = vsel %vm248, %v238, -3.4028235e+38
      %v250 = vsel %vm248, %v239, -3.4028235e+38
      %v251 = vmax.f32 %v233, %v249
      %v252 = vmax.f32 %v234, %v250
      %v253 = vadd.f32 %v235, %v238
      %v254 = vadd.f32 %v236, %v239
      %s255 = scalar_lea.vmem %s177, 64
      %v256 = vld [vmem:[%s255] sm:$0xff]
      %v257 = vld [vmem:[%s255 + $0x8] sm:$0xff]
      %s258 = scalar_lea.vmem %s180, 4
      %v259 = vld [vmem:[%s258] sm:$0x1]
      %vm260 = vcmp.gt.f32.partialorder %v259, 0.5
      %v261 = vsel %vm260, 1, 0
      %v262 = vlaneseq
      %v263 = vshrl.u32 %v262, 7
      %v264 = vsub.s32 0, %v263
      %v265 = vrot.slane %v261, %v264
      %vm266 = vcmp.eq.s32.totalorder %v265, 1
      %v267 = vsel %vm266, %v256, -3.4028235e+38
      %v268 = vsel %vm266, %v257, -3.4028235e+38
      %v269 = vmax.f32 %v251, %v267
      %v270 = vmax.f32 %v252, %v268
      %v271 = vadd.f32 %v253, %v256
      %v272 = vadd.f32 %v254, %v257
      %s273 = scalar_lea.vmem %s177, 80
      %v274 = vld [vmem:[%s273] sm:$0xff]
      %v275 = vld [vmem:[%s273 + $0x8] sm:$0xff]
      %s276 = scalar_lea.vmem %s180, 5
      %v277 = vld [vmem:[%s276] sm:$0x1]
      %vm278 = vcmp.gt.f32.partialorder %v277, 0.5
      %v279 = vsel %vm278, 1, 0
      %v280 = vlaneseq
      %v281 = vshrl.u32 %v280, 7
      %v282 = vsub.s32 0, %v281
      %v283 = vrot.slane %v279, %v282
      %vm284 = vcmp.eq.s32.totalorder %v283, 1
      %v285 = vsel %vm284, %v274, -3.4028235e+38
      %v286 = vsel %vm284, %v275, -3.4028235e+38
      %v287 = vmax.f32 %v269, %v285
      %v288 = vmax.f32 %v270, %v286
      %v289 = vadd.f32 %v271, %v274
      %v290 = vadd.f32 %v272, %v275
      %s291 = scalar_lea.vmem %s177, 96
      %v292 = vld [vmem:[%s291] sm:$0xff]
      %v293 = vld [vmem:[%s291 + $0x8] sm:$0xff]
      %s294 = scalar_lea.vmem %s180, 6
      %v295 = vld [vmem:[%s294] sm:$0x1]
      %vm296 = vcmp.gt.f32.partialorder %v295, 0.5
      %v297 = vsel %vm296, 1, 0
      %v298 = vlaneseq
      %v299 = vshrl.u32 %v298, 7
      %v300 = vsub.s32 0, %v299
      %v301 = vrot.slane %v297, %v300
      %vm302 = vcmp.eq.s32.totalorder %v301, 1
      %v303 = vsel %vm302, %v292, -3.4028235e+38
      %v304 = vsel %vm302, %v293, -3.4028235e+38
      %v305 = vmax.f32 %v287, %v303
      %v306 = vmax.f32 %v288, %v304
      %v307 = vadd.f32 %v289, %v292
      %v308 = vadd.f32 %v290, %v293
      %s309 = scalar_lea.vmem %s177, 112
      %v310 = vld [vmem:[%s309] sm:$0xff]
      %v311 = vld [vmem:[%s309 + $0x8] sm:$0xff]
      %s312 = scalar_lea.vmem %s180, 7
      %v313 = vld [vmem:[%s312] sm:$0x1]
      %vm314 = vcmp.gt.f32.partialorder %v313, 0.5
      %v315 = vsel %vm314, 1, 0
      %v316 = vlaneseq
      %v317 = vshrl.u32 %v316, 7
      %v318 = vsub.s32 0, %v317
      %v319 = vrot.slane %v315, %v318
      %vm320 = vcmp.eq.s32.totalorder %v319, 1
      %v321 = vsel %vm320, %v310, -3.4028235e+38
      %v322 = vsel %vm320, %v311, -3.4028235e+38
      %v323 = vmax.f32 %v305, %v321
      %v324 = vmax.f32 %v306, %v322
      %v325 = vadd.f32 %v307, %v310
      %v326 = vadd.f32 %v308, %v311
      %s327 = scalar_lea.vmem %s177, 128
      %v328 = vld [vmem:[%s327] sm:$0xff]
      %v329 = vld [vmem:[%s327 + $0x8] sm:$0xff]
      %s330 = scalar_lea.vmem %s180, 8
      %v331 = vld [vmem:[%s330] sm:$0x1]
      %vm332 = vcmp.gt.f32.partialorder %v331, 0.5
      %v333 = vsel %vm332, 1, 0
      %v334 = vlaneseq
      %v335 = vshrl.u32 %v334, 7
      %v336 = vsub.s32 0, %v335
      %v337 = vrot.slane %v333, %v336
      %vm338 = vcmp.eq.s32.totalorder %v337, 1
      %v339 = vsel %vm338, %v328, -3.4028235e+38
      %v340 = vsel %vm338, %v329, -3.4028235e+38
      %v341 = vmax.f32 %v323, %v339
      %v342 = vmax.f32 %v324, %v340
      %v343 = vadd.f32 %v325, %v328
      %v344 = vadd.f32 %v326, %v329
      %v345 = vmul.f32 %v343, 0.11111111
      %v346 = vmul.f32 %v344, 0.11111111
      %v347 = vadd.f32 %v341, %v345
      %v348 = vadd.f32 %v342, %v346
      %349 = vst [vmem:[%s188] sm:$0xff] %v347
      %350 = vst [vmem:[%s188 + $0x8] sm:$0xff] %v348
      %p351 = scmp.lt.s32.totalorder %s17, 1
      %s352 = scalar_select %p351, %s17, 1
      %p353 = scmp.lt.s32.totalorder %s18, 0
      %s354 = scalar_select %p353, %s18, 0
      %s355 = smul.addr %s352, 2
      %s356 = sadd.s32 %s354, %s355
      %s357 = smul.addr %s356, 8
      %s358 = scalar_lea.vmem %s2, %s357
      // Predicated region
      $region29: #{fcn_forward.12} parent=27 // pred_check
        %p359 = pneg %p99
      $region30: #{fcn_forward.12} parent=27 // pred_check_branch
        %361 = sbr.rel (%p359) target = $region32
      $region31: #{fcn_forward.12} parent=27 // pred_region
        _
      $region32: #{fcn_forward.12} parent=27 // pred_fallthru
        _
    $region28: #{fcn_forward.12} parent=5 // pred_fallthru
      _
    %p362 = scmp.le.s32.totalorder 2, %s8
    // Predicated region
    $region33: #{fcn_forward.12} parent=5 // pred_check
      %p363 = pneg %p362
    $region34: #{fcn_forward.12} parent=5 // pred_check_branch
      %365 = sbr.rel (%p363) target = $region36
    $region35: #{fcn_forward.12} parent=5 // pred_region
      %s366 = ssub.s32 %s8, 2
      // Predicated region
      $region37: #{fcn_forward.12} parent=35 // pred_check
        %p367 = pneg %p105
      $region38: #{fcn_forward.12} parent=35 // pred_check_branch
        %369 = sbr.rel (%p367) target = $region40
      $region39: #{fcn_forward.12} parent=35 // pred_region
        %p370 = scmp.lt.s32.totalorder %s19, 1
        %s371 = scalar_select %p370, %s19, 1
        %p372 = scmp.lt.s32.totalorder %s20, 0
        %s373 = scalar_select %p372, %s20, 0
        %s374 = smul.addr %s371, 2
        %s375 = sadd.s32 %s373, %s374
        %s376 = smul.addr %s375, 8
        %s377 = scalar_lea.vmem %s2, %s376
      $region40: #{fcn_forward.12} parent=35 // pred_fallthru
        _
    $region36: #{fcn_forward.12} parent=5 // pred_fallthru
      _
  $region6: #{fcn_forward.12} parent=0 // loop_footer
    %s12 = sadd.s32 1, %s8
  $region7: #{fcn_forward.12} parent=0 // loop_footer_branch
    %7 = sbr.rel target = $region3
  $region8: #{fcn_forward.12} parent=0 // loop_exit
    _

// kernel: fcn_forward.14
$region0: #{fcn_forward.14}
  #allocation0 [shape = 'u32[]', space=smem, size = 0x4, offset = 0x4, fixed_abs, tag = 'smem constant byte address 0x4 - core index']
  #allocation1 [shape = 'u32[144,128]{1,0:T(1,128)}', space=vmem, size = 0x12000, scoped, tag = 'internal scratch']
  %s0 = inlined_call_operand.vmem [shape: f32[2,9,32,128], index: 0, kind: input, shape index: {}]
  %s1 = inlined_call_operand.vmem [shape: f32[9,1,128], index: 1, kind: input, shape index: {}]
  %s2 = inlined_call_operand.vmem [shape: f32[2,32,128], index: 2, kind: output, shape index: {}]
  %s3 = sld [smem:[#allocation0]]
  $region41: #{fcn_forward.14} parent=0
    _
  %s5 = ssub.s32 1, %s3
  %s6 = scalar_select 0, %s5, %s3
  loop: start=0, step=1, limit=4
  $region2: #{fcn_forward.14} parent=0 // loop_pre_header
    _
  $region3: #{fcn_forward.14} parent=0 // loop_header
    %s8 = sphi 0, %s12
    %p9 = scmp.ge.s32.totalorder %s8, 4
    %s15 = sphi 0, %s27
    %s16 = sphi 0, %s23
    %s17 = sphi 0, %s15
    %s18 = sphi 0, %s16
    %s19 = sphi 0, %s17
    %s20 = sphi 0, %s18
    %s32 = sphi 0, %s34
    %s35 = sphi 0, %s32
    %s36 = sphi 0, %s35
    %s52 = sphi 0, %s36
    %s58 = sphi 0, %s60
    %s61 = sphi 0, %s58
    %s62 = sphi 0, %s61
    %s78 = sphi 0, %s62
    %s86 = sphi 0, %s88
    %s89 = sphi 0, %s86
    %s90 = sphi 0, %s89
    %s106 = sphi 0, %s90
  $region4: #{fcn_forward.14} parent=0 // loop_header_branch
    %11 = sbr.rel (%p9) target = $region8
  $region5: #{fcn_forward.14} parent=0 // loop_body
    %s13 = ssub.s32 %s8, 1
    %s14 = ssub.s32 %s8, 2
    %s21 = sadd.s32 1, %s16
    %p22 = scmp.ge.s32.totalorder %s21, 1
    %s23 = scalar_select %p22, 0, %s21
    %s24 = sadd.s32 1, %s15
    %s25 = scalar_select %p22, %s24, %s15
    %p26 = scmp.ge.s32.totalorder %s25, 2
    %s27 = scalar_select %p26, 0, %s25
    %s28 = ssub.s32 %s15, %s27
    %s29 = ssub.s32 %s16, %s23
    %s30 = sor.u32 %s28, %s29
    %p31 = scmp.eq.s32.totalorder %s30, 0
    %s33 = sadd.s32 %s32, 1
    %s34 = scalar_select %p31, %s32, %s33
    %p37 = pneg %p31
    %p38 = scmp.eq.s32.totalorder %s8, 1
    %p39 = por %p37, %p38
    %p40 = scmp.ne.s32.totalorder %s32, %s35
    %p41 = scmp.eq.s32.totalorder %s8, 0
    %p42 = por %p40, %p41
    %p43 = scmp.ne.s32.totalorder %s32, %s35
    %p44 = scmp.eq.s32.totalorder %s13, 1
    %p45 = por %p43, %p44
    %p46 = scmp.ne.s32.totalorder %s35, %s36
    %p47 = scmp.eq.s32.totalorder %s13, 0
    %p48 = por %p46, %p47
    %p49 = scmp.ne.s32.totalorder %s35, %s36
    %p50 = scmp.eq.s32.totalorder %s14, 1
    %p51 = por %p49, %p50
    %p53 = scmp.ne.s32.totalorder %s36, %s52
    %p54 = scmp.eq.s32.totalorder %s14, 0
    %p55 = por %p53, %p54
    %s56 = ssub.s32 %s16, %s23
    %p57 = scmp.eq.s32.totalorder %s56, 0
    %s59 = sadd.s32 %s58, 1
    %s60 = scalar_select %p57, %s58, %s59
    %p63 = pneg %p57
    %p64 = scmp.eq.s32.totalorder %s8, 1
    %p65 = por %p63, %p64
    %p66 = scmp.ne.s32.totalorder %s58, %s61
    %p67 = scmp.eq.s32.totalorder %s8, 0
    %p68 = por %p66, %p67
    %p69 = scmp.ne.s32.totalorder %s58, %s61
    %p70 = scmp.eq.s32.totalorder %s13, 1
    %p71 = por %p69, %p70
    %p72 = scmp.ne.s32.totalorder %s61, %s62
    %p73 = scmp.eq.s32.totalorder %s13, 0
    %p74 = por %p72, %p73
    %p75 = scmp.ne.s32.totalorder %s61, %s62
    %p76 = scmp.eq.s32.totalorder %s14, 1
    %p77 = por %p75, %p76
    %p79 = scmp.ne.s32.totalorder %s62, %s78
    %p80 = scmp.eq.s32.totalorder %s14, 0
    %p81 = por %p79, %p80
    %s82 = ssub.s32 %s15, %s27
    %s83 = ssub.s32 %s16, %s23
    %s84 = sor.u32 %s82, %s83
    %p85 = scmp.eq.s32.totalorder %s84, 0
    %s87 = sadd.s32 %s86, 1
    %s88 = scalar_select %p85, %s86, %s87
    %p91 = pneg %p85
    %p92 = scmp.eq.s32.totalorder %s8, 1
    %p93 = por %p91, %p92
    %p94 = scmp.ne.s32.totalorder %s86, %s89
    %p95 = scmp.eq.s32.totalorder %s8, 0
    %p96 = por %p94, %p95
    %p97 = scmp.ne.s32.totalorder %s86, %s89
    %p98 = scmp.eq.s32.totalorder %s13, 1
    %p99 = por %p97, %p98
    %p100 = scmp.ne.s32.totalorder %s89, %s90
    %p101 = scmp.eq.s32.totalorder %s13, 0
    %p102 = por %p100, %p101
    %p103 = scmp.ne.s32.totalorder %s89, %s90
    %p104 = scmp.eq.s32.totalorder %s14, 1
    %p105 = por %p103, %p104
    %p107 = scmp.ne.s32.totalorder %s90, %s106
    %p108 = scmp.eq.s32.totalorder %s14, 0
    %p109 = por %p107, %p108
    %p110 = scmp.le.s32.totalorder 1, %s8
    %p111 = scmp.lt.s32.totalorder %s8, 3
    %p112 = pnand %p110, %p111
    %p113 = pneg %p112
    // Predicated region
    $region9: #{fcn_forward.14} parent=5 // pred_check
      _
    $region10: #{fcn_forward.14} parent=5 // pred_check_branch
      %115 = sbr.rel (%p112) target = $region12
    $region11: #{fcn_forward.14} parent=5 // pred_region
      %s116 = ssub.s32 %s8, 1
      // Predicated region
      $region13: #{fcn_forward.14} parent=11 // pred_check
        %p117 = pneg %p74
      $region14: #{fcn_forward.14} parent=11 // pred_check_branch
        %119 = sbr.rel (%p117) target = $region16
      $region15: #{fcn_forward.14} parent=11 // pred_region
        %p120 = scmp.lt.s32.totalorder %s18, 0
        %s121 = scalar_select %p120, %s18, 0
        %s122 = scalar_lea.vmem %s1, %s121
      $region16: #{fcn_forward.14} parent=11 // pred_fallthru
        _
    $region12: #{fcn_forward.14} parent=5 // pred_fallthru
      _
    %p123 = scmp.lt.s32.totalorder %s8, 2
    // Predicated region
    $region17: #{fcn_forward.14} parent=5 // pred_check
      %p124 = pneg %p123
    $region18: #{fcn_forward.14} parent=5 // pred_check_branch
      %126 = sbr.rel (%p124) target = $region20
    $region19: #{fcn_forward.14} parent=5 // pred_region
      // Predicated region
      $region21: #{fcn_forward.14} parent=19 // pred_check
        %p127 = pneg %p42
      $region22: #{fcn_forward.14} parent=19 // pred_check_branch
        %129 = sbr.rel (%p127) target = $region24
      $region23: #{fcn_forward.14} parent=19 // pred_region
        %p130 = scmp.lt.s32.totalorder %s15, 1
        %s131 = scalar_select %p130, %s15, 1
        %p132 = scmp.lt.s32.totalorder %s16, 0
        %s133 = scalar_select %p132, %s16, 0
        %s134 = smul.addr %s131, 36
        %s135 = sadd.s32 %s133, %s134
        %s136 = smul.addr %s135, 8
        %s137 = scalar_lea.vmem %s0, %s136
      $region24: #{fcn_forward.14} parent=19 // pred_fallthru
        _
    $region20: #{fcn_forward.14} parent=5 // pred_fallthru
      _
    %p138 = scmp.le.s32.totalorder 1, %s8
    %p139 = scmp.lt.s32.totalorder %s8, 3
    %p140 = pnand %p138, %p139
    %p141 = pneg %p140
    // Predicated region
    $region25: #{fcn_forward.14} parent=5 // pred_check
      _
    $region26: #{fcn_forward.14} parent=5 // pred_check_branch
      %143 = sbr.rel (%p140) target = $region28
    $region27: #{fcn_forward.14} parent=5 // pred_region
      %s144 = ssub.s32 %s8, 1
      %p145 = scmp.lt.s32.totalorder %s17, 1
      %s146 = scalar_select %p145, %s17, 1
      %p147 = scmp.lt.s32.totalorder %s18, 0
      %s148 = scalar_select %p147, %s18, 0
      %s149 = smul.addr %s146, 36
      %s150 = sadd.s32 %s148, %s149
      %s151 = smul.addr %s150, 8
      %s152 = scalar_lea.vmem %s0, %s151
      %p153 = pneg %p48
      %p154 = pneg %p45
      %p155 = scmp.lt.s32.totalorder %s18, 0
      %s156 = scalar_select %p155, %s18, 0
      %s157 = scalar_lea.vmem %s1, %s156
      %p158 = pneg %p74
      %p159 = pneg %p71
      %p160 = pneg %p102
      %p161 = pneg %p99
      %p162 = scmp.lt.s32.totalorder %s17, 1
      %s163 = scalar_select %p162, %s17, 1
      %p164 = scmp.lt.s32.totalorder %s18, 0
      %s165 = scalar_select %p164, %s18, 0
      %s166 = smul.addr %s163, 4
      %s167 = sadd.s32 %s165, %s166
      %s168 = smul.addr %s167, 8
      %s169 = scalar_lea.vmem %s2, %s168
      %p170 = scmp.lt.s32.totalorder %s17, 1
      %s171 = scalar_select %p170, %s17, 1
      %p172 = scmp.lt.s32.totalorder %s18, 0
      %s173 = scalar_select %p172, %s18, 0
      %s174 = smul.addr %s171, 36
      %s175 = sadd.s32 %s173, %s174
      %s176 = smul.addr %s175, 8
      %s177 = scalar_lea.vmem %s0, %s176
      %p178 = scmp.lt.s32.totalorder %s18, 0
      %s179 = scalar_select %p178, %s18, 0
      %s180 = scalar_lea.vmem %s1, %s179
      %p181 = scmp.lt.s32.totalorder %s17, 1
      %s182 = scalar_select %p181, %s17, 1
      %p183 = scmp.lt.s32.totalorder %s18, 0
      %s184 = scalar_select %p183, %s18, 0
      %s185 = smul.addr %s182, 4
      %s186 = sadd.s32 %s184, %s185
      %s187 = smul.addr %s186, 8
      %s188 = scalar_lea.vmem %s2, %s187
      %v189 = vld [vmem:[%s177] sm:$0xff]
      %v190 = vld [vmem:[%s177 + $0x8] sm:$0xff]
      %v191 = vld [vmem:[%s177 + $0x10] sm:$0xff]
      %v192 = vld [vmem:[%s177 + $0x18] sm:$0xff]
      %v193 = vld [vmem:[%s180] sm:$0x1]
      %vm194 = vcmp.gt.f32.partialorder %v193, 0.5
      %v195 = vsel %vm194, 1, 0
      %v196 = vlaneseq
      %v197 = vshrl.u32 %v196, 7
      %v198 = vsub.s32 0, %v197
      %v199 = vrot.slane %v195, %v198
      %vm200 = vcmp.eq.s32.totalorder %v199, 1
      %v201 = vsel %vm200, %v189, -3.4028235e+38
      %v202 = vsel %vm200, %v190, -3.4028235e+38
      %v203 = vsel %vm200, %v191, -3.4028235e+38
      %v204 = vsel %vm200, %v192, -3.4028235e+38
      %s205 = scalar_lea.vmem %s177, 32
      %v206 = vld [vmem:[%s205] sm:$0xff]
      %v207 = vld [vmem:[%s205 + $0x8] sm:$0xff]
      %v208 = vld [vmem:[%s205 + $0x10] sm:$0xff]
      %v209 = vld [vmem:[%s205 + $0x18] sm:$0xff]
      %s210 = scalar_lea.vmem %s180, 1
      %v211 = vld [vmem:[%s210] sm:$0x1]
      %vm212 = vcmp.gt.f32.partialorder %v211, 0.5
      %v213 = vsel %vm212, 1, 0
      %v214 = vlaneseq
      %v215 = vshrl.u32 %v214, 7
      %v216 = vsub.s32 0, %v215
      %v217 = vrot.slane %v213, %v216
      %vm218 = vcmp.eq.s32.totalorder %v217, 1
      %v219 = vsel %vm218, %v206, -3.4028235e+38
      %v220 = vsel %vm218, %v207, -3.4028235e+38
      %v221 = vsel %vm218, %v208, -3.4028235e+38
      %v222 = vsel %vm218, %v209, -3.4028235e+38
      %v223 = vmax.f32 %v201, %v219
      %v224 = vmax.f32 %v202, %v220
      %v225 = vmax.f32 %v203, %v221
      %v226 = vmax.f32 %v204, %v222
      %v227 = vadd.f32 %v189, %v206
      %v228 = vadd.f32 %v190, %v207
      %v229 = vadd.f32 %v191, %v208
      %v230 = vadd.f32 %v192, %v209
      %s231 = scalar_lea.vmem %s177, 64
      %v232 = vld [vmem:[%s231] sm:$0xff]
      %v233 = vld [vmem:[%s231 + $0x8] sm:$0xff]
      %v234 = vld [vmem:[%s231 + $0x10] sm:$0xff]
      %v235 = vld [vmem:[%s231 + $0x18] sm:$0xff]
      %s236 = scalar_lea.vmem %s180, 2
      %v237 = vld [vmem:[%s236] sm:$0x1]
      %vm238 = vcmp.gt.f32.partialorder %v237, 0.5
      %v239 = vsel %vm238, 1, 0
      %v240 = vlaneseq
      %v241 = vshrl.u32 %v240, 7
      %v242 = vsub.s32 0, %v241
      %v243 = vrot.slane %v239, %v242
      %vm244 = vcmp.eq.s32.totalorder %v243, 1
      %v245 = vsel %vm244, %v232, -3.4028235e+38
      %v246 = vsel %vm244, %v233, -3.4028235e+38
      %v247 = vsel %vm244, %v234, -3.4028235e+38
      %v248 = vsel %vm244, %v235, -3.4028235e+38
      %v249 = vmax.f32 %v223, %v245
      %v250 = vmax.f32 %v224, %v246
      %v251 = vmax.f32 %v225, %v247
      %v252 = vmax.f32 %v226, %v248
      %v253 = vadd.f32 %v227, %v232
      %v254 = vadd.f32 %v228, %v233
      %v255 = vadd.f32 %v229, %v234
      %v256 = vadd.f32 %v230, %v235
      %s257 = scalar_lea.vmem %s177, 96
      %v258 = vld [vmem:[%s257] sm:$0xff]
      %v259 = vld [vmem:[%s257 + $0x8] sm:$0xff]
      %v260 = vld [vmem:[%s257 + $0x10] sm:$0xff]
      %v261 = vld [vmem:[%s257 + $0x18] sm:$0xff]
      %s262 = scalar_lea.vmem %s180, 3
      %v263 = vld [vmem:[%s262] sm:$0x1]
      %vm264 = vcmp.gt.f32.partialorder %v263, 0.5
      %v265 = vsel %vm264, 1, 0
      %v266 = vlaneseq
      %v267 = vshrl.u32 %v266, 7
      %v268 = vsub.s32 0, %v267
      %v269 = vrot.slane %v265, %v268
      %vm270 = vcmp.eq.s32.totalorder %v269, 1
      %v271 = vsel %vm270, %v258, -3.4028235e+38
      %v272 = vsel %vm270, %v259, -3.4028235e+38
      %v273 = vsel %vm270, %v260, -3.4028235e+38
      %v274 = vsel %vm270, %v261, -3.4028235e+38
      %v275 = vmax.f32 %v249, %v271
      %v276 = vmax.f32 %v250, %v272
      %v277 = vmax.f32 %v251, %v273
      %v278 = vmax.f32 %v252, %v274
      %v279 = vadd.f32 %v253, %v258
      %v280 = vadd.f32 %v254, %v259
      %v281 = vadd.f32 %v255, %v260
      %v282 = vadd.f32 %v256, %v261
      %s283 = scalar_lea.vmem %s177, 128
      %v284 = vld [vmem:[%s283] sm:$0xff]
      %v285 = vld [vmem:[%s283 + $0x8] sm:$0xff]
      %v286 = vld [vmem:[%s283 + $0x10] sm:$0xff]
      %v287 = vld [vmem:[%s283 + $0x18] sm:$0xff]
      %s288 = scalar_lea.vmem %s180, 4
      %v289 = vld [vmem:[%s288] sm:$0x1]
      %vm290 = vcmp.gt.f32.partialorder %v289, 0.5
      %v291 = vsel %vm290, 1, 0
      %v292 = vlaneseq
      %v293 = vshrl.u32 %v292, 7
      %v294 = vsub.s32 0, %v293
      %v295 = vrot.slane %v291, %v294
      %vm296 = vcmp.eq.s32.totalorder %v295, 1
      %v297 = vsel %vm296, %v284, -3.4028235e+38
      %v298 = vsel %vm296, %v285, -3.4028235e+38
      %v299 = vsel %vm296, %v286, -3.4028235e+38
      %v300 = vsel %vm296, %v287, -3.4028235e+38
      %v301 = vmax.f32 %v275, %v297
      %v302 = vmax.f32 %v276, %v298
      %v303 = vmax.f32 %v277, %v299
      %v304 = vmax.f32 %v278, %v300
      %v305 = vadd.f32 %v279, %v284
      %v306 = vadd.f32 %v280, %v285
      %v307 = vadd.f32 %v281, %v286
      %v308 = vadd.f32 %v282, %v287
      %s309 = scalar_lea.vmem %s177, 160
      %v310 = vld [vmem:[%s309] sm:$0xff]
      %v311 = vld [vmem:[%s309 + $0x8] sm:$0xff]
      %v312 = vld [vmem:[%s309 + $0x10] sm:$0xff]
      %v313 = vld [vmem:[%s309 + $0x18] sm:$0xff]
      %s314 = scalar_lea.vmem %s180, 5
      %v315 = vld [vmem:[%s314] sm:$0x1]
      %vm316 = vcmp.gt.f32.partialorder %v315, 0.5
      %v317 = vsel %vm316, 1, 0
      %v318 = vlaneseq
      %v319 = vshrl.u32 %v318, 7
      %v320 = vsub.s32 0, %v319
      %v321 = vrot.slane %v317, %v320
      %vm322 = vcmp.eq.s32.totalorder %v321, 1
      %v323 = vsel %vm322, %v310, -3.4028235e+38
      %v324 = vsel %vm322, %v311, -3.4028235e+38
      %v325 = vsel %vm322, %v312, -3.4028235e+38
      %v326 = vsel %vm322, %v313, -3.4028235e+38
      %v327 = vmax.f32 %v301, %v323
      %v328 = vmax.f32 %v302, %v324
      %v329 = vmax.f32 %v303, %v325
      %v330 = vmax.f32 %v304, %v326
      %v331 = vadd.f32 %v305, %v310
      %v332 = vadd.f32 %v306, %v311
      %v333 = vadd.f32 %v307, %v312
      %v334 = vadd.f32 %v308, %v313
      %s335 = scalar_lea.vmem %s177, 192
      %v336 = vld [vmem:[%s335] sm:$0xff]
      %v337 = vld [vmem:[%s335 + $0x8] sm:$0xff]
      %v338 = vld [vmem:[%s335 + $0x10] sm:$0xff]
      %v339 = vld [vmem:[%s335 + $0x18] sm:$0xff]
      %s340 = scalar_lea.vmem %s180, 6
      %v341 = vld [vmem:[%s340] sm:$0x1]
      %vm342 = vcmp.gt.f32.partialorder %v341, 0.5
      %v343 = vsel %vm342, 1, 0
      %v344 = vlaneseq
      %v345 = vshrl.u32 %v344, 7
      %v346 = vsub.s32 0, %v345
      %v347 = vrot.slane %v343, %v346
      %vm348 = vcmp.eq.s32.totalorder %v347, 1
      %v349 = vsel %vm348, %v336, -3.4028235e+38
      %v350 = vsel %vm348, %v337, -3.4028235e+38
      %v351 = vsel %vm348, %v338, -3.4028235e+38
      %v352 = vsel %vm348, %v339, -3.4028235e+38
      %v353 = vmax.f32 %v327, %v349
      %v354 = vmax.f32 %v328, %v350
      %v355 = vmax.f32 %v329, %v351
      %v356 = vmax.f32 %v330, %v352
      %v357 = vadd.f32 %v331, %v336
      %v358 = vadd.f32 %v332, %v337
      %v359 = vadd.f32 %v333, %v338
      %v360 = vadd.f32 %v334, %v339
      %s361 = scalar_lea.vmem %s177, 224
      %v362 = vld [vmem:[%s361] sm:$0xff]
      %v363 = vld [vmem:[%s361 + $0x8] sm:$0xff]
      %v364 = vld [vmem:[%s361 + $0x10] sm:$0xff]
      %v365 = vld [vmem:[%s361 + $0x18] sm:$0xff]
      %s366 = scalar_lea.vmem %s180, 7
      %v367 = vld [vmem:[%s366] sm:$0x1]
      %vm368 = vcmp.gt.f32.partialorder %v367, 0.5
      %v369 = vsel %vm368, 1, 0
      %v370 = vlaneseq
      %v371 = vshrl.u32 %v370, 7
      %v372 = vsub.s32 0, %v371
      %v373 = vrot.slane %v369, %v372
      %vm374 = vcmp.eq.s32.totalorder %v373, 1
      %v375 = vsel %vm374, %v362, -3.4028235e+38
      %v376 = vsel %vm374, %v363, -3.4028235e+38
      %v377 = vsel %vm374, %v364, -3.4028235e+38
      %v378 = vsel %vm374, %v365, -3.4028235e+38
      %v379 = vmax.f32 %v353, %v375
      %v380 = vmax.f32 %v354, %v376
      %v381 = vmax.f32 %v355, %v377
      %v382 = vmax.f32 %v356, %v378
      %v383 = vadd.f32 %v357, %v362
      %v384 = vadd.f32 %v358, %v363
      %v385 = vadd.f32 %v359, %v364
      %v386 = vadd.f32 %v360, %v365
      %s387 = scalar_lea.vmem %s177, 256
      %v388 = vld [vmem:[%s387] sm:$0xff]
      %v389 = vld [vmem:[%s387 + $0x8] sm:$0xff]
      %v390 = vld [vmem:[%s387 + $0x10] sm:$0xff]
      %v391 = vld [vmem:[%s387 + $0x18] sm:$0xff]
      %s392 = scalar_lea.vmem %s180, 8
      %v393 = vld [vmem:[%s392] sm:$0x1]
      %vm394 = vcmp.gt.f32.partialorder %v393, 0.5
      %v395 = vsel %vm394, 1, 0
      %v396 = vlaneseq
      %v397 = vshrl.u32 %v396, 7
      %v398 = vsub.s32 0, %v397
      %v399 = vrot.slane %v395, %v398
      %vm400 = vcmp.eq.s32.totalorder %v399, 1
      %v401 = vsel %vm400, %v388, -3.4028235e+38
      %v402 = vsel %vm400, %v389, -3.4028235e+38
      %v403 = vsel %vm400, %v390, -3.4028235e+38
      %v404 = vsel %vm400, %v391, -3.4028235e+38
      %v405 = vmax.f32 %v379, %v401
      %v406 = vmax.f32 %v380, %v402
      %v407 = vmax.f32 %v381, %v403
      %v408 = vmax.f32 %v382, %v404
      %v409 = vadd.f32 %v383, %v388
      %v410 = vadd.f32 %v384, %v389
      %v411 = vadd.f32 %v385, %v390
      %v412 = vadd.f32 %v386, %v391
      %v413 = vmul.f32 %v409, 0.11111111
      %v414 = vmul.f32 %v410, 0.11111111
      %v415 = vmul.f32 %v411, 0.11111111
      %v416 = vmul.f32 %v412, 0.11111111
      %v417 = vadd.f32 %v405, %v413
      %v418 = vadd.f32 %v406, %v414
      %v419 = vadd.f32 %v407, %v415
      %v420 = vadd.f32 %v408, %v416
      %421 = vst [vmem:[%s188] sm:$0xff] %v417
      %422 = vst [vmem:[%s188 + $0x8] sm:$0xff] %v418
      %423 = vst [vmem:[%s188 + $0x10] sm:$0xff] %v419
      %424 = vst [vmem:[%s188 + $0x18] sm:$0xff] %v420
      %p425 = scmp.lt.s32.totalorder %s17, 1
      %s426 = scalar_select %p425, %s17, 1
      %p427 = scmp.lt.s32.totalorder %s18, 0
      %s428 = scalar_select %p427, %s18, 0
      %s429 = smul.addr %s426, 4
      %s430 = sadd.s32 %s428, %s429
      %s431 = smul.addr %s430, 8
      %s432 = scalar_lea.vmem %s2, %s431
      // Predicated region
      $region29: #{fcn_forward.14} parent=27 // pred_check
        %p433 = pneg %p99
      $region30: #{fcn_forward.14} parent=27 // pred_check_branch
        %435 = sbr.rel (%p433) target = $region32
      $region31: #{fcn_forward.14} parent=27 // pred_region
        _
      $region32: #{fcn_forward.14} parent=27 // pred_fallthru
        _
    $region28: #{fcn_forward.14} parent=5 // pred_fallthru
      _
    %p436 = scmp.le.s32.totalorder 2, %s8
    // Predicated region
    $region33: #{fcn_forward.14} parent=5 // pred_check
      %p437 = pneg %p436
    $region34: #{fcn_forward.14} parent=5 // pred_check_branch
      %439 = sbr.rel (%p437) target = $region36
    $region35: #{fcn_forward.14} parent=5 // pred_region
      %s440 = ssub.s32 %s8, 2
      // Predicated region
      $region37: #{fcn_forward.14} parent=35 // pred_check
        %p441 = pneg %p105
      $region38: #{fcn_forward.14} parent=35 // pred_check_branch
        %443 = sbr.rel (%p441) target = $region40
      $region39: #{fcn_forward.14} parent=35 // pred_region
        %p444 = scmp.lt.s32.totalorder %s19, 1
        %s445 = scalar_select %p444, %s19, 1
        %p446 = scmp.lt.s32.totalorder %s20, 0
        %s447 = scalar_select %p446, %s20, 0
        %s448 = smul.addr %s445, 4
        %s449 = sadd.s32 %s447, %s448
        %s450 = smul.addr %s449, 8
        %s451 = scalar_lea.vmem %s2, %s450
      $region40: #{fcn_forward.14} parent=35 // pred_fallthru
        _
    $region36: #{fcn_forward.14} parent=5 // pred_fallthru
      _
  $region6: #{fcn_forward.14} parent=0 // loop_footer
    %s12 = sadd.s32 1, %s8
  $region7: #{fcn_forward.14} parent=0 // loop_footer_branch
    %7 = sbr.rel target = $region3
  $region8: #{fcn_forward.14} parent=0 // loop_exit
    _

// kernel: fcn_forward.15
$region0: #{fcn_forward.15}
  #allocation0 [shape = 'u32[]', space=smem, size = 0x4, offset = 0x4, fixed_abs, tag = 'smem constant byte address 0x4 - core index']
  #allocation1 [shape = 'u32[144,128]{1,0:T(1,128)}', space=vmem, size = 0x12000, scoped, tag = 'internal scratch']
  %s0 = inlined_call_operand.vmem [shape: bf16[2,32,128], index: 0, kind: input, shape index: {}]
  %s1 = inlined_call_operand.vmem [shape: bf16[16,32], index: 1, kind: input, shape index: {}]
  %s2 = inlined_call_operand.vmem [shape: f32[16,1], index: 2, kind: input, shape index: {}]
  %s3 = inlined_call_operand.vmem [shape: f32[2,16,128], index: 3, kind: output, shape index: {}]
  %s4 = sld [smem:[#allocation0]]
  $region45: #{fcn_forward.15} parent=0
    _
  %s6 = ssub.s32 1, %s4
  %s7 = scalar_select 0, %s6, %s4
  loop: start=0, step=1, limit=4
  $region2: #{fcn_forward.15} parent=0 // loop_pre_header
    _
  $region3: #{fcn_forward.15} parent=0 // loop_header
    %s9 = sphi 0, %s13
    %p10 = scmp.ge.s32.totalorder %s9, 4
    %s16 = sphi 0, %s28
    %s17 = sphi 0, %s24
    %s18 = sphi 0, %s16
    %s19 = sphi 0, %s17
    %s20 = sphi 0, %s18
    %s21 = sphi 0, %s19
    %s33 = sphi 0, %s35
    %s36 = sphi 0, %s33
    %s37 = sphi 0, %s36
    %s53 = sphi 0, %s37
    %s57 = sphi 0, %s57
    %s59 = sphi 0, %s57
    %s60 = sphi 0, %s59
    %s74 = sphi 0, %s60
    %s78 = sphi 0, %s78
    %s80 = sphi 0, %s78
    %s81 = sphi 0, %s80
    %s95 = sphi 0, %s81
    %s103 = sphi 0, %s105
    %s106 = sphi 0, %s103
    %s107 = sphi 0, %s106
    %s123 = sphi 0, %s107
  $region4: #{fcn_forward.15} parent=0 // loop_header_branch
    %12 = sbr.rel (%p10) target = $region8
  $region5: #{fcn_forward.15} parent=0 // loop_body
    %s14 = ssub.s32 %s9, 1
    %s15 = ssub.s32 %s9, 2
    %s22 = sadd.s32 1, %s17
    %p23 = scmp.ge.s32.totalorder %s22, 1
    %s24 = scalar_select %p23, 0, %s22
    %s25 = sadd.s32 1, %s16
    %s26 = scalar_select %p23, %s25, %s16
    %p27 = scmp.ge.s32.totalorder %s26, 2
    %s28 = scalar_select %p27, 0, %s26
    %s29 = ssub.s32 %s16, %s28
    %s30 = ssub.s32 %s17, %s24
    %s31 = sor.u32 %s29, %s30
    %p32 = scmp.eq.s32.totalorder %s31, 0
    %s34 = sadd.s32 %s33, 1
    %s35 = scalar_select %p32, %s33, %s34
    %p38 = pneg %p32
    %p39 = scmp.eq.s32.totalorder %s9, 1
    %p40 = por %p38, %p39
    %p41 = scmp.ne.s32.totalorder %s33, %s36
    %p42 = scmp.eq.s32.totalorder %s9, 0
    %p43 = por %p41, %p42
    %p44 = scmp.ne.s32.totalorder %s33, %s36
    %p45 = scmp.eq.s32.totalorder %s14, 1
    %p46 = por %p44, %p45
    %p47 = scmp.ne.s32.totalorder %s36, %s37
    %p48 = scmp.eq.s32.totalorder %s14, 0
    %p49 = por %p47, %p48
    %p50 = scmp.ne.s32.totalorder %s36, %s37
    %p51 = scmp.eq.s32.totalorder %s15, 1
    %p52 = por %p50, %p51
    %p54 = scmp.ne.s32.totalorder %s37, %s53
    %p55 = scmp.eq.s32.totalorder %s15, 0
    %p56 = por %p54, %p55
    %s58 = sadd.s32 %s57, 1
    %p61 = scmp.eq.s32.totalorder %s9, 1
    %p62 = scmp.ne.s32.totalorder %s57, %s59
    %p63 = scmp.eq.s32.totalorder %s9, 0
    %p64 = por %p62, %p63
    %p65 = scmp.ne.s32.totalorder %s57, %s59
    %p66 = scmp.eq.s32.totalorder %s14, 1
    %p67 = por %p65, %p66
    %p68 = scmp.ne.s32.totalorder %s59, %s60
    %p69 = scmp.eq.s32.totalorder %s14, 0
    %p70 = por %p68, %p69
    %p71 = scmp.ne.s32.totalorder %s59, %s60
    %p72 = scmp.eq.s32.totalorder %s15, 1
    %p73 = por %p71, %p72
    %p75 = scmp.ne.s32.totalorder %s60, %s74
    %p76 = scmp.eq.s32.totalorder %s15, 0
    %p77 = por %p75, %p76
    %s79 = sadd.s32 %s78, 1
    %p82 = scmp.eq.s32.totalorder %s9, 1
    %p83 = scmp.ne.s32.totalorder %s78, %s80
    %p84 = scmp.eq.s32.totalorder %s9, 0
    %p85 = por %p83, %p84
    %p86 = scmp.ne.s32.totalorder %s78, %s80
    %p87 = scmp.eq.s32.totalorder %s14, 1
    %p88 = por %p86, %p87
    %p89 = scmp.ne.s32.totalorder %s80, %s81
    %p90 = scmp.eq.s32.totalorder %s14, 0
    %p91 = por %p89, %p90
    %p92 = scmp.ne.s32.totalorder %s80, %s81
    %p93 = scmp.eq.s32.totalorder %s15, 1
    %p94 = por %p92, %p93
    %p96 = scmp.ne.s32.totalorder %s81, %s95
    %p97 = scmp.eq.s32.totalorder %s15, 0
    %p98 = por %p96, %p97
    %s99 = ssub.s32 %s16, %s28
    %s100 = ssub.s32 %s17, %s24
    %s101 = sor.u32 %s99, %s100
    %p102 = scmp.eq.s32.totalorder %s101, 0
    %s104 = sadd.s32 %s103, 1
    %s105 = scalar_select %p102, %s103, %s104
    %p108 = pneg %p102
    %p109 = scmp.eq.s32.totalorder %s9, 1
    %p110 = por %p108, %p109
    %p111 = scmp.ne.s32.totalorder %s103, %s106
    %p112 = scmp.eq.s32.totalorder %s9, 0
    %p113 = por %p111, %p112
    %p114 = scmp.ne.s32.totalorder %s103, %s106
    %p115 = scmp.eq.s32.totalorder %s14, 1
    %p116 = por %p114, %p115
    %p117 = scmp.ne.s32.totalorder %s106, %s107
    %p118 = scmp.eq.s32.totalorder %s14, 0
    %p119 = por %p117, %p118
    %p120 = scmp.ne.s32.totalorder %s106, %s107
    %p121 = scmp.eq.s32.totalorder %s15, 1
    %p122 = por %p120, %p121
    %p124 = scmp.ne.s32.totalorder %s107, %s123
    %p125 = scmp.eq.s32.totalorder %s15, 0
    %p126 = por %p124, %p125
    %p127 = scmp.le.s32.totalorder 1, %s9
    %p128 = scmp.lt.s32.totalorder %s9, 3
    %p129 = pnand %p127, %p128
    %p130 = pneg %p129
    // Predicated region
    $region9: #{fcn_forward.15} parent=5 // pred_check
      _
    $region10: #{fcn_forward.15} parent=5 // pred_check_branch
      %132 = sbr.rel (%p129) target = $region12
    $region11: #{fcn_forward.15} parent=5 // pred_region
      %s133 = ssub.s32 %s9, 1
      // Predicated region
      $region13: #{fcn_forward.15} parent=11 // pred_check
        %p134 = pneg %p70
      $region14: #{fcn_forward.15} parent=11 // pred_check_branch
        %136 = sbr.rel (%p134) target = $region16
      $region15: #{fcn_forward.15} parent=11 // pred_region
        _
      $region16: #{fcn_forward.15} parent=11 // pred_fallthru
        _
      // Predicated region
      $region17: #{fcn_forward.15} parent=11 // pred_check
        %p137 = pneg %p91
      $region18: #{fcn_forward.15} parent=11 // pred_check_branch
        %139 = sbr.rel (%p137) target = $region20
      $region19: #{fcn_forward.15} parent=11 // pred_region
        _
      $region20: #{fcn_forward.15} parent=11 // pred_fallthru
        _
    $region12: #{fcn_forward.15} parent=5 // pred_fallthru
      _
    %p140 = scmp.lt.s32.totalorder %s9, 2
    // Predicated region
    $region21: #{fcn_forward.15} parent=5 // pred_check
      %p141 = pneg %p140
    $region22: #{fcn_forward.15} parent=5 // pred_check_branch
      %143 = sbr.rel (%p141) target = $region24
    $region23: #{fcn_forward.15} parent=5 // pred_region
      // Predicated region
      $region25: #{fcn_forward.15} parent=23 // pred_check
        %p144 = pneg %p43
      $region26: #{fcn_forward.15} parent=23 // pred_check_branch
        %146 = sbr.rel (%p144) target = $region28
      $region27: #{fcn_forward.15} parent=23 // pred_region
        %p147 = scmp.lt.s32.totalorder %s16, 1
        %s148 = scalar_select %p147, %s16, 1
        %p149 = scmp.lt.s32.totalorder %s17, 0
        %s150 = scalar_select %p149, %s17, 0
        %s151 = smul.addr %s148, 4
        %s152 = sadd.s32 %s150, %s151
        %s153 = smul.addr %s152, 4
        %s154 = scalar_lea.vmem %s0, %s153
      $region28: #{fcn_forward.15} parent=23 // pred_fallthru
        _
    $region24: #{fcn_forward.15} parent=5 // pred_fallthru
      _
    %p155 = scmp.le.s32.totalorder 1, %s9
    %p156 = scmp.lt.s32.totalorder %s9, 3
    %p157 = pnand %p155, %p156
    %p158 = pneg %p157
    // Predicated region
    $region29: #{fcn_forward.15} parent=5 // pred_check
      _
    $region30: #{fcn_forward.15} parent=5 // pred_check_branch
      %160 = sbr.rel (%p157) target = $region32
    $region31: #{fcn_forward.15} parent=5 // pred_region
      %s161 = ssub.s32 %s9, 1
      %p162 = scmp.lt.s32.totalorder %s18, 1
      %s163 = scalar_select %p162, %s18, 1
      %p164 = scmp.lt.s32.totalorder %s19, 0
      %s165 = scalar_select %p164, %s19, 0
      %s166 = smul.addr %s163, 4
      %s167 = sadd.s32 %s165, %s166
      %s168 = smul.addr %s167, 4
      %s169 = scalar_lea.vmem %s0, %s168
      %p170 = pneg %p49
      %p171 = pneg %p46
      %p172 = pneg %p70
      %p173 = pneg %p67
      %p174 = pneg %p91
      %p175 = pneg %p88
      %p176 = pneg %p119
      %p177 = pneg %p116
      %p178 = scmp.lt.s32.totalorder %s18, 1
      %s179 = scalar_select %p178, %s18, 1
      %p180 = scmp.lt.s32.totalorder %s19, 0
      %s181 = scalar_select %p180, %s19, 0
      %s182 = smul.addr %s179, 2
      %s183 = sadd.s32 %s181, %s182
      %s184 = smul.addr %s183, 8
      %s185 = scalar_lea.vmem %s3, %s184
      %p186 = scmp.lt.s32.totalorder %s18, 1
      %s187 = scalar_select %p186, %s18, 1
      %p188 = scmp.lt.s32.totalorder %s19, 0
      %s189 = scalar_select %p188, %s19, 0
      %s190 = smul.addr %s187, 4
      %s191 = sadd.s32 %s189, %s190
      %s192 = smul.addr %s191, 4
      %s193 = scalar_lea.vmem %s0, %s192
      %p194 = scmp.lt.s32.totalorder %s18, 1
      %s195 = scalar_select %p194, %s18, 1
      %p196 = scmp.lt.s32.totalorder %s19, 0
      %s197 = scalar_select %p196, %s19, 0
      %s198 = smul.addr %s195, 2
      %s199 = sadd.s32 %s197, %s198
      %s200 = smul.addr %s199, 8
      %s201 = scalar_lea.vmem %s3, %s200
      %v203 = vld [vmem:[%s1] sm:$0xf]
      %v204 = vld [vmem:[%s1 + $0x4] sm:$0xf]
      %v205 = vld [vmem:[%s193] sm:$0xf]
      %v206 = vld [vmem:[%s193 + $0x4] sm:$0xf]
      %v207 = vld [vmem:[%s193 + $0x8] sm:$0xf]
      %v208 = vld [vmem:[%s193 + $0xc] sm:$0xf]
      %v209 = vld [vmem:[%s2] sm:$0xff]
      %v210 = vld [vmem:[%s2 + $0x8] sm:$0xff]
      %212 = vset.pattern.permute.xlu0 0
      %213 = vperm.xlu0 %212, %v209
      %v214 = vpop.permute.xlu0 %213
      %217 = vset.pattern.permute.xlu0 0
      %218 = vperm.xlu0 %217, %v210
      %v219 = vpop.permute.xlu0 %218
      %v223 = vunpack.c.l.b16 %v203
      %v224 = vunpack.c.l.b16 %v204
      %v225 = vpack.c.b16 %v224, %v223
      %v230 = vunpack.c.l.b16 %v205
      %v231 = vunpack.c.l.b16 %v206
      %v232 = vunpack.c.l.b16 %v207
      %v233 = vunpack.c.l.b16 %v208
      %v234 = vpack.c.b16 %v231, %v230
      %v235 = vpack.c.b16 %v233, %v232
      %vm238 = vcmask 261120
      %v240 = vsel %vm238, %v225, 0
      %242 = vmatprep.subr.bf16.mxu0 0
      %243 = vmatpush1.bf16.msra.mxu0 0
      %244 = vmatprep.subr.bf16.mxu0 0
      %245 = vmatpush1.bf16.msra.mxu0 0
      %246 = vmatprep.subr.bf16.mxu0 0
      %247 = vmatpush1.bf16.msra.mxu0 0
      %248 = vmatprep.subr.bf16.mxu0 0
      %249 = vmatpush1.bf16.msra.mxu0 0
      %250 = vmatprep.subr.bf16.mxu0 0
      %251 = vmatpush1.bf16.msra.mxu0 0
      %252 = vmatprep.subr.bf16.mxu0 0
      %253 = vmatpush1.bf16.msra.mxu0 0
      %254 = vmatprep.subr.bf16.mxu0 0
      %255 = vmatpush1.bf16.msra.mxu0 %v235
      %256 = vmatprep.subr.bf16.mxu0 0
      %257 = vmatpush1.bf16.msra.mxu0 %v234
      %258 = vmatprep.subr.bf16.mxu0 0
      %259 = vmatpush2.bf16.msra.mxu0 0
      %260 = vmatprep.subr.bf16.mxu0 0
      %261 = vmatpush2.bf16.msra.mxu0 0
      %262 = vmatprep.subr.bf16.mxu0 0
      %263 = vmatpush2.bf16.msra.mxu0 0
      %264 = vmatprep.subr.bf16.mxu0 0
      %265 = vmatpush2.bf16.msra.mxu0 0
      %266 = vmatprep.subr.bf16.mxu0 0
      %267 = vmatpush2.bf16.msra.mxu0 0
      %268 = vmatprep.subr.bf16.mxu0 0
      %269 = vmatpush2.bf16.msra.mxu0 0
      %270 = vmatprep.subr.bf16.mxu0 0
      %271 = vmatpush2.bf16.msra.mxu0 0
      %272 = vmatprep.subr.bf16.mxu0 0
      %273 = vmatpush2.bf16.msra.mxu0 0
      %274 = vmatprep.mubr.bf16.mxu0 0
      %275 = vmatmul.mubr.bf16.gmra.mxu0 %v240
      %v276 = vpop.f32.mrf.mxu0
      %v277 = vadd.f32 %v214, %v276
      %v278 = vpop.f32.mrf.mxu0
      %v279 = vpop.f32.mrf.mxu0
      %v280 = vadd.f32 %v219, %v279
      %v281 = vpop.f32.mrf.mxu0
      %282 = vdwg.mxu0
      %vm283 = vcmp.ge.f32.partialorder %v277, 0.0
      %vm284 = vcmp.ge.f32.partialorder %v280, 0.0
      %v285 = vmul.f32 %v277, 0.01
      %v286 = vmul.f32 %v280, 0.01
      %v287 = vsel %vm283, %v277, %v285
      %v288 = vsel %vm284, %v280, %v286
      %289 = vst [vmem:[%s201] sm:$0xff] %v287
      %290 = vst [vmem:[%s201 + $0x8] sm:$0xff] %v288
      %p291 = scmp.lt.s32.totalorder %s18, 1
      %s292 = scalar_select %p291, %s18, 1
      %p293 = scmp.lt.s32.totalorder %s19, 0
      %s294 = scalar_select %p293, %s19, 0
      %s295 = smul.addr %s292, 2
      %s296 = sadd.s32 %s294, %s295
      %s297 = smul.addr %s296, 8
      %s298 = scalar_lea.vmem %s3, %s297
      // Predicated region
      $region33: #{fcn_forward.15} parent=31 // pred_check
        %p299 = pneg %p116
      $region34: #{fcn_forward.15} parent=31 // pred_check_branch
        %301 = sbr.rel (%p299) target = $region36
      $region35: #{fcn_forward.15} parent=31 // pred_region
        _
      $region36: #{fcn_forward.15} parent=31 // pred_fallthru
        _
    $region32: #{fcn_forward.15} parent=5 // pred_fallthru
      _
    %p302 = scmp.le.s32.totalorder 2, %s9
    // Predicated region
    $region37: #{fcn_forward.15} parent=5 // pred_check
      %p303 = pneg %p302
    $region38: #{fcn_forward.15} parent=5 // pred_check_branch
      %305 = sbr.rel (%p303) target = $region40
    $region39: #{fcn_forward.15} parent=5 // pred_region
      %s306 = ssub.s32 %s9, 2
      // Predicated region
      $region41: #{fcn_forward.15} parent=39 // pred_check
        %p307 = pneg %p122
      $region42: #{fcn_forward.15} parent=39 // pred_check_branch
        %309 = sbr.rel (%p307) target = $region44
      $region43: #{fcn_forward.15} parent=39 // pred_region
        %p310 = scmp.lt.s32.totalorder %s20, 1
        %s311 = scalar_select %p310, %s20, 1
        %p312 = scmp.lt.s32.totalorder %s21, 0
        %s313 = scalar_select %p312, %s21, 0
        %s314 = smul.addr %s311, 2
        %s315 = sadd.s32 %s313, %s314
        %s316 = smul.addr %s315, 8
        %s317 = scalar_lea.vmem %s3, %s316
      $region44: #{fcn_forward.15} parent=39 // pred_fallthru
        _
    $region40: #{fcn_forward.15} parent=5 // pred_fallthru
      _
  $region6: #{fcn_forward.15} parent=0 // loop_footer
    %s13 = sadd.s32 1, %s9
  $region7: #{fcn_forward.15} parent=0 // loop_footer_branch
    %8 = sbr.rel target = $region3
  $region8: #{fcn_forward.15} parent=0 // loop_exit
    _

// kernel: fcn_forward.17
$region0: #{fcn_forward.17}
  #allocation0 [shape = 'u32[]', space=smem, size = 0x4, offset = 0x4, fixed_abs, tag = 'smem constant byte address 0x4 - core index']
  #allocation1 [shape = 'u32[144,128]{1,0:T(1,128)}', space=vmem, size = 0x12000, scoped, tag = 'internal scratch']
  %s0 = inlined_call_operand.vmem [shape: bf16[2,16,1], index: 0, kind: input, shape index: {}]
  %s1 = inlined_call_operand.vmem [shape: bf16[2,16], index: 1, kind: input, shape index: {}]
  %s2 = inlined_call_operand.vmem [shape: f32[2,1], index: 2, kind: input, shape index: {}]
  %s3 = inlined_call_operand.vmem [shape: f32[2,2,1], index: 3, kind: output, shape index: {}]
  %s4 = sld [smem:[#allocation0]]
  $region45: #{fcn_forward.17} parent=0
    _
  %s6 = ssub.s32 1, %s4
  %s7 = scalar_select 0, %s6, %s4
  loop: start=0, step=1, limit=4
  $region2: #{fcn_forward.17} parent=0 // loop_pre_header
    _
  $region3: #{fcn_forward.17} parent=0 // loop_header
    %s9 = sphi 0, %s13
    %p10 = scmp.ge.s32.totalorder %s9, 4
    %s19 = sphi 0, %s21
    %s22 = sphi 0, %s19
    %s23 = sphi 0, %s22
    %s39 = sphi 0, %s23
    %s43 = sphi 0, %s43
    %s45 = sphi 0, %s43
    %s46 = sphi 0, %s45
    %s60 = sphi 0, %s46
    %s64 = sphi 0, %s64
    %s66 = sphi 0, %s64
    %s67 = sphi 0, %s66
    %s81 = sphi 0, %s67
    %s87 = sphi 0, %s89
    %s90 = sphi 0, %s87
    %s91 = sphi 0, %s90
    %s107 = sphi 0, %s91
  $region4: #{fcn_forward.17} parent=0 // loop_header_branch
    %12 = sbr.rel (%p10) target = $region8
  $region5: #{fcn_forward.17} parent=0 // loop_body
    %s14 = ssub.s32 %s9, 1
    %s15 = ssub.s32 %s9, 2
    %s16 = sadd.s32 %s9, 1
    %s17 = ssub.s32 %s9, %s16
    %p18 = scmp.eq.s32.totalorder %s17, 0
    %s20 = sadd.s32 %s19, 1
    %s21 = scalar_select %p18, %s19, %s20
    %p24 = pneg %p18
    %p25 = scmp.eq.s32.totalorder %s9, 1
    %p26 = por %p24, %p25
    %p27 = scmp.ne.s32.totalorder %s19, %s22
    %p28 = scmp.eq.s32.totalorder %s9, 0
    %p29 = por %p27, %p28
    %p30 = scmp.ne.s32.totalorder %s19, %s22
    %p31 = scmp.eq.s32.totalorder %s14, 1
    %p32 = por %p30, %p31
    %p33 = scmp.ne.s32.totalorder %s22, %s23
    %p34 = scmp.eq.s32.totalorder %s14, 0
    %p35 = por %p33, %p34
    %p36 = scmp.ne.s32.totalorder %s22, %s23
    %p37 = scmp.eq.s32.totalorder %s15, 1
    %p38 = por %p36, %p37
    %p40 = scmp.ne.s32.totalorder %s23, %s39
    %p41 = scmp.eq.s32.totalorder %s15, 0
    %p42 = por %p40, %p41
    %s44 = sadd.s32 %s43, 1
    %p47 = scmp.eq.s32.totalorder %s9, 1
    %p48 = scmp.ne.s32.totalorder %s43, %s45
    %p49 = scmp.eq.s32.totalorder %s9, 0
    %p50 = por %p48, %p49
    %p51 = scmp.ne.s32.totalorder %s43, %s45
    %p52 = scmp.eq.s32.totalorder %s14, 1
    %p53 = por %p51, %p52
    %p54 = scmp.ne.s32.totalorder %s45, %s46
    %p55 = scmp.eq.s32.totalorder %s14, 0
    %p56 = por %p54, %p55
    %p57 = scmp.ne.s32.totalorder %s45, %s46
    %p58 = scmp.eq.s32.totalorder %s15, 1
    %p59 = por %p57, %p58
    %p61 = scmp.ne.s32.totalorder %s46, %s60
    %p62 = scmp.eq.s32.totalorder %s15, 0
    %p63 = por %p61, %p62
    %s65 = sadd.s32 %s64, 1
    %p68 = scmp.eq.s32.totalorder %s9, 1
    %p69 = scmp.ne.s32.totalorder %s64, %s66
    %p70 = scmp.eq.s32.totalorder %s9, 0
    %p71 = por %p69, %p70
    %p72 = scmp.ne.s32.totalorder %s64, %s66
    %p73 = scmp.eq.s32.totalorder %s14, 1
    %p74 = por %p72, %p73
    %p75 = scmp.ne.s32.totalorder %s66, %s67
    %p76 = scmp.eq.s32.totalorder %s14, 0
    %p77 = por %p75, %p76
    %p78 = scmp.ne.s32.totalorder %s66, %s67
    %p79 = scmp.eq.s32.totalorder %s15, 1
    %p80 = por %p78, %p79
    %p82 = scmp.ne.s32.totalorder %s67, %s81
    %p83 = scmp.eq.s32.totalorder %s15, 0
    %p84 = por %p82, %p83
    %s85 = ssub.s32 %s9, %s16
    %p86 = scmp.eq.s32.totalorder %s85, 0
    %s88 = sadd.s32 %s87, 1
    %s89 = scalar_select %p86, %s87, %s88
    %p92 = pneg %p86
    %p93 = scmp.eq.s32.totalorder %s9, 1
    %p94 = por %p92, %p93
    %p95 = scmp.ne.s32.totalorder %s87, %s90
    %p96 = scmp.eq.s32.totalorder %s9, 0
    %p97 = por %p95, %p96
    %p98 = scmp.ne.s32.totalorder %s87, %s90
    %p99 = scmp.eq.s32.totalorder %s14, 1
    %p100 = por %p98, %p99
    %p101 = scmp.ne.s32.totalorder %s90, %s91
    %p102 = scmp.eq.s32.totalorder %s14, 0
    %p103 = por %p101, %p102
    %p104 = scmp.ne.s32.totalorder %s90, %s91
    %p105 = scmp.eq.s32.totalorder %s15, 1
    %p106 = por %p104, %p105
    %p108 = scmp.ne.s32.totalorder %s91, %s107
    %p109 = scmp.eq.s32.totalorder %s15, 0
    %p110 = por %p108, %p109
    %p111 = scmp.le.s32.totalorder 1, %s9
    %p112 = scmp.lt.s32.totalorder %s9, 3
    %p113 = pnand %p111, %p112
    %p114 = pneg %p113
    // Predicated region
    $region9: #{fcn_forward.17} parent=5 // pred_check
      _
    $region10: #{fcn_forward.17} parent=5 // pred_check_branch
      %116 = sbr.rel (%p113) target = $region12
    $region11: #{fcn_forward.17} parent=5 // pred_region
      %s117 = ssub.s32 %s9, 1
      // Predicated region
      $region13: #{fcn_forward.17} parent=11 // pred_check
        %p118 = pneg %p56
      $region14: #{fcn_forward.17} parent=11 // pred_check_branch
        %120 = sbr.rel (%p118) target = $region16
      $region15: #{fcn_forward.17} parent=11 // pred_region
        _
      $region16: #{fcn_forward.17} parent=11 // pred_fallthru
        _
      // Predicated region
      $region17: #{fcn_forward.17} parent=11 // pred_check
        %p121 = pneg %p77
      $region18: #{fcn_forward.17} parent=11 // pred_check_branch
        %123 = sbr.rel (%p121) target = $region20
      $region19: #{fcn_forward.17} parent=11 // pred_region
        _
      $region20: #{fcn_forward.17} parent=11 // pred_fallthru
        _
    $region12: #{fcn_forward.17} parent=5 // pred_fallthru
      _
    %p124 = scmp.lt.s32.totalorder %s9, 2
    // Predicated region
    $region21: #{fcn_forward.17} parent=5 // pred_check
      %p125 = pneg %p124
    $region22: #{fcn_forward.17} parent=5 // pred_check_branch
      %127 = sbr.rel (%p125) target = $region24
    $region23: #{fcn_forward.17} parent=5 // pred_region
      // Predicated region
      $region25: #{fcn_forward.17} parent=23 // pred_check
        %p128 = pneg %p29
      $region26: #{fcn_forward.17} parent=23 // pred_check_branch
        %130 = sbr.rel (%p128) target = $region28
      $region27: #{fcn_forward.17} parent=23 // pred_region
        %p131 = scmp.lt.s32.totalorder %s9, 1
        %s132 = scalar_select %p131, %s9, 1
        %s133 = smul.addr %s132, 2
        %s134 = smul.addr %s133, 4
        %s135 = scalar_lea.vmem %s0, %s134
      $region28: #{fcn_forward.17} parent=23 // pred_fallthru
        _
    $region24: #{fcn_forward.17} parent=5 // pred_fallthru
      _
    %p136 = scmp.le.s32.totalorder 1, %s9
    %p137 = scmp.lt.s32.totalorder %s9, 3
    %p138 = pnand %p136, %p137
    %p139 = pneg %p138
    // Predicated region
    $region29: #{fcn_forward.17} parent=5 // pred_check
      _
    $region30: #{fcn_forward.17} parent=5 // pred_check_branch
      %141 = sbr.rel (%p138) target = $region32
    $region31: #{fcn_forward.17} parent=5 // pred_region
      %s142 = ssub.s32 %s9, 1
      %p143 = scmp.lt.s32.totalorder %s14, 1
      %s144 = scalar_select %p143, %s14, 1
      %s145 = smul.addr %s144, 2
      %s146 = smul.addr %s145, 4
      %s147 = scalar_lea.vmem %s0, %s146
      %p148 = pneg %p35
      %p149 = pneg %p32
      %p150 = pneg %p56
      %p151 = pneg %p53
      %p152 = pneg %p77
      %p153 = pneg %p74
      %p154 = pneg %p103
      %p155 = pneg %p100
      %p156 = scmp.lt.s32.totalorder %s14, 1
      %s157 = scalar_select %p156, %s14, 1
      %s158 = smul.addr %s157, 2
      %s159 = scalar_lea.vmem %s3, %s158
      %p160 = scmp.lt.s32.totalorder %s14, 1
      %s161 = scalar_select %p160, %s14, 1
      %s162 = smul.addr %s161, 2
      %s163 = smul.addr %s162, 4
      %s164 = scalar_lea.vmem %s0, %s163
      %p165 = scmp.lt.s32.totalorder %s14, 1
      %s166 = scalar_select %p165, %s14, 1
      %s167 = smul.addr %s166, 2
      %s168 = scalar_lea.vmem %s3, %s167
      %v170 = vld [vmem:[%s1] sm:$0x1]
      %v171 = vld [vmem:[%s164] sm:$0xf]
      %v172 = vld [vmem:[%s164 + $0x4] sm:$0xf]
      %v173 = vld [vmem:[%s2] sm:$0x3]
      %v176 = vunpack.c.l.b16 %v171
      %v177 = vunpack.c.l.b16 %v172
      %v178 = vpack.c.b16 %v177, %v176
      %vm180 = vcmask 130048
      %v182 = vsel %vm180, %v170, 0
      %184 = vmatprep.subr.bf16.mxu0 0
      %185 = vmatpush1.bf16.msra.mxu0 0
      %186 = vmatprep.subr.bf16.mxu0 0
      %187 = vmatpush1.bf16.msra.mxu0 0
      %188 = vmatprep.subr.bf16.mxu0 0
      %189 = vmatpush1.bf16.msra.mxu0 0
      %190 = vmatprep.subr.bf16.mxu0 0
      %191 = vmatpush1.bf16.msra.mxu0 0
      %192 = vmatprep.subr.bf16.mxu0 0
      %193 = vmatpush1.bf16.msra.mxu0 0
      %194 = vmatprep.subr.bf16.mxu0 0
      %195 = vmatpush1.bf16.msra.mxu0 0
      %196 = vmatprep.subr.bf16.mxu0 0
      %197 = vmatpush1.bf16.msra.mxu0 0
      %198 = vmatprep.subr.bf16.mxu0 0
      %199 = vmatpush1.bf16.msra.mxu0 %v178
      %200 = vmatprep.subr.bf16.mxu0 0
      %201 = vmatpush2.bf16.msra.mxu0 0
      %202 = vmatprep.subr.bf16.mxu0 0
      %203 = vmatpush2.bf16.msra.mxu0 0
      %204 = vmatprep.subr.bf16.mxu0 0
      %205 = vmatpush2.bf16.msra.mxu0 0
      %206 = vmatprep.subr.bf16.mxu0 0
      %207 = vmatpush2.bf16.msra.mxu0 0
      %208 = vmatprep.subr.bf16.mxu0 0
      %209 = vmatpush2.bf16.msra.mxu0 0
      %210 = vmatprep.subr.bf16.mxu0 0
      %211 = vmatpush2.bf16.msra.mxu0 0
      %212 = vmatprep.subr.bf16.mxu0 0
      %213 = vmatpush2.bf16.msra.mxu0 0
      %214 = vmatprep.subr.bf16.mxu0 0
      %215 = vmatpush2.bf16.msra.mxu0 0
      %216 = vmatprep.mubr.bf16.mxu0 0
      %217 = vmatmul.mubr.bf16.gmra.mxu0 %v182
      %v218 = vpop.f32.mrf.mxu0
      %v219 = vadd.f32 %v173, %v218
      %v220 = vpop.f32.mrf.mxu0
      %v221 = vpop.f32.mrf.mxu0
      %v222 = vpop.f32.mrf.mxu0
      %223 = vdwg.mxu0
      %vm224 = vcmp.ge.f32.partialorder %v219, 0.0
      %v225 = vmul.f32 %v219, 0.01
      %v226 = vsel %vm224, %v219, %v225
      %vm227 = vcmask 1024
      %228 = vst.msk [vmem:[%s168] sm:$0x3] %vm227, %v226
      %p229 = scmp.lt.s32.totalorder %s14, 1
      %s230 = scalar_select %p229, %s14, 1
      %s231 = smul.addr %s230, 2
      %s232 = scalar_lea.vmem %s3, %s231
      // Predicated region
      $region33: #{fcn_forward.17} parent=31 // pred_check
        %p233 = pneg %p100
      $region34: #{fcn_forward.17} parent=31 // pred_check_branch
        %235 = sbr.rel (%p233) target = $region36
      $region35: #{fcn_forward.17} parent=31 // pred_region
        _
      $region36: #{fcn_forward.17} parent=31 // pred_fallthru
        _
    $region32: #{fcn_forward.17} parent=5 // pred_fallthru
      _
    %p236 = scmp.le.s32.totalorder 2, %s9
    // Predicated region
    $region37: #{fcn_forward.17} parent=5 // pred_check
      %p237 = pneg %p236
    $region38: #{fcn_forward.17} parent=5 // pred_check_branch
      %239 = sbr.rel (%p237) target = $region40
    $region39: #{fcn_forward.17} parent=5 // pred_region
      %s240 = ssub.s32 %s9, 2
      // Predicated region
      $region41: #{fcn_forward.17} parent=39 // pred_check
        %p241 = pneg %p106
      $region42: #{fcn_forward.17} parent=39 // pred_check_branch
        %243 = sbr.rel (%p241) target = $region44
      $region43: #{fcn_forward.17} parent=39 // pred_region
        %p244 = scmp.lt.s32.totalorder %s15, 1
        %s245 = scalar_select %p244, %s15, 1
        %s246 = smul.addr %s245, 2
        %s247 = scalar_lea.vmem %s3, %s246
      $region44: #{fcn_forward.17} parent=39 // pred_fallthru
        _
    $region40: #{fcn_forward.17} parent=5 // pred_fallthru
      _
  $region6: #{fcn_forward.17} parent=0 // loop_footer
    %s13 = sadd.s32 1, %s9
  $region7: #{fcn_forward.17} parent=0 // loop_footer_branch
    %8 = sbr.rel target = $region3
  $region8: #{fcn_forward.17} parent=0 // loop_exit
    _

</llo_original>
